<compile_context>
chip_gen: v7x
topology: tpu7x:2x2x1
jax: 0.10.0
libtpu: 0.0.40
codegen_flags: <defaults>
</compile_context>

<pallas_src>
import jax
import jax.numpy as jnp
from jax import lax
from jax.experimental import pallas as pl
from jax.experimental.pallas import tpu as pltpu


PARAM_ORDER = ["wch", "bch", "wcw", "bcw", "wdh", "bdh", "wdw", "bdw",
               "wdw1", "bdw1", "wexc1", "bexc1", "wexc2", "bexc2"]


# ---------------------------------------------------------------------------
# Pallas kernel
# ---------------------------------------------------------------------------
def make_dasca_kernel(C, H, W, P):
    HW = H * W
    L = P * HW
    # TODO(synk): general (non power-of-two) H/W needs masked in-row reductions
    # for pool_h / pool_w; this kernel assumes powers of two.
    assert (W & (W - 1)) == 0 and (H & (H - 1)) == 0, "H and W must be powers of two"
    shiftw = W.bit_length() - 1  # log2(W)

    def kernel(x_ref, wch, bch, wcw, bcw, wdh, bdh, wdwr, bdwr,
               wdw1, bdw1, we1, be1, we2, be2, o_ref):
        x2 = x_ref[...].astype(jnp.float32)                       # (C, L)
        flat = lax.broadcasted_iota(jnp.int32, (C, L), 1) & (HW - 1)  # per-sample index
        col = flat & (W - 1)                                      # w coordinate
        row = flat >> shiftw                                      # h coordinate

        mask_cache = {}

        def shift_mask(dh, dw):
            key = (dh, dw)
            if key not in mask_cache:
                m = None
                if dw > 0:
                    m = col < (W - dw)
                elif dw < 0:
                    m = col >= (-dw)
                if dh > 0:
                    hm = row < (H - dh)
                    m = hm if m is None else m & hm
                elif dh < 0:
                    hm = row >= (-dh)
                    m = hm if m is None else m & hm
                mask_cache[key] = m
            return mask_cache[key]

        def shift(a, dh, dw):
            """out[c, p*HW + h*W + w] = a[c, p*HW + (h+dh)*W + (w+dw)], 0 outside."""
            d = dh * W + dw
            y = a if d == 0 else pltpu.roll(a, (-d) % L, axis=1)
            m = shift_mask(dh, dw)
            return y if m is None else jnp.where(m, y, 0.0)

        def conv_mix(a, w_ref, b_ref, along_w):
            """Full channel-mixing 3-tap conv as one MXU matmul.
            w_ref: (C, 3C) with w[co, t*C + ci]; taps t=0,1,2 <-> offsets -1,0,+1."""
            taps = [shift(a, 0, d) if along_w else shift(a, d, 0)
                    for d in (-1, 0, 1)]
            stacked = jnp.concatenate(taps, axis=0)               # (3C, L), tile-aligned
            return jnp.dot(w_ref[...], stacked,
                           preferred_element_type=jnp.float32) + b_ref[...]

        def dwconv(a, w_ref, b_ref, kh, kw, relu=False):
            """Depthwise kh x kw conv; w_ref: (C, kh*kw) with w[c, i*kw + j]."""
            w = w_ref[...]                                        # (C, taps) in vregs
            acc = jnp.zeros((C, L), jnp.float32)
            t = 0
            for i in range(kh):
                for j in range(kw):
                    acc = acc + w[:, t:t + 1] * shift(a, i - kh // 2, j - kw // 2)
                    t += 1
            acc = acc + b_ref[...]
            return jnp.maximum(acc, 0.0) if relu else acc

        def mean_over_w(a):
            """pool_h: per-(sample,row) mean over W, broadcast back over the row."""
            s = a
            k = 1
            while k < W:                                          # in-row XOR butterfly
                fwd = pltpu.roll(s, (-k) % L, axis=1)             # s[i + k]
                bwd = pltpu.roll(s, k, axis=1)                    # s[i - k]
                s = s + jnp.where((col & k) == 0, fwd, bwd)
                k *= 2
            return s * (1.0 / W)

        def mean_over_h(a):
            """pool_w: per-(sample,col) mean over H, broadcast back over the column."""
            s = a
            k = 1
            while k < H:                                          # row-wise XOR butterfly
                fwd = pltpu.roll(s, (-k * W) % L, axis=1)         # s[i + k*W]
                bwd = pltpu.roll(s, k * W, axis=1)                # s[i - k*W]
                s = s + jnp.where((row & k) == 0, fwd, bwd)
                k *= 2
            return s * (1.0 / H)

        def sigmoid(a):
            return 1.0 / (1.0 + jnp.exp(-a))                      # exact (EUP exp + div)

        # --- conv_h branch: consume fully before conv_w to shrink the live set ---
        conv_h = conv_mix(x2, wch, bch, along_w=True)             # conv_h(x)   (1,3)
        pooled = mean_over_w(conv_h)                              # pool_h (broadcast)
        sig = sigmoid(conv_mix(conv_h, wdh, bdh, along_w=True))   # sigmoid(dwconv_h)
        # --- conv_w branch ---
        conv_w = conv_mix(x2, wcw, bcw, along_w=False)            # conv_w(x)   (3,1)
        pooled = pooled + mean_over_h(conv_w)                     # + pool_w
        sig = sig + sigmoid(conv_mix(conv_w, wdwr, bdwr, along_w=False))
        # --- gather / excite ---
        x_gather = dwconv(pooled, wdw1, bdw1, 3, 3)               # dwconv1 (dw 3x3)
        out = sig * x_gather                                      # out1 + out2 factored
        e = dwconv(out, we1, be1, 1, 11, relu=True)               # excite conv1 (BN folded) + ReLU
        e = dwconv(e, we2, be2, 11, 1)                            # excite conv2
        # sge(x) = excite(out) + x ; forward = sge(x) + x
        o_ref[...] = (e + 2.0 * x2).astype(o_ref.dtype)

    return kernel


# ---------------------------------------------------------------------------
# wrapper
# ---------------------------------------------------------------------------
def _round_up(n, m):
    return -(-n // m) * m


def _pad_axis(a, target, axis):
    pad = target - a.shape[axis]
    if pad == 0:
        return a
    widths = [(0, 0)] * a.ndim
    widths[axis] = (0, pad)
    return jnp.pad(a, widths)


def _prep_params(params, C, Cp):
    """BN fold + channel padding to Cp + reshape into the kernel's VMEM layouts."""
    f32 = lambda a: jnp.asarray(a, jnp.float32)
    bns = _pad_axis(f32(params["bns"]), Cp, 0)
    bnb = _pad_axis(f32(params["bnb"]), Cp, 0)

    def mix_w(w):                        # (3, C, C) tap-major -> (Cp, 3*Cp)
        w = _pad_axis(_pad_axis(f32(w), Cp, 1), Cp, 2)
        return jnp.transpose(w, (1, 0, 2)).reshape(Cp, 3 * Cp)

    def colvec(b):                       # (C,) -> (Cp, 1)
        return _pad_axis(f32(b), Cp, 0).reshape(Cp, 1)

    def dw_w(w):                         # (taps, C) tap-major -> (Cp, taps)
        return _pad_axis(f32(w), Cp, 1).T

    # Fold eval-mode BatchNorm into the first excite conv.
    we1 = (_pad_axis(f32(params["wexc1"]), Cp, 1) * bns[None, :]).T   # (Cp, 11)
    be1 = (_pad_axis(f32(params["bexc1"]), Cp, 0) * bns + bnb).reshape(Cp, 1)

    return [
        mix_w(params["wch"]), colvec(params["bch"]),
        mix_w(params["wcw"]), colvec(params["bcw"]),
        mix_w(params["wdh"]), colvec(params["bdh"]),
        mix_w(params["wdw"]), colvec(params["bdw"]),
        dw_w(params["wdw1"]), colvec(params["bdw1"]),
        we1, be1,
        dw_w(params["wexc2"]), colvec(params["bexc2"]),
    ]


def _pick_pack(N, C, HW, budget_bytes=4 << 20, live_slabs=24):
    """Samples packed per grid step along the lane axis (keeps >=2 grid steps)."""
    best = 1
    for p in range(1, N + 1):
        if N % p:
            continue
        if N >= 2 and N // p < 2:          # keep both TensorCores busy on v7x
            continue
        if live_slabs * C * p * HW * 4 > budget_bytes:
            continue
        best = p
    return best


def dasca_pallas(x, params):
    N, C, H, W = x.shape
    HW = H * W
    Cp = _round_up(C, 8)                   # fill the (8,128) f32 tile sublanes
    P = _pick_pack(N, Cp, HW)
    G = N // P
    L = P * HW

    xp = _pad_axis(jnp.asarray(x, jnp.float32), Cp, 1)            # (N, Cp, H, W)
    # Pack P samples per grid step along the lane axis: (G, Cp, P*HW).
    x2 = xp.reshape(G, P, Cp, HW).transpose(0, 2, 1, 3).reshape(G, Cp, L)

    kparams = _prep_params(params, C, Cp)
    kernel = make_dasca_kernel(Cp, H, W, P)

    def const_spec(a):
        zeros = (0,) * a.ndim
        return pl.BlockSpec(a.shape, lambda g, _z=zeros: _z)      # VMEM-resident weights

    out = pl.pallas_call(
        kernel,
        out_shape=jax.ShapeDtypeStruct((G, Cp, L), jnp.float32),
        grid_spec=pltpu.PrefetchScalarGridSpec(
            num_scalar_prefetch=0,
            grid=(G,),
            in_specs=[pl.BlockSpec((None, Cp, L), lambda g: (g, 0, 0))]
                     + [const_spec(a) for a in kparams],
            out_specs=pl.BlockSpec((None, Cp, L), lambda g: (g, 0, 0)),
        ),
        compiler_params=pltpu.CompilerParams(
            dimension_semantics=("parallel",),
            vmem_limit_bytes=32 * 1024 * 1024,
        ),
    )(x2, *kparams)

    out = out.reshape(G, Cp, P, HW).transpose(0, 2, 1, 3).reshape(N, Cp, H, W)
    return out[:, :C]


# ---------------------------------------------------------------------------
# pure-JAX reference (independent math: pad + slice convs, unfolded BN)
# ---------------------------------------------------------------------------
def _ref_conv_mix(x, w, b, along_w):
    C, H, W = x.shape
    K = w.shape[0]
    r = K // 2
    if along_w:
        xp = jnp.pad(x, ((0, 0), (0, 0), (r, r)))
        slabs = [xp[:, :, t:t + W] for t in range(K)]
    else:
        xp = jnp.pad(x, ((0, 0), (r, r), (0, 0)))
        slabs = [xp[:, t:t + H, :] for t in range(K)]
    acc = jnp.zeros((C, H, W), jnp.float32)
    for t in range(K):
        acc = acc + jnp.einsum("oi,ihw->ohw", w[t], slabs[t])
    return acc + b[:, None, None]


def _ref_dwconv(x, w, b, kh, kw):
    C, H, W = x.shape
    xp = jnp.pad(x, ((0, 0), (kh // 2, kh // 2), (kw // 2, kw // 2)))
    acc = jnp.zeros((C, H, W), jnp.float32)
    for i in range(kh):
        for j in range(kw):
            acc = acc + w[i * kw + j][:, None, None] * xp[:, i:i + H, j:j + W]
    return acc + b[:, None, None]


def dasca_reference(x_chw, p):
    conv_h = _ref_conv_mix(x_chw, p["wch"], p["bch"], along_w=True)
    conv_w = _ref_conv_mix(x_chw, p["wcw"], p["bcw"], along_w=False)
    x_h = jnp.mean(conv_h, axis=-1, keepdims=True)               # pool_h -> (C,H,1)
    x_w = jnp.mean(conv_w, axis=-2, keepdims=True)               # pool_w -> (C,1,W)
    x_gather = x_h + x_w
    x_gather = _ref_dwconv(x_gather, p["wdw1"], p["bdw1"], 3, 3)
    sig_h = jax.nn.sigmoid(_ref_conv_mix(conv_h, p["wdh"], p["bdh"], along_w=True))
    sig_w = jax.nn.sigmoid(_ref_conv_mix(conv_w, p["wdw"], p["bdw"], along_w=False))
    out = sig_h * x_gather + sig_w * x_gather
    e = _ref_dwconv(out, p["wexc1"], p["bexc1"], 1, 11)
    e = jax.nn.relu(e * p["bns"][:, None, None] + p["bnb"][:, None, None])
    e = _ref_dwconv(e, p["wexc2"], p["bexc2"], 11, 1)
    ge = e + x_chw
    return ge + x_chw


# ---------------------------------------------------------------------------
# deterministic synthetic parameters (shapes follow DASCA.__init__ with
# inp=C, ratio=1, band_kernel_size=11, square_kernel_size=3)
# ---------------------------------------------------------------------------
def init_params(key, C):
    ks = jax.random.split(key, 18)

    def rnd(k, shape, scale=0.2):
        return scale * jax.random.normal(k, shape, jnp.float32)

    p = {
        # full channel-mixing 3-tap convs, tap-major layout (tap, Cout, Cin)
        "wch": rnd(ks[0], (3, C, C)), "bch": rnd(ks[1], (C,), 0.1),
        "wcw": rnd(ks[2], (3, C, C)), "bcw": rnd(ks[3], (C,), 0.1),
        "wdh": rnd(ks[4], (3, C, C)), "bdh": rnd(ks[5], (C,), 0.1),
        "wdw": rnd(ks[6], (3, C, C)), "bdw": rnd(ks[7], (C,), 0.1),
        # depthwise convs, tap-major layout (tap, C)
        "wdw1": rnd(ks[8], (9, C)), "bdw1": rnd(ks[9], (C,), 0.1),
        "wexc1": rnd(ks[10], (11, C)), "bexc1": rnd(ks[11], (C,), 0.1),
        "wexc2": rnd(ks[12], (11, C)), "bexc2": rnd(ks[13], (C,), 0.1),
    }
    # BatchNorm2d in eval mode, expressed as per-channel scale/shift.
    gamma = 1.0 + 0.1 * jax.random.normal(ks[14], (C,), jnp.float32)
    beta = 0.1 * jax.random.normal(ks[15], (C,), jnp.float32)
    rmean = 0.1 * jax.random.normal(ks[16], (C,), jnp.float32)
    rvar = jnp.abs(1.0 + 0.1 * jax.random.normal(ks[17], (C,), jnp.float32))
    scale = gamma / jnp.sqrt(rvar + 1e-5)
    p["bns"] = scale
    p["bnb"] = beta - rmean * scale
    return p


if __name__ == "__main__":
    key = jax.random.PRNGKey(0)
    kx, kp = jax.random.split(key)

    # N=4 exercises the lane-axis sample packing (P=2) while keeping 2 grid steps.
    N, C, H, W = 4, 4, 16, 16
    x = jax.random.normal(kx, (N, C, H, W), jnp.float32)
    params = init_params(kp, C)

    out = jax.block_until_ready(dasca_pallas(x, params))

    ref = jax.vmap(lambda xs: dasca_reference(xs, params))(x)
    err = float(jnp.max(jnp.abs(out - ref)))
    if err > 1e-3:
        raise AssertionError(f"Pallas kernel mismatch vs reference, max abs err={err}")

    print("KERNEL_OK")
</pallas_src>

<mosaic_0001>
module attributes {stable_mosaic.version = 11 : i64} {
  func.func @kernel(%arg0: i32, %arg1: memref<1x8x512xf32, #tpu.memory_space<vmem>>, %arg2: memref<8x24xf32, #tpu.memory_space<vmem>>, %arg3: memref<8x1xf32, #tpu.memory_space<vmem>>, %arg4: memref<8x24xf32, #tpu.memory_space<vmem>>, %arg5: memref<8x1xf32, #tpu.memory_space<vmem>>, %arg6: memref<8x24xf32, #tpu.memory_space<vmem>>, %arg7: memref<8x1xf32, #tpu.memory_space<vmem>>, %arg8: memref<8x24xf32, #tpu.memory_space<vmem>>, %arg9: memref<8x1xf32, #tpu.memory_space<vmem>>, %arg10: memref<8x9xf32, #tpu.memory_space<vmem>>, %arg11: memref<8x1xf32, #tpu.memory_space<vmem>>, %arg12: memref<8x11xf32, #tpu.memory_space<vmem>>, %arg13: memref<8x1xf32, #tpu.memory_space<vmem>>, %arg14: memref<8x11xf32, #tpu.memory_space<vmem>>, %arg15: memref<8x1xf32, #tpu.memory_space<vmem>>, %arg16: memref<1x8x512xf32, #tpu.memory_space<vmem>>) attributes {dimension_semantics = [#tpu.dimension_semantics<parallel>], iteration_bounds = array<i64: 2>, scalar_prefetch = 0 : i64, scratch_operands = 0 : i64, tpu.core_type = #tpu.core_type<tc>, window_params = [{transform_indices = @transform_0, window_bounds = array<i64: 1, 8, 512>}, {pipeline_mode = #tpu.pipeline_mode<synchronous>, transform_indices = @transform_1, window_bounds = array<i64: 8, 24>}, {pipeline_mode = #tpu.pipeline_mode<synchronous>, transform_indices = @transform_2, window_bounds = array<i64: 8, 1>}, {pipeline_mode = #tpu.pipeline_mode<synchronous>, transform_indices = @transform_3, window_bounds = array<i64: 8, 24>}, {pipeline_mode = #tpu.pipeline_mode<synchronous>, transform_indices = @transform_4, window_bounds = array<i64: 8, 1>}, {pipeline_mode = #tpu.pipeline_mode<synchronous>, transform_indices = @transform_5, window_bounds = array<i64: 8, 24>}, {pipeline_mode = #tpu.pipeline_mode<synchronous>, transform_indices = @transform_6, window_bounds = array<i64: 8, 1>}, {pipeline_mode = #tpu.pipeline_mode<synchronous>, transform_indices = @transform_7, window_bounds = array<i64: 8, 24>}, {pipeline_mode = #tpu.pipeline_mode<synchronous>, transform_indices = @transform_8, window_bounds = array<i64: 8, 1>}, {pipeline_mode = #tpu.pipeline_mode<synchronous>, transform_indices = @transform_9, window_bounds = array<i64: 8, 9>}, {pipeline_mode = #tpu.pipeline_mode<synchronous>, transform_indices = @transform_10, window_bounds = array<i64: 8, 1>}, {pipeline_mode = #tpu.pipeline_mode<synchronous>, transform_indices = @transform_11, window_bounds = array<i64: 8, 11>}, {pipeline_mode = #tpu.pipeline_mode<synchronous>, transform_indices = @transform_12, window_bounds = array<i64: 8, 1>}, {pipeline_mode = #tpu.pipeline_mode<synchronous>, transform_indices = @transform_13, window_bounds = array<i64: 8, 11>}, {pipeline_mode = #tpu.pipeline_mode<synchronous>, transform_indices = @transform_14, window_bounds = array<i64: 8, 1>}, {transform_indices = @transform_15, window_bounds = array<i64: 1, 8, 512>}]} {
    %c0 = arith.constant 0 : index
    %c0_0 = arith.constant 0 : index
    %c0_1 = arith.constant 0 : index
    %0 = vector.load %arg1[%c0, %c0_0, %c0_1] : memref<1x8x512xf32, #tpu.memory_space<vmem>>, vector<1x8x512xf32>
    %1 = vector.shape_cast %0 : vector<1x8x512xf32> to vector<8x512xf32>
    %2 = tpu.iota {dimensions = array<i32: 1>} : vector<8x512xi32>
    %c255_i32 = arith.constant 255 : i32
    %3 = vector.broadcast %c255_i32 : i32 to vector<8x512xi32>
    %4 = arith.andi %2, %3 : vector<8x512xi32>
    %c15_i32 = arith.constant 15 : i32
    %5 = vector.broadcast %c15_i32 : i32 to vector<8x512xi32>
    %6 = arith.andi %4, %5 : vector<8x512xi32>
    %c4_i32 = arith.constant 4 : i32
    %7 = vector.broadcast %c4_i32 : i32 to vector<8x512xi32>
    %8 = arith.shrsi %4, %7 : vector<8x512xi32>
    %c1_i32 = arith.constant 1 : i32
    %9 = tpu.dynamic_rotate %1 by %c1_i32 dim 1 : vector<8x512xf32>, i32 -> vector<8x512xf32>
    %c1_i32_2 = arith.constant 1 : i32
    %10 = vector.broadcast %c1_i32_2 : i32 to vector<8x512xi32>
    %11 = arith.cmpi sge, %6, %10 : vector<8x512xi32>
    %cst = arith.constant 0.000000e+00 : f32
    %12 = vector.broadcast %cst : f32 to vector<8x512xf32>
    %13 = arith.select %11, %9, %12 : vector<8x512xi1>, vector<8x512xf32>
    %c511_i32 = arith.constant 511 : i32
    %14 = tpu.dynamic_rotate %1 by %c511_i32 dim 1 : vector<8x512xf32>, i32 -> vector<8x512xf32>
    %c15_i32_3 = arith.constant 15 : i32
    %15 = vector.broadcast %c15_i32_3 : i32 to vector<8x512xi32>
    %16 = arith.cmpi slt, %6, %15 : vector<8x512xi32>
    %cst_4 = arith.constant 0.000000e+00 : f32
    %17 = vector.broadcast %cst_4 : f32 to vector<8x512xf32>
    %18 = arith.select %16, %14, %17 : vector<8x512xi1>, vector<8x512xf32>
    %19 = tpu.concatenate %13, %1, %18 in 0 : vector<8x512xf32>, vector<8x512xf32>, vector<8x512xf32> -> vector<24x512xf32>
    %c0_5 = arith.constant 0 : index
    %c0_6 = arith.constant 0 : index
    %20 = vector.load %arg2[%c0_5, %c0_6] : memref<8x24xf32, #tpu.memory_space<vmem>>, vector<8x24xf32>
    %cst_7 = arith.constant dense<0.000000e+00> : vector<8x512xf32>
    %21 = tpu.matmul %20, %19, %cst_7 {dimension_numbers = #tpu.dot_dimension_numbers<[1], [0], [0], [1], [0, 0, 1, 1], [], []>} : vector<8x24xf32>, vector<24x512xf32>, vector<8x512xf32> -> vector<8x512xf32>
    %c0_8 = arith.constant 0 : index
    %c0_9 = arith.constant 0 : index
    %22 = vector.load %arg3[%c0_8, %c0_9] : memref<8x1xf32, #tpu.memory_space<vmem>>, vector<8x1xf32>
    %23 = vector.broadcast %22 : vector<8x1xf32> to vector<8x512xf32>
    %24 = arith.addf %21, %23 : vector<8x512xf32>
    %c511_i32_10 = arith.constant 511 : i32
    %25 = tpu.dynamic_rotate %24 by %c511_i32_10 dim 1 : vector<8x512xf32>, i32 -> vector<8x512xf32>
    %c1_i32_11 = arith.constant 1 : i32
    %26 = tpu.dynamic_rotate %24 by %c1_i32_11 dim 1 : vector<8x512xf32>, i32 -> vector<8x512xf32>
    %c1_i32_12 = arith.constant 1 : i32
    %27 = vector.broadcast %c1_i32_12 : i32 to vector<8x512xi32>
    %28 = arith.andi %6, %27 : vector<8x512xi32>
    %c0_i32 = arith.constant 0 : i32
    %29 = vector.broadcast %c0_i32 : i32 to vector<8x512xi32>
    %30 = arith.cmpi eq, %28, %29 : vector<8x512xi32>
    %31 = arith.select %30, %25, %26 : vector<8x512xi1>, vector<8x512xf32>
    %32 = arith.addf %24, %31 : vector<8x512xf32>
    %c510_i32 = arith.constant 510 : i32
    %33 = tpu.dynamic_rotate %32 by %c510_i32 dim 1 : vector<8x512xf32>, i32 -> vector<8x512xf32>
    %c2_i32 = arith.constant 2 : i32
    %34 = tpu.dynamic_rotate %32 by %c2_i32 dim 1 : vector<8x512xf32>, i32 -> vector<8x512xf32>
    %c2_i32_13 = arith.constant 2 : i32
    %35 = vector.broadcast %c2_i32_13 : i32 to vector<8x512xi32>
    %36 = arith.andi %6, %35 : vector<8x512xi32>
    %c0_i32_14 = arith.constant 0 : i32
    %37 = vector.broadcast %c0_i32_14 : i32 to vector<8x512xi32>
    %38 = arith.cmpi eq, %36, %37 : vector<8x512xi32>
    %39 = arith.select %38, %33, %34 : vector<8x512xi1>, vector<8x512xf32>
    %40 = arith.addf %32, %39 : vector<8x512xf32>
    %c508_i32 = arith.constant 508 : i32
    %41 = tpu.dynamic_rotate %40 by %c508_i32 dim 1 : vector<8x512xf32>, i32 -> vector<8x512xf32>
    %c4_i32_15 = arith.constant 4 : i32
    %42 = tpu.dynamic_rotate %40 by %c4_i32_15 dim 1 : vector<8x512xf32>, i32 -> vector<8x512xf32>
    %c4_i32_16 = arith.constant 4 : i32
    %43 = vector.broadcast %c4_i32_16 : i32 to vector<8x512xi32>
    %44 = arith.andi %6, %43 : vector<8x512xi32>
    %c0_i32_17 = arith.constant 0 : i32
    %45 = vector.broadcast %c0_i32_17 : i32 to vector<8x512xi32>
    %46 = arith.cmpi eq, %44, %45 : vector<8x512xi32>
    %47 = arith.select %46, %41, %42 : vector<8x512xi1>, vector<8x512xf32>
    %48 = arith.addf %40, %47 : vector<8x512xf32>
    %c504_i32 = arith.constant 504 : i32
    %49 = tpu.dynamic_rotate %48 by %c504_i32 dim 1 : vector<8x512xf32>, i32 -> vector<8x512xf32>
    %c8_i32 = arith.constant 8 : i32
    %50 = tpu.dynamic_rotate %48 by %c8_i32 dim 1 : vector<8x512xf32>, i32 -> vector<8x512xf32>
    %c8_i32_18 = arith.constant 8 : i32
    %51 = vector.broadcast %c8_i32_18 : i32 to vector<8x512xi32>
    %52 = arith.andi %6, %51 : vector<8x512xi32>
    %c0_i32_19 = arith.constant 0 : i32
    %53 = vector.broadcast %c0_i32_19 : i32 to vector<8x512xi32>
    %54 = arith.cmpi eq, %52, %53 : vector<8x512xi32>
    %55 = arith.select %54, %49, %50 : vector<8x512xi1>, vector<8x512xf32>
    %56 = arith.addf %48, %55 : vector<8x512xf32>
    %cst_20 = arith.constant 6.250000e-02 : f32
    %57 = vector.broadcast %cst_20 : f32 to vector<8x512xf32>
    %58 = arith.mulf %56, %57 : vector<8x512xf32>
    %c1_i32_21 = arith.constant 1 : i32
    %59 = tpu.dynamic_rotate %24 by %c1_i32_21 dim 1 : vector<8x512xf32>, i32 -> vector<8x512xf32>
    %cst_22 = arith.constant 0.000000e+00 : f32
    %60 = vector.broadcast %cst_22 : f32 to vector<8x512xf32>
    %61 = arith.select %11, %59, %60 : vector<8x512xi1>, vector<8x512xf32>
    %c511_i32_23 = arith.constant 511 : i32
    %62 = tpu.dynamic_rotate %24 by %c511_i32_23 dim 1 : vector<8x512xf32>, i32 -> vector<8x512xf32>
    %cst_24 = arith.constant 0.000000e+00 : f32
    %63 = vector.broadcast %cst_24 : f32 to vector<8x512xf32>
    %64 = arith.select %16, %62, %63 : vector<8x512xi1>, vector<8x512xf32>
    %65 = tpu.concatenate %61, %24, %64 in 0 : vector<8x512xf32>, vector<8x512xf32>, vector<8x512xf32> -> vector<24x512xf32>
    %c0_25 = arith.constant 0 : index
    %c0_26 = arith.constant 0 : index
    %66 = vector.load %arg6[%c0_25, %c0_26] : memref<8x24xf32, #tpu.memory_space<vmem>>, vector<8x24xf32>
    %cst_27 = arith.constant dense<0.000000e+00> : vector<8x512xf32>
    %67 = tpu.matmul %66, %65, %cst_27 {dimension_numbers = #tpu.dot_dimension_numbers<[1], [0], [0], [1], [0, 0, 1, 1], [], []>} : vector<8x24xf32>, vector<24x512xf32>, vector<8x512xf32> -> vector<8x512xf32>
    %c0_28 = arith.constant 0 : index
    %c0_29 = arith.constant 0 : index
    %68 = vector.load %arg7[%c0_28, %c0_29] : memref<8x1xf32, #tpu.memory_space<vmem>>, vector<8x1xf32>
    %69 = vector.broadcast %68 : vector<8x1xf32> to vector<8x512xf32>
    %70 = arith.addf %67, %69 : vector<8x512xf32>
    %cst_30 = arith.constant 0.000000e+00 : f32
    %71 = vector.broadcast %cst_30 : f32 to vector<8x512xf32>
    %72 = arith.subf %71, %70 : vector<8x512xf32>
    %73 = math.exp %72 : vector<8x512xf32>
    %cst_31 = arith.constant 1.000000e+00 : f32
    %74 = vector.broadcast %cst_31 : f32 to vector<8x512xf32>
    %75 = arith.addf %74, %73 : vector<8x512xf32>
    %cst_32 = arith.constant 1.000000e+00 : f32
    %76 = vector.broadcast %cst_32 : f32 to vector<8x512xf32>
    %77 = arith.divf %76, %75 : vector<8x512xf32>
    %c16_i32 = arith.constant 16 : i32
    %78 = tpu.dynamic_rotate %1 by %c16_i32 dim 1 : vector<8x512xf32>, i32 -> vector<8x512xf32>
    %c1_i32_33 = arith.constant 1 : i32
    %79 = vector.broadcast %c1_i32_33 : i32 to vector<8x512xi32>
    %80 = arith.cmpi sge, %8, %79 : vector<8x512xi32>
    %cst_34 = arith.constant 0.000000e+00 : f32
    %81 = vector.broadcast %cst_34 : f32 to vector<8x512xf32>
    %82 = arith.select %80, %78, %81 : vector<8x512xi1>, vector<8x512xf32>
    %c496_i32 = arith.constant 496 : i32
    %83 = tpu.dynamic_rotate %1 by %c496_i32 dim 1 : vector<8x512xf32>, i32 -> vector<8x512xf32>
    %c15_i32_35 = arith.constant 15 : i32
    %84 = vector.broadcast %c15_i32_35 : i32 to vector<8x512xi32>
    %85 = arith.cmpi slt, %8, %84 : vector<8x512xi32>
    %cst_36 = arith.constant 0.000000e+00 : f32
    %86 = vector.broadcast %cst_36 : f32 to vector<8x512xf32>
    %87 = arith.select %85, %83, %86 : vector<8x512xi1>, vector<8x512xf32>
    %88 = tpu.concatenate %82, %1, %87 in 0 : vector<8x512xf32>, vector<8x512xf32>, vector<8x512xf32> -> vector<24x512xf32>
    %c0_37 = arith.constant 0 : index
    %c0_38 = arith.constant 0 : index
    %89 = vector.load %arg4[%c0_37, %c0_38] : memref<8x24xf32, #tpu.memory_space<vmem>>, vector<8x24xf32>
    %cst_39 = arith.constant dense<0.000000e+00> : vector<8x512xf32>
    %90 = tpu.matmul %89, %88, %cst_39 {dimension_numbers = #tpu.dot_dimension_numbers<[1], [0], [0], [1], [0, 0, 1, 1], [], []>} : vector<8x24xf32>, vector<24x512xf32>, vector<8x512xf32> -> vector<8x512xf32>
    %c0_40 = arith.constant 0 : index
    %c0_41 = arith.constant 0 : index
    %91 = vector.load %arg5[%c0_40, %c0_41] : memref<8x1xf32, #tpu.memory_space<vmem>>, vector<8x1xf32>
    %92 = vector.broadcast %91 : vector<8x1xf32> to vector<8x512xf32>
    %93 = arith.addf %90, %92 : vector<8x512xf32>
    %c496_i32_42 = arith.constant 496 : i32
    %94 = tpu.dynamic_rotate %93 by %c496_i32_42 dim 1 : vector<8x512xf32>, i32 -> vector<8x512xf32>
    %c16_i32_43 = arith.constant 16 : i32
    %95 = tpu.dynamic_rotate %93 by %c16_i32_43 dim 1 : vector<8x512xf32>, i32 -> vector<8x512xf32>
    %c1_i32_44 = arith.constant 1 : i32
    %96 = vector.broadcast %c1_i32_44 : i32 to vector<8x512xi32>
    %97 = arith.andi %8, %96 : vector<8x512xi32>
    %c0_i32_45 = arith.constant 0 : i32
    %98 = vector.broadcast %c0_i32_45 : i32 to vector<8x512xi32>
    %99 = arith.cmpi eq, %97, %98 : vector<8x512xi32>
    %100 = arith.select %99, %94, %95 : vector<8x512xi1>, vector<8x512xf32>
    %101 = arith.addf %93, %100 : vector<8x512xf32>
    %c480_i32 = arith.constant 480 : i32
    %102 = tpu.dynamic_rotate %101 by %c480_i32 dim 1 : vector<8x512xf32>, i32 -> vector<8x512xf32>
    %c32_i32 = arith.constant 32 : i32
    %103 = tpu.dynamic_rotate %101 by %c32_i32 dim 1 : vector<8x512xf32>, i32 -> vector<8x512xf32>
    %c2_i32_46 = arith.constant 2 : i32
    %104 = vector.broadcast %c2_i32_46 : i32 to vector<8x512xi32>
    %105 = arith.andi %8, %104 : vector<8x512xi32>
    %c0_i32_47 = arith.constant 0 : i32
    %106 = vector.broadcast %c0_i32_47 : i32 to vector<8x512xi32>
    %107 = arith.cmpi eq, %105, %106 : vector<8x512xi32>
    %108 = arith.select %107, %102, %103 : vector<8x512xi1>, vector<8x512xf32>
    %109 = arith.addf %101, %108 : vector<8x512xf32>
    %c448_i32 = arith.constant 448 : i32
    %110 = tpu.dynamic_rotate %109 by %c448_i32 dim 1 : vector<8x512xf32>, i32 -> vector<8x512xf32>
    %c64_i32 = arith.constant 64 : i32
    %111 = tpu.dynamic_rotate %109 by %c64_i32 dim 1 : vector<8x512xf32>, i32 -> vector<8x512xf32>
    %c4_i32_48 = arith.constant 4 : i32
    %112 = vector.broadcast %c4_i32_48 : i32 to vector<8x512xi32>
    %113 = arith.andi %8, %112 : vector<8x512xi32>
    %c0_i32_49 = arith.constant 0 : i32
    %114 = vector.broadcast %c0_i32_49 : i32 to vector<8x512xi32>
    %115 = arith.cmpi eq, %113, %114 : vector<8x512xi32>
    %116 = arith.select %115, %110, %111 : vector<8x512xi1>, vector<8x512xf32>
    %117 = arith.addf %109, %116 : vector<8x512xf32>
    %c384_i32 = arith.constant 384 : i32
    %118 = tpu.dynamic_rotate %117 by %c384_i32 dim 1 : vector<8x512xf32>, i32 -> vector<8x512xf32>
    %c128_i32 = arith.constant 128 : i32
    %119 = tpu.dynamic_rotate %117 by %c128_i32 dim 1 : vector<8x512xf32>, i32 -> vector<8x512xf32>
    %c8_i32_50 = arith.constant 8 : i32
    %120 = vector.broadcast %c8_i32_50 : i32 to vector<8x512xi32>
    %121 = arith.andi %8, %120 : vector<8x512xi32>
    %c0_i32_51 = arith.constant 0 : i32
    %122 = vector.broadcast %c0_i32_51 : i32 to vector<8x512xi32>
    %123 = arith.cmpi eq, %121, %122 : vector<8x512xi32>
    %124 = arith.select %123, %118, %119 : vector<8x512xi1>, vector<8x512xf32>
    %125 = arith.addf %117, %124 : vector<8x512xf32>
    %cst_52 = arith.constant 6.250000e-02 : f32
    %126 = vector.broadcast %cst_52 : f32 to vector<8x512xf32>
    %127 = arith.mulf %125, %126 : vector<8x512xf32>
    %128 = arith.addf %58, %127 : vector<8x512xf32>
    %c16_i32_53 = arith.constant 16 : i32
    %129 = tpu.dynamic_rotate %93 by %c16_i32_53 dim 1 : vector<8x512xf32>, i32 -> vector<8x512xf32>
    %cst_54 = arith.constant 0.000000e+00 : f32
    %130 = vector.broadcast %cst_54 : f32 to vector<8x512xf32>
    %131 = arith.select %80, %129, %130 : vector<8x512xi1>, vector<8x512xf32>
    %c496_i32_55 = arith.constant 496 : i32
    %132 = tpu.dynamic_rotate %93 by %c496_i32_55 dim 1 : vector<8x512xf32>, i32 -> vector<8x512xf32>
    %cst_56 = arith.constant 0.000000e+00 : f32
    %133 = vector.broadcast %cst_56 : f32 to vector<8x512xf32>
    %134 = arith.select %85, %132, %133 : vector<8x512xi1>, vector<8x512xf32>
    %135 = tpu.concatenate %131, %93, %134 in 0 : vector<8x512xf32>, vector<8x512xf32>, vector<8x512xf32> -> vector<24x512xf32>
    %c0_57 = arith.constant 0 : index
    %c0_58 = arith.constant 0 : index
    %136 = vector.load %arg8[%c0_57, %c0_58] : memref<8x24xf32, #tpu.memory_space<vmem>>, vector<8x24xf32>
    %cst_59 = arith.constant dense<0.000000e+00> : vector<8x512xf32>
    %137 = tpu.matmul %136, %135, %cst_59 {dimension_numbers = #tpu.dot_dimension_numbers<[1], [0], [0], [1], [0, 0, 1, 1], [], []>} : vector<8x24xf32>, vector<24x512xf32>, vector<8x512xf32> -> vector<8x512xf32>
    %c0_60 = arith.constant 0 : index
    %c0_61 = arith.constant 0 : index
    %138 = vector.load %arg9[%c0_60, %c0_61] : memref<8x1xf32, #tpu.memory_space<vmem>>, vector<8x1xf32>
    %139 = vector.broadcast %138 : vector<8x1xf32> to vector<8x512xf32>
    %140 = arith.addf %137, %139 : vector<8x512xf32>
    %cst_62 = arith.constant 0.000000e+00 : f32
    %141 = vector.broadcast %cst_62 : f32 to vector<8x512xf32>
    %142 = arith.subf %141, %140 : vector<8x512xf32>
    %143 = math.exp %142 : vector<8x512xf32>
    %cst_63 = arith.constant 1.000000e+00 : f32
    %144 = vector.broadcast %cst_63 : f32 to vector<8x512xf32>
    %145 = arith.addf %144, %143 : vector<8x512xf32>
    %cst_64 = arith.constant 1.000000e+00 : f32
    %146 = vector.broadcast %cst_64 : f32 to vector<8x512xf32>
    %147 = arith.divf %146, %145 : vector<8x512xf32>
    %148 = arith.addf %77, %147 : vector<8x512xf32>
    %c0_65 = arith.constant 0 : index
    %c0_66 = arith.constant 0 : index
    %149 = vector.load %arg10[%c0_65, %c0_66] : memref<8x9xf32, #tpu.memory_space<vmem>>, vector<8x9xf32>
    %cst_67 = arith.constant 0.000000e+00 : f32
    %150 = vector.broadcast %cst_67 : f32 to vector<8x512xf32>
    %151 = vector.extract_strided_slice %149 {offsets = [0, 0], sizes = [8, 1], strides = [1, 1]} : vector<8x9xf32> to vector<8x1xf32>
    %c17_i32 = arith.constant 17 : i32
    %152 = tpu.dynamic_rotate %128 by %c17_i32 dim 1 : vector<8x512xf32>, i32 -> vector<8x512xf32>
    %c1_i32_68 = arith.constant 1 : i32
    %153 = vector.broadcast %c1_i32_68 : i32 to vector<8x512xi32>
    %154 = arith.cmpi sge, %6, %153 : vector<8x512xi32>
    %c1_i32_69 = arith.constant 1 : i32
    %155 = vector.broadcast %c1_i32_69 : i32 to vector<8x512xi32>
    %156 = arith.cmpi sge, %8, %155 : vector<8x512xi32>
    %157 = arith.andi %154, %156 : vector<8x512xi1>
    %cst_70 = arith.constant 0.000000e+00 : f32
    %158 = vector.broadcast %cst_70 : f32 to vector<8x512xf32>
    %159 = arith.select %157, %152, %158 : vector<8x512xi1>, vector<8x512xf32>
    %160 = vector.broadcast %151 : vector<8x1xf32> to vector<8x512xf32>
    %161 = arith.mulf %160, %159 : vector<8x512xf32>
    %162 = arith.addf %150, %161 : vector<8x512xf32>
    %163 = vector.extract_strided_slice %149 {offsets = [0, 1], sizes = [8, 1], strides = [1, 1]} : vector<8x9xf32> to vector<8x1xf32>
    %c16_i32_71 = arith.constant 16 : i32
    %164 = tpu.dynamic_rotate %128 by %c16_i32_71 dim 1 : vector<8x512xf32>, i32 -> vector<8x512xf32>
    %cst_72 = arith.constant 0.000000e+00 : f32
    %165 = vector.broadcast %cst_72 : f32 to vector<8x512xf32>
    %166 = arith.select %80, %164, %165 : vector<8x512xi1>, vector<8x512xf32>
    %167 = vector.broadcast %163 : vector<8x1xf32> to vector<8x512xf32>
    %168 = arith.mulf %167, %166 : vector<8x512xf32>
    %169 = arith.addf %162, %168 : vector<8x512xf32>
    %170 = vector.extract_strided_slice %149 {offsets = [0, 2], sizes = [8, 1], strides = [1, 1]} : vector<8x9xf32> to vector<8x1xf32>
    %c15_i32_73 = arith.constant 15 : i32
    %171 = tpu.dynamic_rotate %128 by %c15_i32_73 dim 1 : vector<8x512xf32>, i32 -> vector<8x512xf32>
    %c15_i32_74 = arith.constant 15 : i32
    %172 = vector.broadcast %c15_i32_74 : i32 to vector<8x512xi32>
    %173 = arith.cmpi slt, %6, %172 : vector<8x512xi32>
    %c1_i32_75 = arith.constant 1 : i32
    %174 = vector.broadcast %c1_i32_75 : i32 to vector<8x512xi32>
    %175 = arith.cmpi sge, %8, %174 : vector<8x512xi32>
    %176 = arith.andi %173, %175 : vector<8x512xi1>
    %cst_76 = arith.constant 0.000000e+00 : f32
    %177 = vector.broadcast %cst_76 : f32 to vector<8x512xf32>
    %178 = arith.select %176, %171, %177 : vector<8x512xi1>, vector<8x512xf32>
    %179 = vector.broadcast %170 : vector<8x1xf32> to vector<8x512xf32>
    %180 = arith.mulf %179, %178 : vector<8x512xf32>
    %181 = arith.addf %169, %180 : vector<8x512xf32>
    %182 = vector.extract_strided_slice %149 {offsets = [0, 3], sizes = [8, 1], strides = [1, 1]} : vector<8x9xf32> to vector<8x1xf32>
    %c1_i32_77 = arith.constant 1 : i32
    %183 = tpu.dynamic_rotate %128 by %c1_i32_77 dim 1 : vector<8x512xf32>, i32 -> vector<8x512xf32>
    %cst_78 = arith.constant 0.000000e+00 : f32
    %184 = vector.broadcast %cst_78 : f32 to vector<8x512xf32>
    %185 = arith.select %11, %183, %184 : vector<8x512xi1>, vector<8x512xf32>
    %186 = vector.broadcast %182 : vector<8x1xf32> to vector<8x512xf32>
    %187 = arith.mulf %186, %185 : vector<8x512xf32>
    %188 = arith.addf %181, %187 : vector<8x512xf32>
    %189 = vector.extract_strided_slice %149 {offsets = [0, 4], sizes = [8, 1], strides = [1, 1]} : vector<8x9xf32> to vector<8x1xf32>
    %190 = vector.broadcast %189 : vector<8x1xf32> to vector<8x512xf32>
    %191 = arith.mulf %190, %128 : vector<8x512xf32>
    %192 = arith.addf %188, %191 : vector<8x512xf32>
    %193 = vector.extract_strided_slice %149 {offsets = [0, 5], sizes = [8, 1], strides = [1, 1]} : vector<8x9xf32> to vector<8x1xf32>
    %c511_i32_79 = arith.constant 511 : i32
    %194 = tpu.dynamic_rotate %128 by %c511_i32_79 dim 1 : vector<8x512xf32>, i32 -> vector<8x512xf32>
    %cst_80 = arith.constant 0.000000e+00 : f32
    %195 = vector.broadcast %cst_80 : f32 to vector<8x512xf32>
    %196 = arith.select %16, %194, %195 : vector<8x512xi1>, vector<8x512xf32>
    %197 = vector.broadcast %193 : vector<8x1xf32> to vector<8x512xf32>
    %198 = arith.mulf %197, %196 : vector<8x512xf32>
    %199 = arith.addf %192, %198 : vector<8x512xf32>
    %200 = vector.extract_strided_slice %149 {offsets = [0, 6], sizes = [8, 1], strides = [1, 1]} : vector<8x9xf32> to vector<8x1xf32>
    %c497_i32 = arith.constant 497 : i32
    %201 = tpu.dynamic_rotate %128 by %c497_i32 dim 1 : vector<8x512xf32>, i32 -> vector<8x512xf32>
    %c1_i32_81 = arith.constant 1 : i32
    %202 = vector.broadcast %c1_i32_81 : i32 to vector<8x512xi32>
    %203 = arith.cmpi sge, %6, %202 : vector<8x512xi32>
    %c15_i32_82 = arith.constant 15 : i32
    %204 = vector.broadcast %c15_i32_82 : i32 to vector<8x512xi32>
    %205 = arith.cmpi slt, %8, %204 : vector<8x512xi32>
    %206 = arith.andi %203, %205 : vector<8x512xi1>
    %cst_83 = arith.constant 0.000000e+00 : f32
    %207 = vector.broadcast %cst_83 : f32 to vector<8x512xf32>
    %208 = arith.select %206, %201, %207 : vector<8x512xi1>, vector<8x512xf32>
    %209 = vector.broadcast %200 : vector<8x1xf32> to vector<8x512xf32>
    %210 = arith.mulf %209, %208 : vector<8x512xf32>
    %211 = arith.addf %199, %210 : vector<8x512xf32>
    %212 = vector.extract_strided_slice %149 {offsets = [0, 7], sizes = [8, 1], strides = [1, 1]} : vector<8x9xf32> to vector<8x1xf32>
    %c496_i32_84 = arith.constant 496 : i32
    %213 = tpu.dynamic_rotate %128 by %c496_i32_84 dim 1 : vector<8x512xf32>, i32 -> vector<8x512xf32>
    %cst_85 = arith.constant 0.000000e+00 : f32
    %214 = vector.broadcast %cst_85 : f32 to vector<8x512xf32>
    %215 = arith.select %85, %213, %214 : vector<8x512xi1>, vector<8x512xf32>
    %216 = vector.broadcast %212 : vector<8x1xf32> to vector<8x512xf32>
    %217 = arith.mulf %216, %215 : vector<8x512xf32>
    %218 = arith.addf %211, %217 : vector<8x512xf32>
    %219 = vector.extract_strided_slice %149 {offsets = [0, 8], sizes = [8, 1], strides = [1, 1]} : vector<8x9xf32> to vector<8x1xf32>
    %c495_i32 = arith.constant 495 : i32
    %220 = tpu.dynamic_rotate %128 by %c495_i32 dim 1 : vector<8x512xf32>, i32 -> vector<8x512xf32>
    %c15_i32_86 = arith.constant 15 : i32
    %221 = vector.broadcast %c15_i32_86 : i32 to vector<8x512xi32>
    %222 = arith.cmpi slt, %6, %221 : vector<8x512xi32>
    %c15_i32_87 = arith.constant 15 : i32
    %223 = vector.broadcast %c15_i32_87 : i32 to vector<8x512xi32>
    %224 = arith.cmpi slt, %8, %223 : vector<8x512xi32>
    %225 = arith.andi %222, %224 : vector<8x512xi1>
    %cst_88 = arith.constant 0.000000e+00 : f32
    %226 = vector.broadcast %cst_88 : f32 to vector<8x512xf32>
    %227 = arith.select %225, %220, %226 : vector<8x512xi1>, vector<8x512xf32>
    %228 = vector.broadcast %219 : vector<8x1xf32> to vector<8x512xf32>
    %229 = arith.mulf %228, %227 : vector<8x512xf32>
    %230 = arith.addf %218, %229 : vector<8x512xf32>
    %c0_89 = arith.constant 0 : index
    %c0_90 = arith.constant 0 : index
    %231 = vector.load %arg11[%c0_89, %c0_90] : memref<8x1xf32, #tpu.memory_space<vmem>>, vector<8x1xf32>
    %232 = vector.broadcast %231 : vector<8x1xf32> to vector<8x512xf32>
    %233 = arith.addf %230, %232 : vector<8x512xf32>
    %234 = arith.mulf %148, %233 : vector<8x512xf32>
    %c0_91 = arith.constant 0 : index
    %c0_92 = arith.constant 0 : index
    %235 = vector.load %arg12[%c0_91, %c0_92] : memref<8x11xf32, #tpu.memory_space<vmem>>, vector<8x11xf32>
    %cst_93 = arith.constant 0.000000e+00 : f32
    %236 = vector.broadcast %cst_93 : f32 to vector<8x512xf32>
    %237 = vector.extract_strided_slice %235 {offsets = [0, 0], sizes = [8, 1], strides = [1, 1]} : vector<8x11xf32> to vector<8x1xf32>
    %c5_i32 = arith.constant 5 : i32
    %238 = tpu.dynamic_rotate %234 by %c5_i32 dim 1 : vector<8x512xf32>, i32 -> vector<8x512xf32>
    %c5_i32_94 = arith.constant 5 : i32
    %239 = vector.broadcast %c5_i32_94 : i32 to vector<8x512xi32>
    %240 = arith.cmpi sge, %6, %239 : vector<8x512xi32>
    %cst_95 = arith.constant 0.000000e+00 : f32
    %241 = vector.broadcast %cst_95 : f32 to vector<8x512xf32>
    %242 = arith.select %240, %238, %241 : vector<8x512xi1>, vector<8x512xf32>
    %243 = vector.broadcast %237 : vector<8x1xf32> to vector<8x512xf32>
    %244 = arith.mulf %243, %242 : vector<8x512xf32>
    %245 = arith.addf %236, %244 : vector<8x512xf32>
    %246 = vector.extract_strided_slice %235 {offsets = [0, 1], sizes = [8, 1], strides = [1, 1]} : vector<8x11xf32> to vector<8x1xf32>
    %c4_i32_96 = arith.constant 4 : i32
    %247 = tpu.dynamic_rotate %234 by %c4_i32_96 dim 1 : vector<8x512xf32>, i32 -> vector<8x512xf32>
    %c4_i32_97 = arith.constant 4 : i32
    %248 = vector.broadcast %c4_i32_97 : i32 to vector<8x512xi32>
    %249 = arith.cmpi sge, %6, %248 : vector<8x512xi32>
    %cst_98 = arith.constant 0.000000e+00 : f32
    %250 = vector.broadcast %cst_98 : f32 to vector<8x512xf32>
    %251 = arith.select %249, %247, %250 : vector<8x512xi1>, vector<8x512xf32>
    %252 = vector.broadcast %246 : vector<8x1xf32> to vector<8x512xf32>
    %253 = arith.mulf %252, %251 : vector<8x512xf32>
    %254 = arith.addf %245, %253 : vector<8x512xf32>
    %255 = vector.extract_strided_slice %235 {offsets = [0, 2], sizes = [8, 1], strides = [1, 1]} : vector<8x11xf32> to vector<8x1xf32>
    %c3_i32 = arith.constant 3 : i32
    %256 = tpu.dynamic_rotate %234 by %c3_i32 dim 1 : vector<8x512xf32>, i32 -> vector<8x512xf32>
    %c3_i32_99 = arith.constant 3 : i32
    %257 = vector.broadcast %c3_i32_99 : i32 to vector<8x512xi32>
    %258 = arith.cmpi sge, %6, %257 : vector<8x512xi32>
    %cst_100 = arith.constant 0.000000e+00 : f32
    %259 = vector.broadcast %cst_100 : f32 to vector<8x512xf32>
    %260 = arith.select %258, %256, %259 : vector<8x512xi1>, vector<8x512xf32>
    %261 = vector.broadcast %255 : vector<8x1xf32> to vector<8x512xf32>
    %262 = arith.mulf %261, %260 : vector<8x512xf32>
    %263 = arith.addf %254, %262 : vector<8x512xf32>
    %264 = vector.extract_strided_slice %235 {offsets = [0, 3], sizes = [8, 1], strides = [1, 1]} : vector<8x11xf32> to vector<8x1xf32>
    %c2_i32_101 = arith.constant 2 : i32
    %265 = tpu.dynamic_rotate %234 by %c2_i32_101 dim 1 : vector<8x512xf32>, i32 -> vector<8x512xf32>
    %c2_i32_102 = arith.constant 2 : i32
    %266 = vector.broadcast %c2_i32_102 : i32 to vector<8x512xi32>
    %267 = arith.cmpi sge, %6, %266 : vector<8x512xi32>
    %cst_103 = arith.constant 0.000000e+00 : f32
    %268 = vector.broadcast %cst_103 : f32 to vector<8x512xf32>
    %269 = arith.select %267, %265, %268 : vector<8x512xi1>, vector<8x512xf32>
    %270 = vector.broadcast %264 : vector<8x1xf32> to vector<8x512xf32>
    %271 = arith.mulf %270, %269 : vector<8x512xf32>
    %272 = arith.addf %263, %271 : vector<8x512xf32>
    %273 = vector.extract_strided_slice %235 {offsets = [0, 4], sizes = [8, 1], strides = [1, 1]} : vector<8x11xf32> to vector<8x1xf32>
    %c1_i32_104 = arith.constant 1 : i32
    %274 = tpu.dynamic_rotate %234 by %c1_i32_104 dim 1 : vector<8x512xf32>, i32 -> vector<8x512xf32>
    %cst_105 = arith.constant 0.000000e+00 : f32
    %275 = vector.broadcast %cst_105 : f32 to vector<8x512xf32>
    %276 = arith.select %11, %274, %275 : vector<8x512xi1>, vector<8x512xf32>
    %277 = vector.broadcast %273 : vector<8x1xf32> to vector<8x512xf32>
    %278 = arith.mulf %277, %276 : vector<8x512xf32>
    %279 = arith.addf %272, %278 : vector<8x512xf32>
    %280 = vector.extract_strided_slice %235 {offsets = [0, 5], sizes = [8, 1], strides = [1, 1]} : vector<8x11xf32> to vector<8x1xf32>
    %281 = vector.broadcast %280 : vector<8x1xf32> to vector<8x512xf32>
    %282 = arith.mulf %281, %234 : vector<8x512xf32>
    %283 = arith.addf %279, %282 : vector<8x512xf32>
    %284 = vector.extract_strided_slice %235 {offsets = [0, 6], sizes = [8, 1], strides = [1, 1]} : vector<8x11xf32> to vector<8x1xf32>
    %c511_i32_106 = arith.constant 511 : i32
    %285 = tpu.dynamic_rotate %234 by %c511_i32_106 dim 1 : vector<8x512xf32>, i32 -> vector<8x512xf32>
    %cst_107 = arith.constant 0.000000e+00 : f32
    %286 = vector.broadcast %cst_107 : f32 to vector<8x512xf32>
    %287 = arith.select %16, %285, %286 : vector<8x512xi1>, vector<8x512xf32>
    %288 = vector.broadcast %284 : vector<8x1xf32> to vector<8x512xf32>
    %289 = arith.mulf %288, %287 : vector<8x512xf32>
    %290 = arith.addf %283, %289 : vector<8x512xf32>
    %291 = vector.extract_strided_slice %235 {offsets = [0, 7], sizes = [8, 1], strides = [1, 1]} : vector<8x11xf32> to vector<8x1xf32>
    %c510_i32_108 = arith.constant 510 : i32
    %292 = tpu.dynamic_rotate %234 by %c510_i32_108 dim 1 : vector<8x512xf32>, i32 -> vector<8x512xf32>
    %c14_i32 = arith.constant 14 : i32
    %293 = vector.broadcast %c14_i32 : i32 to vector<8x512xi32>
    %294 = arith.cmpi slt, %6, %293 : vector<8x512xi32>
    %cst_109 = arith.constant 0.000000e+00 : f32
    %295 = vector.broadcast %cst_109 : f32 to vector<8x512xf32>
    %296 = arith.select %294, %292, %295 : vector<8x512xi1>, vector<8x512xf32>
    %297 = vector.broadcast %291 : vector<8x1xf32> to vector<8x512xf32>
    %298 = arith.mulf %297, %296 : vector<8x512xf32>
    %299 = arith.addf %290, %298 : vector<8x512xf32>
    %300 = vector.extract_strided_slice %235 {offsets = [0, 8], sizes = [8, 1], strides = [1, 1]} : vector<8x11xf32> to vector<8x1xf32>
    %c509_i32 = arith.constant 509 : i32
    %301 = tpu.dynamic_rotate %234 by %c509_i32 dim 1 : vector<8x512xf32>, i32 -> vector<8x512xf32>
    %c13_i32 = arith.constant 13 : i32
    %302 = vector.broadcast %c13_i32 : i32 to vector<8x512xi32>
    %303 = arith.cmpi slt, %6, %302 : vector<8x512xi32>
    %cst_110 = arith.constant 0.000000e+00 : f32
    %304 = vector.broadcast %cst_110 : f32 to vector<8x512xf32>
    %305 = arith.select %303, %301, %304 : vector<8x512xi1>, vector<8x512xf32>
    %306 = vector.broadcast %300 : vector<8x1xf32> to vector<8x512xf32>
    %307 = arith.mulf %306, %305 : vector<8x512xf32>
    %308 = arith.addf %299, %307 : vector<8x512xf32>
    %309 = vector.extract_strided_slice %235 {offsets = [0, 9], sizes = [8, 1], strides = [1, 1]} : vector<8x11xf32> to vector<8x1xf32>
    %c508_i32_111 = arith.constant 508 : i32
    %310 = tpu.dynamic_rotate %234 by %c508_i32_111 dim 1 : vector<8x512xf32>, i32 -> vector<8x512xf32>
    %c12_i32 = arith.constant 12 : i32
    %311 = vector.broadcast %c12_i32 : i32 to vector<8x512xi32>
    %312 = arith.cmpi slt, %6, %311 : vector<8x512xi32>
    %cst_112 = arith.constant 0.000000e+00 : f32
    %313 = vector.broadcast %cst_112 : f32 to vector<8x512xf32>
    %314 = arith.select %312, %310, %313 : vector<8x512xi1>, vector<8x512xf32>
    %315 = vector.broadcast %309 : vector<8x1xf32> to vector<8x512xf32>
    %316 = arith.mulf %315, %314 : vector<8x512xf32>
    %317 = arith.addf %308, %316 : vector<8x512xf32>
    %318 = vector.extract_strided_slice %235 {offsets = [0, 10], sizes = [8, 1], strides = [1, 1]} : vector<8x11xf32> to vector<8x1xf32>
    %c507_i32 = arith.constant 507 : i32
    %319 = tpu.dynamic_rotate %234 by %c507_i32 dim 1 : vector<8x512xf32>, i32 -> vector<8x512xf32>
    %c11_i32 = arith.constant 11 : i32
    %320 = vector.broadcast %c11_i32 : i32 to vector<8x512xi32>
    %321 = arith.cmpi slt, %6, %320 : vector<8x512xi32>
    %cst_113 = arith.constant 0.000000e+00 : f32
    %322 = vector.broadcast %cst_113 : f32 to vector<8x512xf32>
    %323 = arith.select %321, %319, %322 : vector<8x512xi1>, vector<8x512xf32>
    %324 = vector.broadcast %318 : vector<8x1xf32> to vector<8x512xf32>
    %325 = arith.mulf %324, %323 : vector<8x512xf32>
    %326 = arith.addf %317, %325 : vector<8x512xf32>
    %c0_114 = arith.constant 0 : index
    %c0_115 = arith.constant 0 : index
    %327 = vector.load %arg13[%c0_114, %c0_115] : memref<8x1xf32, #tpu.memory_space<vmem>>, vector<8x1xf32>
    %328 = vector.broadcast %327 : vector<8x1xf32> to vector<8x512xf32>
    %329 = arith.addf %326, %328 : vector<8x512xf32>
    %cst_116 = arith.constant 0.000000e+00 : f32
    %330 = vector.broadcast %cst_116 : f32 to vector<8x512xf32>
    %331 = arith.maximumf %329, %330 : vector<8x512xf32>
    %c0_117 = arith.constant 0 : index
    %c0_118 = arith.constant 0 : index
    %332 = vector.load %arg14[%c0_117, %c0_118] : memref<8x11xf32, #tpu.memory_space<vmem>>, vector<8x11xf32>
    %cst_119 = arith.constant 0.000000e+00 : f32
    %333 = vector.broadcast %cst_119 : f32 to vector<8x512xf32>
    %334 = vector.extract_strided_slice %332 {offsets = [0, 0], sizes = [8, 1], strides = [1, 1]} : vector<8x11xf32> to vector<8x1xf32>
    %c80_i32 = arith.constant 80 : i32
    %335 = tpu.dynamic_rotate %331 by %c80_i32 dim 1 : vector<8x512xf32>, i32 -> vector<8x512xf32>
    %c5_i32_120 = arith.constant 5 : i32
    %336 = vector.broadcast %c5_i32_120 : i32 to vector<8x512xi32>
    %337 = arith.cmpi sge, %8, %336 : vector<8x512xi32>
    %cst_121 = arith.constant 0.000000e+00 : f32
    %338 = vector.broadcast %cst_121 : f32 to vector<8x512xf32>
    %339 = arith.select %337, %335, %338 : vector<8x512xi1>, vector<8x512xf32>
    %340 = vector.broadcast %334 : vector<8x1xf32> to vector<8x512xf32>
    %341 = arith.mulf %340, %339 : vector<8x512xf32>
    %342 = arith.addf %333, %341 : vector<8x512xf32>
    %343 = vector.extract_strided_slice %332 {offsets = [0, 1], sizes = [8, 1], strides = [1, 1]} : vector<8x11xf32> to vector<8x1xf32>
    %c64_i32_122 = arith.constant 64 : i32
    %344 = tpu.dynamic_rotate %331 by %c64_i32_122 dim 1 : vector<8x512xf32>, i32 -> vector<8x512xf32>
    %c4_i32_123 = arith.constant 4 : i32
    %345 = vector.broadcast %c4_i32_123 : i32 to vector<8x512xi32>
    %346 = arith.cmpi sge, %8, %345 : vector<8x512xi32>
    %cst_124 = arith.constant 0.000000e+00 : f32
    %347 = vector.broadcast %cst_124 : f32 to vector<8x512xf32>
    %348 = arith.select %346, %344, %347 : vector<8x512xi1>, vector<8x512xf32>
    %349 = vector.broadcast %343 : vector<8x1xf32> to vector<8x512xf32>
    %350 = arith.mulf %349, %348 : vector<8x512xf32>
    %351 = arith.addf %342, %350 : vector<8x512xf32>
    %352 = vector.extract_strided_slice %332 {offsets = [0, 2], sizes = [8, 1], strides = [1, 1]} : vector<8x11xf32> to vector<8x1xf32>
    %c48_i32 = arith.constant 48 : i32
    %353 = tpu.dynamic_rotate %331 by %c48_i32 dim 1 : vector<8x512xf32>, i32 -> vector<8x512xf32>
    %c3_i32_125 = arith.constant 3 : i32
    %354 = vector.broadcast %c3_i32_125 : i32 to vector<8x512xi32>
    %355 = arith.cmpi sge, %8, %354 : vector<8x512xi32>
    %cst_126 = arith.constant 0.000000e+00 : f32
    %356 = vector.broadcast %cst_126 : f32 to vector<8x512xf32>
    %357 = arith.select %355, %353, %356 : vector<8x512xi1>, vector<8x512xf32>
    %358 = vector.broadcast %352 : vector<8x1xf32> to vector<8x512xf32>
    %359 = arith.mulf %358, %357 : vector<8x512xf32>
    %360 = arith.addf %351, %359 : vector<8x512xf32>
    %361 = vector.extract_strided_slice %332 {offsets = [0, 3], sizes = [8, 1], strides = [1, 1]} : vector<8x11xf32> to vector<8x1xf32>
    %c32_i32_127 = arith.constant 32 : i32
    %362 = tpu.dynamic_rotate %331 by %c32_i32_127 dim 1 : vector<8x512xf32>, i32 -> vector<8x512xf32>
    %c2_i32_128 = arith.constant 2 : i32
    %363 = vector.broadcast %c2_i32_128 : i32 to vector<8x512xi32>
    %364 = arith.cmpi sge, %8, %363 : vector<8x512xi32>
    %cst_129 = arith.constant 0.000000e+00 : f32
    %365 = vector.broadcast %cst_129 : f32 to vector<8x512xf32>
    %366 = arith.select %364, %362, %365 : vector<8x512xi1>, vector<8x512xf32>
    %367 = vector.broadcast %361 : vector<8x1xf32> to vector<8x512xf32>
    %368 = arith.mulf %367, %366 : vector<8x512xf32>
    %369 = arith.addf %360, %368 : vector<8x512xf32>
    %370 = vector.extract_strided_slice %332 {offsets = [0, 4], sizes = [8, 1], strides = [1, 1]} : vector<8x11xf32> to vector<8x1xf32>
    %c16_i32_130 = arith.constant 16 : i32
    %371 = tpu.dynamic_rotate %331 by %c16_i32_130 dim 1 : vector<8x512xf32>, i32 -> vector<8x512xf32>
    %cst_131 = arith.constant 0.000000e+00 : f32
    %372 = vector.broadcast %cst_131 : f32 to vector<8x512xf32>
    %373 = arith.select %80, %371, %372 : vector<8x512xi1>, vector<8x512xf32>
    %374 = vector.broadcast %370 : vector<8x1xf32> to vector<8x512xf32>
    %375 = arith.mulf %374, %373 : vector<8x512xf32>
    %376 = arith.addf %369, %375 : vector<8x512xf32>
    %377 = vector.extract_strided_slice %332 {offsets = [0, 5], sizes = [8, 1], strides = [1, 1]} : vector<8x11xf32> to vector<8x1xf32>
    %378 = vector.broadcast %377 : vector<8x1xf32> to vector<8x512xf32>
    %379 = arith.mulf %378, %331 : vector<8x512xf32>
    %380 = arith.addf %376, %379 : vector<8x512xf32>
    %381 = vector.extract_strided_slice %332 {offsets = [0, 6], sizes = [8, 1], strides = [1, 1]} : vector<8x11xf32> to vector<8x1xf32>
    %c496_i32_132 = arith.constant 496 : i32
    %382 = tpu.dynamic_rotate %331 by %c496_i32_132 dim 1 : vector<8x512xf32>, i32 -> vector<8x512xf32>
    %cst_133 = arith.constant 0.000000e+00 : f32
    %383 = vector.broadcast %cst_133 : f32 to vector<8x512xf32>
    %384 = arith.select %85, %382, %383 : vector<8x512xi1>, vector<8x512xf32>
    %385 = vector.broadcast %381 : vector<8x1xf32> to vector<8x512xf32>
    %386 = arith.mulf %385, %384 : vector<8x512xf32>
    %387 = arith.addf %380, %386 : vector<8x512xf32>
    %388 = vector.extract_strided_slice %332 {offsets = [0, 7], sizes = [8, 1], strides = [1, 1]} : vector<8x11xf32> to vector<8x1xf32>
    %c480_i32_134 = arith.constant 480 : i32
    %389 = tpu.dynamic_rotate %331 by %c480_i32_134 dim 1 : vector<8x512xf32>, i32 -> vector<8x512xf32>
    %c14_i32_135 = arith.constant 14 : i32
    %390 = vector.broadcast %c14_i32_135 : i32 to vector<8x512xi32>
    %391 = arith.cmpi slt, %8, %390 : vector<8x512xi32>
    %cst_136 = arith.constant 0.000000e+00 : f32
    %392 = vector.broadcast %cst_136 : f32 to vector<8x512xf32>
    %393 = arith.select %391, %389, %392 : vector<8x512xi1>, vector<8x512xf32>
    %394 = vector.broadcast %388 : vector<8x1xf32> to vector<8x512xf32>
    %395 = arith.mulf %394, %393 : vector<8x512xf32>
    %396 = arith.addf %387, %395 : vector<8x512xf32>
    %397 = vector.extract_strided_slice %332 {offsets = [0, 8], sizes = [8, 1], strides = [1, 1]} : vector<8x11xf32> to vector<8x1xf32>
    %c464_i32 = arith.constant 464 : i32
    %398 = tpu.dynamic_rotate %331 by %c464_i32 dim 1 : vector<8x512xf32>, i32 -> vector<8x512xf32>
    %c13_i32_137 = arith.constant 13 : i32
    %399 = vector.broadcast %c13_i32_137 : i32 to vector<8x512xi32>
    %400 = arith.cmpi slt, %8, %399 : vector<8x512xi32>
    %cst_138 = arith.constant 0.000000e+00 : f32
    %401 = vector.broadcast %cst_138 : f32 to vector<8x512xf32>
    %402 = arith.select %400, %398, %401 : vector<8x512xi1>, vector<8x512xf32>
    %403 = vector.broadcast %397 : vector<8x1xf32> to vector<8x512xf32>
    %404 = arith.mulf %403, %402 : vector<8x512xf32>
    %405 = arith.addf %396, %404 : vector<8x512xf32>
    %406 = vector.extract_strided_slice %332 {offsets = [0, 9], sizes = [8, 1], strides = [1, 1]} : vector<8x11xf32> to vector<8x1xf32>
    %c448_i32_139 = arith.constant 448 : i32
    %407 = tpu.dynamic_rotate %331 by %c448_i32_139 dim 1 : vector<8x512xf32>, i32 -> vector<8x512xf32>
    %c12_i32_140 = arith.constant 12 : i32
    %408 = vector.broadcast %c12_i32_140 : i32 to vector<8x512xi32>
    %409 = arith.cmpi slt, %8, %408 : vector<8x512xi32>
    %cst_141 = arith.constant 0.000000e+00 : f32
    %410 = vector.broadcast %cst_141 : f32 to vector<8x512xf32>
    %411 = arith.select %409, %407, %410 : vector<8x512xi1>, vector<8x512xf32>
    %412 = vector.broadcast %406 : vector<8x1xf32> to vector<8x512xf32>
    %413 = arith.mulf %412, %411 : vector<8x512xf32>
    %414 = arith.addf %405, %413 : vector<8x512xf32>
    %415 = vector.extract_strided_slice %332 {offsets = [0, 10], sizes = [8, 1], strides = [1, 1]} : vector<8x11xf32> to vector<8x1xf32>
    %c432_i32 = arith.constant 432 : i32
    %416 = tpu.dynamic_rotate %331 by %c432_i32 dim 1 : vector<8x512xf32>, i32 -> vector<8x512xf32>
    %c11_i32_142 = arith.constant 11 : i32
    %417 = vector.broadcast %c11_i32_142 : i32 to vector<8x512xi32>
    %418 = arith.cmpi slt, %8, %417 : vector<8x512xi32>
    %cst_143 = arith.constant 0.000000e+00 : f32
    %419 = vector.broadcast %cst_143 : f32 to vector<8x512xf32>
    %420 = arith.select %418, %416, %419 : vector<8x512xi1>, vector<8x512xf32>
    %421 = vector.broadcast %415 : vector<8x1xf32> to vector<8x512xf32>
    %422 = arith.mulf %421, %420 : vector<8x512xf32>
    %423 = arith.addf %414, %422 : vector<8x512xf32>
    %c0_144 = arith.constant 0 : index
    %c0_145 = arith.constant 0 : index
    %424 = vector.load %arg15[%c0_144, %c0_145] : memref<8x1xf32, #tpu.memory_space<vmem>>, vector<8x1xf32>
    %425 = vector.broadcast %424 : vector<8x1xf32> to vector<8x512xf32>
    %426 = arith.addf %423, %425 : vector<8x512xf32>
    %cst_146 = arith.constant 2.000000e+00 : f32
    %427 = vector.broadcast %cst_146 : f32 to vector<8x512xf32>
    %428 = arith.mulf %427, %1 : vector<8x512xf32>
    %429 = arith.addf %426, %428 : vector<8x512xf32>
    %c0_147 = arith.constant 0 : index
    %c0_148 = arith.constant 0 : index
    %c0_149 = arith.constant 0 : index
    %430 = vector.load %arg16[%c0_147, %c0_148, %c0_149] : memref<1x8x512xf32, #tpu.memory_space<vmem>>, vector<1x8x512xf32>
    %431 = vector.shape_cast %430 : vector<1x8x512xf32> to vector<8x512xf32>
    %432 = vector.shape_cast %429 : vector<8x512xf32> to vector<1x8x512xf32>
    tpu.vector_store %arg16[%c0_147, %c0_148, %c0_149], %432 {strides = array<i32>} : memref<1x8x512xf32, #tpu.memory_space<vmem>>, vector<1x8x512xf32>,
    return
  }
  func.func @transform_0(%arg0: i32) -> (i32, i32, i32) {
    %c0_i32 = arith.constant 0 : i32
    %c0_i32_0 = arith.constant 0 : i32
    %c0_i32_1 = arith.constant 0 : i32
    return %arg0, %c0_i32, %c0_i32_0 : i32, i32, i32
  }
  func.func @transform_1(%arg0: i32) -> (i32, i32) {
    %c0_i32 = arith.constant 0 : i32
    %c0_i32_0 = arith.constant 0 : i32
    %c0_i32_1 = arith.constant 0 : i32
    return %c0_i32, %c0_i32_0 : i32, i32
  }
  func.func @transform_2(%arg0: i32) -> (i32, i32) {
    %c0_i32 = arith.constant 0 : i32
    %c0_i32_0 = arith.constant 0 : i32
    %c0_i32_1 = arith.constant 0 : i32
    return %c0_i32, %c0_i32_0 : i32, i32
  }
  func.func @transform_3(%arg0: i32) -> (i32, i32) {
    %c0_i32 = arith.constant 0 : i32
    %c0_i32_0 = arith.constant 0 : i32
    %c0_i32_1 = arith.constant 0 : i32
    return %c0_i32, %c0_i32_0 : i32, i32
  }
  func.func @transform_4(%arg0: i32) -> (i32, i32) {
    %c0_i32 = arith.constant 0 : i32
    %c0_i32_0 = arith.constant 0 : i32
    %c0_i32_1 = arith.constant 0 : i32
    return %c0_i32, %c0_i32_0 : i32, i32
  }
  func.func @transform_5(%arg0: i32) -> (i32, i32) {
    %c0_i32 = arith.constant 0 : i32
    %c0_i32_0 = arith.constant 0 : i32
    %c0_i32_1 = arith.constant 0 : i32
    return %c0_i32, %c0_i32_0 : i32, i32
  }
  func.func @transform_6(%arg0: i32) -> (i32, i32) {
    %c0_i32 = arith.constant 0 : i32
    %c0_i32_0 = arith.constant 0 : i32
    %c0_i32_1 = arith.constant 0 : i32
    return %c0_i32, %c0_i32_0 : i32, i32
  }
  func.func @transform_7(%arg0: i32) -> (i32, i32) {
    %c0_i32 = arith.constant 0 : i32
    %c0_i32_0 = arith.constant 0 : i32
    %c0_i32_1 = arith.constant 0 : i32
    return %c0_i32, %c0_i32_0 : i32, i32
  }
  func.func @transform_8(%arg0: i32) -> (i32, i32) {
    %c0_i32 = arith.constant 0 : i32
    %c0_i32_0 = arith.constant 0 : i32
    %c0_i32_1 = arith.constant 0 : i32
    return %c0_i32, %c0_i32_0 : i32, i32
  }
  func.func @transform_9(%arg0: i32) -> (i32, i32) {
    %c0_i32 = arith.constant 0 : i32
    %c0_i32_0 = arith.constant 0 : i32
    %c0_i32_1 = arith.constant 0 : i32
    return %c0_i32, %c0_i32_0 : i32, i32
  }
  func.func @transform_10(%arg0: i32) -> (i32, i32) {
    %c0_i32 = arith.constant 0 : i32
    %c0_i32_0 = arith.constant 0 : i32
    %c0_i32_1 = arith.constant 0 : i32
    return %c0_i32, %c0_i32_0 : i32, i32
  }
  func.func @transform_11(%arg0: i32) -> (i32, i32) {
    %c0_i32 = arith.constant 0 : i32
    %c0_i32_0 = arith.constant 0 : i32
    %c0_i32_1 = arith.constant 0 : i32
    return %c0_i32, %c0_i32_0 : i32, i32
  }
  func.func @transform_12(%arg0: i32) -> (i32, i32) {
    %c0_i32 = arith.constant 0 : i32
    %c0_i32_0 = arith.constant 0 : i32
    %c0_i32_1 = arith.constant 0 : i32
    return %c0_i32, %c0_i32_0 : i32, i32
  }
  func.func @transform_13(%arg0: i32) -> (i32, i32) {
    %c0_i32 = arith.constant 0 : i32
    %c0_i32_0 = arith.constant 0 : i32
    %c0_i32_1 = arith.constant 0 : i32
    return %c0_i32, %c0_i32_0 : i32, i32
  }
  func.func @transform_14(%arg0: i32) -> (i32, i32) {
    %c0_i32 = arith.constant 0 : i32
    %c0_i32_0 = arith.constant 0 : i32
    %c0_i32_1 = arith.constant 0 : i32
    return %c0_i32, %c0_i32_0 : i32, i32
  }
  func.func @transform_15(%arg0: i32) -> (i32, i32, i32) {
    %c0_i32 = arith.constant 0 : i32
    %c0_i32_0 = arith.constant 0 : i32
    %c0_i32_1 = arith.constant 0 : i32
    return %arg0, %c0_i32, %c0_i32_0 : i32, i32, i32
  }
}

</mosaic_0001>

<llo_original>
// kernel: tpu_custom_call.1
$region0: #{tpu_custom_call.1}
  #allocation0 [shape = 'u32[]', space=smem, size = 0x4, offset = 0x4, fixed_abs, tag = 'smem constant byte address 0x4 - core index']
  #allocation1 [shape = 'u32[144,128]{1,0:T(1,128)}', space=vmem, size = 0x12000, scoped, tag = 'internal scratch']
  %s0 = inlined_call_operand.hbm [shape: f32[2,8,512], index: 0, kind: input, shape index: {}]
  %s1 = inlined_call_operand.vmem [shape: f32[8,24], index: 1, kind: input, shape index: {}]
  %s2 = inlined_call_operand.vmem [shape: f32[8,1], index: 2, kind: input, shape index: {}]
  %s3 = inlined_call_operand.vmem [shape: f32[8,24], index: 3, kind: input, shape index: {}]
  %s4 = inlined_call_operand.vmem [shape: f32[8,1], index: 4, kind: input, shape index: {}]
  %s5 = inlined_call_operand.vmem [shape: f32[8,24], index: 5, kind: input, shape index: {}]
  %s6 = inlined_call_operand.vmem [shape: f32[8,1], index: 6, kind: input, shape index: {}]
  %s7 = inlined_call_operand.vmem [shape: f32[8,24], index: 7, kind: input, shape index: {}]
  %s8 = inlined_call_operand.vmem [shape: f32[8,1], index: 8, kind: input, shape index: {}]
  %s9 = inlined_call_operand.vmem [shape: f32[8,9], index: 9, kind: input, shape index: {}]
  %s10 = inlined_call_operand.vmem [shape: f32[8,1], index: 10, kind: input, shape index: {}]
  %s11 = inlined_call_operand.vmem [shape: f32[8,11], index: 11, kind: input, shape index: {}]
  %s12 = inlined_call_operand.vmem [shape: f32[8,1], index: 12, kind: input, shape index: {}]
  %s13 = inlined_call_operand.vmem [shape: f32[8,11], index: 13, kind: input, shape index: {}]
  %s14 = inlined_call_operand.vmem [shape: f32[8,1], index: 14, kind: input, shape index: {}]
  %s15 = inlined_call_operand.hbm [shape: f32[2,8,512], index: 15, kind: output, shape index: {}]
  %s16 = sld [smem:[#allocation0]]
  $region97: #{tpu_custom_call.1} parent=0
    _
  %s18 = ssub.s32 1, %s16
  %s19 = scalar_select 0, %s18, %s16
  $region1: #{tpu_custom_call.1} parent=0
    #allocation2 [shape = 'u8[32768]{0}', space=vmem, size = 0x8000, scoped, tag = 'input window, operand 0']
    #allocation3 [shape = 's32[2]{0}', space=sflag, size = 0x8, scoped, tag = 'scoped memory for tpu_custom_call.1']
    #allocation4 [shape = 's32[2]{0}', space=sflag, size = 0x8, scoped, tag = 'scoped memory for tpu_custom_call.1']
    #allocation5 [shape = 'u8[32768]{0}', space=vmem, size = 0x8000, scoped, tag = 'output window, operand 0']
    %20 = vsyncpa [#allocation3], 0
    %s21 = scalar_lea.sflag [#allocation3], 1
    %22 = vsyncpa %s21, 0
    %23 = vsyncpa [#allocation4], 0
    %s24 = scalar_lea.sflag [#allocation4], 1
    %25 = vsyncpa %s24, 0
    loop: start=0, step=1, limit=4
    $region2: #{tpu_custom_call.1} parent=1 // loop_pre_header
      _
    $region3: #{tpu_custom_call.1} parent=1 // loop_header
      %s27 = sphi 0, %s31
      %p28 = scmp.ge.s32.totalorder %s27, 4
      %s37 = sphi 0, %s39
      %s40 = sphi 0, %s37
      %s41 = sphi 0, %s40
      %s57 = sphi 0, %s41
      %s61 = sphi 0, %s61
      %s63 = sphi 0, %s61
      %s64 = sphi 0, %s63
      %s78 = sphi 0, %s64
      %s82 = sphi 0, %s82
      %s84 = sphi 0, %s82
      %s85 = sphi 0, %s84
      %s99 = sphi 0, %s85
      %s103 = sphi 0, %s103
      %s105 = sphi 0, %s103
      %s106 = sphi 0, %s105
      %s120 = sphi 0, %s106
      %s124 = sphi 0, %s124
      %s126 = sphi 0, %s124
      %s127 = sphi 0, %s126
      %s141 = sphi 0, %s127
      %s145 = sphi 0, %s145
      %s147 = sphi 0, %s145
      %s148 = sphi 0, %s147
      %s162 = sphi 0, %s148
      %s166 = sphi 0, %s166
      %s168 = sphi 0, %s166
      %s169 = sphi 0, %s168
      %s183 = sphi 0, %s169
      %s187 = sphi 0, %s187
      %s189 = sphi 0, %s187
      %s190 = sphi 0, %s189
      %s204 = sphi 0, %s190
      %s208 = sphi 0, %s208
      %s210 = sphi 0, %s208
      %s211 = sphi 0, %s210
      %s225 = sphi 0, %s211
      %s229 = sphi 0, %s229
      %s231 = sphi 0, %s229
      %s232 = sphi 0, %s231
      %s246 = sphi 0, %s232
      %s250 = sphi 0, %s250
      %s252 = sphi 0, %s250
      %s253 = sphi 0, %s252
      %s267 = sphi 0, %s253
      %s271 = sphi 0, %s271
      %s273 = sphi 0, %s271
      %s274 = sphi 0, %s273
      %s288 = sphi 0, %s274
      %s292 = sphi 0, %s292
      %s294 = sphi 0, %s292
      %s295 = sphi 0, %s294
      %s309 = sphi 0, %s295
      %s313 = sphi 0, %s313
      %s315 = sphi 0, %s313
      %s316 = sphi 0, %s315
      %s330 = sphi 0, %s316
      %s334 = sphi 0, %s334
      %s336 = sphi 0, %s334
      %s337 = sphi 0, %s336
      %s351 = sphi 0, %s337
      %s357 = sphi 0, %s359
      %s360 = sphi 0, %s357
      %s361 = sphi 0, %s360
      %s377 = sphi 0, %s361
    $region4: #{tpu_custom_call.1} parent=1 // loop_header_branch
      %30 = sbr.rel (%p28) target = $region8
    $region5: #{tpu_custom_call.1} parent=1 // loop_body
      %s32 = ssub.s32 %s27, 1
      %s33 = ssub.s32 %s27, 2
      %s34 = sadd.s32 %s27, 1
      %s35 = ssub.s32 %s27, %s34
      %p36 = scmp.eq.s32.totalorder %s35, 0
      %s38 = sadd.s32 %s37, 1
      %s39 = scalar_select %p36, %s37, %s38
      %p42 = pneg %p36
      %p43 = scmp.eq.s32.totalorder %s27, 1
      %p44 = por %p42, %p43
      %p45 = scmp.ne.s32.totalorder %s37, %s40
      %p46 = scmp.eq.s32.totalorder %s27, 0
      %p47 = por %p45, %p46
      %p48 = scmp.ne.s32.totalorder %s37, %s40
      %p49 = scmp.eq.s32.totalorder %s32, 1
      %p50 = por %p48, %p49
      %p51 = scmp.ne.s32.totalorder %s40, %s41
      %p52 = scmp.eq.s32.totalorder %s32, 0
      %p53 = por %p51, %p52
      %p54 = scmp.ne.s32.totalorder %s40, %s41
      %p55 = scmp.eq.s32.totalorder %s33, 1
      %p56 = por %p54, %p55
      %p58 = scmp.ne.s32.totalorder %s41, %s57
      %p59 = scmp.eq.s32.totalorder %s33, 0
      %p60 = por %p58, %p59
      %s62 = sadd.s32 %s61, 1
      %p65 = scmp.eq.s32.totalorder %s27, 1
      %p66 = scmp.ne.s32.totalorder %s61, %s63
      %p67 = scmp.eq.s32.totalorder %s27, 0
      %p68 = por %p66, %p67
      %p69 = scmp.ne.s32.totalorder %s61, %s63
      %p70 = scmp.eq.s32.totalorder %s32, 1
      %p71 = por %p69, %p70
      %p72 = scmp.ne.s32.totalorder %s63, %s64
      %p73 = scmp.eq.s32.totalorder %s32, 0
      %p74 = por %p72, %p73
      %p75 = scmp.ne.s32.totalorder %s63, %s64
      %p76 = scmp.eq.s32.totalorder %s33, 1
      %p77 = por %p75, %p76
      %p79 = scmp.ne.s32.totalorder %s64, %s78
      %p80 = scmp.eq.s32.totalorder %s33, 0
      %p81 = por %p79, %p80
      %s83 = sadd.s32 %s82, 1
      %p86 = scmp.eq.s32.totalorder %s27, 1
      %p87 = scmp.ne.s32.totalorder %s82, %s84
      %p88 = scmp.eq.s32.totalorder %s27, 0
      %p89 = por %p87, %p88
      %p90 = scmp.ne.s32.totalorder %s82, %s84
      %p91 = scmp.eq.s32.totalorder %s32, 1
      %p92 = por %p90, %p91
      %p93 = scmp.ne.s32.totalorder %s84, %s85
      %p94 = scmp.eq.s32.totalorder %s32, 0
      %p95 = por %p93, %p94
      %p96 = scmp.ne.s32.totalorder %s84, %s85
      %p97 = scmp.eq.s32.totalorder %s33, 1
      %p98 = por %p96, %p97
      %p100 = scmp.ne.s32.totalorder %s85, %s99
      %p101 = scmp.eq.s32.totalorder %s33, 0
      %p102 = por %p100, %p101
      %s104 = sadd.s32 %s103, 1
      %p107 = scmp.eq.s32.totalorder %s27, 1
      %p108 = scmp.ne.s32.totalorder %s103, %s105
      %p109 = scmp.eq.s32.totalorder %s27, 0
      %p110 = por %p108, %p109
      %p111 = scmp.ne.s32.totalorder %s103, %s105
      %p112 = scmp.eq.s32.totalorder %s32, 1
      %p113 = por %p111, %p112
      %p114 = scmp.ne.s32.totalorder %s105, %s106
      %p115 = scmp.eq.s32.totalorder %s32, 0
      %p116 = por %p114, %p115
      %p117 = scmp.ne.s32.totalorder %s105, %s106
      %p118 = scmp.eq.s32.totalorder %s33, 1
      %p119 = por %p117, %p118
      %p121 = scmp.ne.s32.totalorder %s106, %s120
      %p122 = scmp.eq.s32.totalorder %s33, 0
      %p123 = por %p121, %p122
      %s125 = sadd.s32 %s124, 1
      %p128 = scmp.eq.s32.totalorder %s27, 1
      %p129 = scmp.ne.s32.totalorder %s124, %s126
      %p130 = scmp.eq.s32.totalorder %s27, 0
      %p131 = por %p129, %p130
      %p132 = scmp.ne.s32.totalorder %s124, %s126
      %p133 = scmp.eq.s32.totalorder %s32, 1
      %p134 = por %p132, %p133
      %p135 = scmp.ne.s32.totalorder %s126, %s127
      %p136 = scmp.eq.s32.totalorder %s32, 0
      %p137 = por %p135, %p136
      %p138 = scmp.ne.s32.totalorder %s126, %s127
      %p139 = scmp.eq.s32.totalorder %s33, 1
      %p140 = por %p138, %p139
      %p142 = scmp.ne.s32.totalorder %s127, %s141
      %p143 = scmp.eq.s32.totalorder %s33, 0
      %p144 = por %p142, %p143
      %s146 = sadd.s32 %s145, 1
      %p149 = scmp.eq.s32.totalorder %s27, 1
      %p150 = scmp.ne.s32.totalorder %s145, %s147
      %p151 = scmp.eq.s32.totalorder %s27, 0
      %p152 = por %p150, %p151
      %p153 = scmp.ne.s32.totalorder %s145, %s147
      %p154 = scmp.eq.s32.totalorder %s32, 1
      %p155 = por %p153, %p154
      %p156 = scmp.ne.s32.totalorder %s147, %s148
      %p157 = scmp.eq.s32.totalorder %s32, 0
      %p158 = por %p156, %p157
      %p159 = scmp.ne.s32.totalorder %s147, %s148
      %p160 = scmp.eq.s32.totalorder %s33, 1
      %p161 = por %p159, %p160
      %p163 = scmp.ne.s32.totalorder %s148, %s162
      %p164 = scmp.eq.s32.totalorder %s33, 0
      %p165 = por %p163, %p164
      %s167 = sadd.s32 %s166, 1
      %p170 = scmp.eq.s32.totalorder %s27, 1
      %p171 = scmp.ne.s32.totalorder %s166, %s168
      %p172 = scmp.eq.s32.totalorder %s27, 0
      %p173 = por %p171, %p172
      %p174 = scmp.ne.s32.totalorder %s166, %s168
      %p175 = scmp.eq.s32.totalorder %s32, 1
      %p176 = por %p174, %p175
      %p177 = scmp.ne.s32.totalorder %s168, %s169
      %p178 = scmp.eq.s32.totalorder %s32, 0
      %p179 = por %p177, %p178
      %p180 = scmp.ne.s32.totalorder %s168, %s169
      %p181 = scmp.eq.s32.totalorder %s33, 1
      %p182 = por %p180, %p181
      %p184 = scmp.ne.s32.totalorder %s169, %s183
      %p185 = scmp.eq.s32.totalorder %s33, 0
      %p186 = por %p184, %p185
      %s188 = sadd.s32 %s187, 1
      %p191 = scmp.eq.s32.totalorder %s27, 1
      %p192 = scmp.ne.s32.totalorder %s187, %s189
      %p193 = scmp.eq.s32.totalorder %s27, 0
      %p194 = por %p192, %p193
      %p195 = scmp.ne.s32.totalorder %s187, %s189
      %p196 = scmp.eq.s32.totalorder %s32, 1
      %p197 = por %p195, %p196
      %p198 = scmp.ne.s32.totalorder %s189, %s190
      %p199 = scmp.eq.s32.totalorder %s32, 0
      %p200 = por %p198, %p199
      %p201 = scmp.ne.s32.totalorder %s189, %s190
      %p202 = scmp.eq.s32.totalorder %s33, 1
      %p203 = por %p201, %p202
      %p205 = scmp.ne.s32.totalorder %s190, %s204
      %p206 = scmp.eq.s32.totalorder %s33, 0
      %p207 = por %p205, %p206
      %s209 = sadd.s32 %s208, 1
      %p212 = scmp.eq.s32.totalorder %s27, 1
      %p213 = scmp.ne.s32.totalorder %s208, %s210
      %p214 = scmp.eq.s32.totalorder %s27, 0
      %p215 = por %p213, %p214
      %p216 = scmp.ne.s32.totalorder %s208, %s210
      %p217 = scmp.eq.s32.totalorder %s32, 1
      %p218 = por %p216, %p217
      %p219 = scmp.ne.s32.totalorder %s210, %s211
      %p220 = scmp.eq.s32.totalorder %s32, 0
      %p221 = por %p219, %p220
      %p222 = scmp.ne.s32.totalorder %s210, %s211
      %p223 = scmp.eq.s32.totalorder %s33, 1
      %p224 = por %p222, %p223
      %p226 = scmp.ne.s32.totalorder %s211, %s225
      %p227 = scmp.eq.s32.totalorder %s33, 0
      %p228 = por %p226, %p227
      %s230 = sadd.s32 %s229, 1
      %p233 = scmp.eq.s32.totalorder %s27, 1
      %p234 = scmp.ne.s32.totalorder %s229, %s231
      %p235 = scmp.eq.s32.totalorder %s27, 0
      %p236 = por %p234, %p235
      %p237 = scmp.ne.s32.totalorder %s229, %s231
      %p238 = scmp.eq.s32.totalorder %s32, 1
      %p239 = por %p237, %p238
      %p240 = scmp.ne.s32.totalorder %s231, %s232
      %p241 = scmp.eq.s32.totalorder %s32, 0
      %p242 = por %p240, %p241
      %p243 = scmp.ne.s32.totalorder %s231, %s232
      %p244 = scmp.eq.s32.totalorder %s33, 1
      %p245 = por %p243, %p244
      %p247 = scmp.ne.s32.totalorder %s232, %s246
      %p248 = scmp.eq.s32.totalorder %s33, 0
      %p249 = por %p247, %p248
      %s251 = sadd.s32 %s250, 1
      %p254 = scmp.eq.s32.totalorder %s27, 1
      %p255 = scmp.ne.s32.totalorder %s250, %s252
      %p256 = scmp.eq.s32.totalorder %s27, 0
      %p257 = por %p255, %p256
      %p258 = scmp.ne.s32.totalorder %s250, %s252
      %p259 = scmp.eq.s32.totalorder %s32, 1
      %p260 = por %p258, %p259
      %p261 = scmp.ne.s32.totalorder %s252, %s253
      %p262 = scmp.eq.s32.totalorder %s32, 0
      %p263 = por %p261, %p262
      %p264 = scmp.ne.s32.totalorder %s252, %s253
      %p265 = scmp.eq.s32.totalorder %s33, 1
      %p266 = por %p264, %p265
      %p268 = scmp.ne.s32.totalorder %s253, %s267
      %p269 = scmp.eq.s32.totalorder %s33, 0
      %p270 = por %p268, %p269
      %s272 = sadd.s32 %s271, 1
      %p275 = scmp.eq.s32.totalorder %s27, 1
      %p276 = scmp.ne.s32.totalorder %s271, %s273
      %p277 = scmp.eq.s32.totalorder %s27, 0
      %p278 = por %p276, %p277
      %p279 = scmp.ne.s32.totalorder %s271, %s273
      %p280 = scmp.eq.s32.totalorder %s32, 1
      %p281 = por %p279, %p280
      %p282 = scmp.ne.s32.totalorder %s273, %s274
      %p283 = scmp.eq.s32.totalorder %s32, 0
      %p284 = por %p282, %p283
      %p285 = scmp.ne.s32.totalorder %s273, %s274
      %p286 = scmp.eq.s32.totalorder %s33, 1
      %p287 = por %p285, %p286
      %p289 = scmp.ne.s32.totalorder %s274, %s288
      %p290 = scmp.eq.s32.totalorder %s33, 0
      %p291 = por %p289, %p290
      %s293 = sadd.s32 %s292, 1
      %p296 = scmp.eq.s32.totalorder %s27, 1
      %p297 = scmp.ne.s32.totalorder %s292, %s294
      %p298 = scmp.eq.s32.totalorder %s27, 0
      %p299 = por %p297, %p298
      %p300 = scmp.ne.s32.totalorder %s292, %s294
      %p301 = scmp.eq.s32.totalorder %s32, 1
      %p302 = por %p300, %p301
      %p303 = scmp.ne.s32.totalorder %s294, %s295
      %p304 = scmp.eq.s32.totalorder %s32, 0
      %p305 = por %p303, %p304
      %p306 = scmp.ne.s32.totalorder %s294, %s295
      %p307 = scmp.eq.s32.totalorder %s33, 1
      %p308 = por %p306, %p307
      %p310 = scmp.ne.s32.totalorder %s295, %s309
      %p311 = scmp.eq.s32.totalorder %s33, 0
      %p312 = por %p310, %p311
      %s314 = sadd.s32 %s313, 1
      %p317 = scmp.eq.s32.totalorder %s27, 1
      %p318 = scmp.ne.s32.totalorder %s313, %s315
      %p319 = scmp.eq.s32.totalorder %s27, 0
      %p320 = por %p318, %p319
      %p321 = scmp.ne.s32.totalorder %s313, %s315
      %p322 = scmp.eq.s32.totalorder %s32, 1
      %p323 = por %p321, %p322
      %p324 = scmp.ne.s32.totalorder %s315, %s316
      %p325 = scmp.eq.s32.totalorder %s32, 0
      %p326 = por %p324, %p325
      %p327 = scmp.ne.s32.totalorder %s315, %s316
      %p328 = scmp.eq.s32.totalorder %s33, 1
      %p329 = por %p327, %p328
      %p331 = scmp.ne.s32.totalorder %s316, %s330
      %p332 = scmp.eq.s32.totalorder %s33, 0
      %p333 = por %p331, %p332
      %s335 = sadd.s32 %s334, 1
      %p338 = scmp.eq.s32.totalorder %s27, 1
      %p339 = scmp.ne.s32.totalorder %s334, %s336
      %p340 = scmp.eq.s32.totalorder %s27, 0
      %p341 = por %p339, %p340
      %p342 = scmp.ne.s32.totalorder %s334, %s336
      %p343 = scmp.eq.s32.totalorder %s32, 1
      %p344 = por %p342, %p343
      %p345 = scmp.ne.s32.totalorder %s336, %s337
      %p346 = scmp.eq.s32.totalorder %s32, 0
      %p347 = por %p345, %p346
      %p348 = scmp.ne.s32.totalorder %s336, %s337
      %p349 = scmp.eq.s32.totalorder %s33, 1
      %p350 = por %p348, %p349
      %p352 = scmp.ne.s32.totalorder %s337, %s351
      %p353 = scmp.eq.s32.totalorder %s33, 0
      %p354 = por %p352, %p353
      %s355 = ssub.s32 %s27, %s34
      %p356 = scmp.eq.s32.totalorder %s355, 0
      %s358 = sadd.s32 %s357, 1
      %s359 = scalar_select %p356, %s357, %s358
      %p362 = pneg %p356
      %p363 = scmp.eq.s32.totalorder %s27, 1
      %p364 = por %p362, %p363
      %p365 = scmp.ne.s32.totalorder %s357, %s360
      %p366 = scmp.eq.s32.totalorder %s27, 0
      %p367 = por %p365, %p366
      %p368 = scmp.ne.s32.totalorder %s357, %s360
      %p369 = scmp.eq.s32.totalorder %s32, 1
      %p370 = por %p368, %p369
      %p371 = scmp.ne.s32.totalorder %s360, %s361
      %p372 = scmp.eq.s32.totalorder %s32, 0
      %p373 = por %p371, %p372
      %p374 = scmp.ne.s32.totalorder %s360, %s361
      %p375 = scmp.eq.s32.totalorder %s33, 1
      %p376 = por %p374, %p375
      %p378 = scmp.ne.s32.totalorder %s361, %s377
      %p379 = scmp.eq.s32.totalorder %s33, 0
      %p380 = por %p378, %p379
      %p381 = scmp.le.s32.totalorder 1, %s27
      %p382 = scmp.lt.s32.totalorder %s27, 3
      %p383 = pnand %p381, %p382
      %p384 = pneg %p383
      // Predicated region
      $region9: #{tpu_custom_call.1} parent=5 // pred_check
        _
      $region10: #{tpu_custom_call.1} parent=5 // pred_check_branch
        %386 = sbr.rel (%p383) target = $region12
      $region11: #{tpu_custom_call.1} parent=5 // pred_region
        %s387 = ssub.s32 %s27, 1
        // Predicated region
        $region13: #{tpu_custom_call.1} parent=11 // pred_check
          %p388 = pneg %p74
        $region14: #{tpu_custom_call.1} parent=11 // pred_check_branch
          %390 = sbr.rel (%p388) target = $region16
        $region15: #{tpu_custom_call.1} parent=11 // pred_region
          _
        $region16: #{tpu_custom_call.1} parent=11 // pred_fallthru
          _
        // Predicated region
        $region17: #{tpu_custom_call.1} parent=11 // pred_check
          %p391 = pneg %p95
        $region18: #{tpu_custom_call.1} parent=11 // pred_check_branch
          %393 = sbr.rel (%p391) target = $region20
        $region19: #{tpu_custom_call.1} parent=11 // pred_region
          _
        $region20: #{tpu_custom_call.1} parent=11 // pred_fallthru
          _
        // Predicated region
        $region21: #{tpu_custom_call.1} parent=11 // pred_check
          %p394 = pneg %p116
        $region22: #{tpu_custom_call.1} parent=11 // pred_check_branch
          %396 = sbr.rel (%p394) target = $region24
        $region23: #{tpu_custom_call.1} parent=11 // pred_region
          _
        $region24: #{tpu_custom_call.1} parent=11 // pred_fallthru
          _
        // Predicated region
        $region25: #{tpu_custom_call.1} parent=11 // pred_check
          %p397 = pneg %p137
        $region26: #{tpu_custom_call.1} parent=11 // pred_check_branch
          %399 = sbr.rel (%p397) target = $region28
        $region27: #{tpu_custom_call.1} parent=11 // pred_region
          _
        $region28: #{tpu_custom_call.1} parent=11 // pred_fallthru
          _
        // Predicated region
        $region29: #{tpu_custom_call.1} parent=11 // pred_check
          %p400 = pneg %p158
        $region30: #{tpu_custom_call.1} parent=11 // pred_check_branch
          %402 = sbr.rel (%p400) target = $region32
        $region31: #{tpu_custom_call.1} parent=11 // pred_region
          _
        $region32: #{tpu_custom_call.1} parent=11 // pred_fallthru
          _
        // Predicated region
        $region33: #{tpu_custom_call.1} parent=11 // pred_check
          %p403 = pneg %p179
        $region34: #{tpu_custom_call.1} parent=11 // pred_check_branch
          %405 = sbr.rel (%p403) target = $region36
        $region35: #{tpu_custom_call.1} parent=11 // pred_region
          _
        $region36: #{tpu_custom_call.1} parent=11 // pred_fallthru
          _
        // Predicated region
        $region37: #{tpu_custom_call.1} parent=11 // pred_check
          %p406 = pneg %p200
        $region38: #{tpu_custom_call.1} parent=11 // pred_check_branch
          %408 = sbr.rel (%p406) target = $region40
        $region39: #{tpu_custom_call.1} parent=11 // pred_region
          _
        $region40: #{tpu_custom_call.1} parent=11 // pred_fallthru
          _
        // Predicated region
        $region41: #{tpu_custom_call.1} parent=11 // pred_check
          %p409 = pneg %p221
        $region42: #{tpu_custom_call.1} parent=11 // pred_check_branch
          %411 = sbr.rel (%p409) target = $region44
        $region43: #{tpu_custom_call.1} parent=11 // pred_region
          _
        $region44: #{tpu_custom_call.1} parent=11 // pred_fallthru
          _
        // Predicated region
        $region45: #{tpu_custom_call.1} parent=11 // pred_check
          %p412 = pneg %p242
        $region46: #{tpu_custom_call.1} parent=11 // pred_check_branch
          %414 = sbr.rel (%p412) target = $region48
        $region47: #{tpu_custom_call.1} parent=11 // pred_region
          _
        $region48: #{tpu_custom_call.1} parent=11 // pred_fallthru
          _
        // Predicated region
        $region49: #{tpu_custom_call.1} parent=11 // pred_check
          %p415 = pneg %p263
        $region50: #{tpu_custom_call.1} parent=11 // pred_check_branch
          %417 = sbr.rel (%p415) target = $region52
        $region51: #{tpu_custom_call.1} parent=11 // pred_region
          _
        $region52: #{tpu_custom_call.1} parent=11 // pred_fallthru
          _
        // Predicated region
        $region53: #{tpu_custom_call.1} parent=11 // pred_check
          %p418 = pneg %p284
        $region54: #{tpu_custom_call.1} parent=11 // pred_check_branch
          %420 = sbr.rel (%p418) target = $region56
        $region55: #{tpu_custom_call.1} parent=11 // pred_region
          _
        $region56: #{tpu_custom_call.1} parent=11 // pred_fallthru
          _
        // Predicated region
        $region57: #{tpu_custom_call.1} parent=11 // pred_check
          %p421 = pneg %p305
        $region58: #{tpu_custom_call.1} parent=11 // pred_check_branch
          %423 = sbr.rel (%p421) target = $region60
        $region59: #{tpu_custom_call.1} parent=11 // pred_region
          _
        $region60: #{tpu_custom_call.1} parent=11 // pred_fallthru
          _
        // Predicated region
        $region61: #{tpu_custom_call.1} parent=11 // pred_check
          %p424 = pneg %p326
        $region62: #{tpu_custom_call.1} parent=11 // pred_check_branch
          %426 = sbr.rel (%p424) target = $region64
        $region63: #{tpu_custom_call.1} parent=11 // pred_region
          _
        $region64: #{tpu_custom_call.1} parent=11 // pred_fallthru
          _
        // Predicated region
        $region65: #{tpu_custom_call.1} parent=11 // pred_check
          %p427 = pneg %p347
        $region66: #{tpu_custom_call.1} parent=11 // pred_check_branch
          %429 = sbr.rel (%p427) target = $region68
        $region67: #{tpu_custom_call.1} parent=11 // pred_region
          _
        $region68: #{tpu_custom_call.1} parent=11 // pred_fallthru
          _
      $region12: #{tpu_custom_call.1} parent=5 // pred_fallthru
        _
      %p430 = scmp.lt.s32.totalorder %s27, 2
      // Predicated region
      $region69: #{tpu_custom_call.1} parent=5 // pred_check
        %p431 = pneg %p430
      $region70: #{tpu_custom_call.1} parent=5 // pred_check_branch
        %433 = sbr.rel (%p431) target = $region72
      $region71: #{tpu_custom_call.1} parent=5 // pred_region
        // Predicated region
        $region73: #{tpu_custom_call.1} parent=71 // pred_check
          %p434 = pneg %p47
        $region74: #{tpu_custom_call.1} parent=71 // pred_check_branch
          %436 = sbr.rel (%p434) target = $region76
        $region75: #{tpu_custom_call.1} parent=71 // pred_region
          %s437 = sand.u32 %s37, 1
          %s438 = scalar_lea.sflag [#allocation3], %s437
          %s439 = sand.u32 %s37, 1
          %s440 = smul.addr %s439, 32
          %s441 = scalar_lea.vmem [#allocation2], %s440
          %s443 = ssub.s32 512, 512
          %444 = vsyncadd %s438, %s443
          %s445 = smul.addr %s27, 4
          %s446 = smul.addr %s445, 128
          %s447 = scalar_lea.hbm %s0, %s446
          %s449 = sshll.u32 %s441, 4
          %s450 = int_to_ptr.vmem [resolvable:$true] %s449
          %452 = dma.hbm_to_vmem [thread:$0]  %s447, 512, %s450, %s438
        $region76: #{tpu_custom_call.1} parent=71 // pred_fallthru
          _
      $region72: #{tpu_custom_call.1} parent=5 // pred_fallthru
        _
      %p453 = scmp.le.s32.totalorder 1, %s27
      %p454 = scmp.lt.s32.totalorder %s27, 3
      %p455 = pnand %p453, %p454
      %p456 = pneg %p455
      // Predicated region
      $region77: #{tpu_custom_call.1} parent=5 // pred_check
        _
      $region78: #{tpu_custom_call.1} parent=5 // pred_check_branch
        %458 = sbr.rel (%p455) target = $region80
      $region79: #{tpu_custom_call.1} parent=5 // pred_region
        %s459 = ssub.s32 %s27, 1
        %s460 = sand.u32 %s40, 1
        %s461 = scalar_lea.sflag [#allocation3], %s460
        %s462 = sand.u32 %s40, 1
        %s463 = smul.addr %s462, 32
        %s464 = scalar_lea.vmem [#allocation2], %s463
        // Predicated region
        $region81: #{tpu_custom_call.1} parent=79 // pred_check
          %p465 = pneg %p53
        $region82: #{tpu_custom_call.1} parent=79 // pred_check_branch
          %467 = sbr.rel (%p465) target = $region84
        $region83: #{tpu_custom_call.1} parent=79 // pred_region
          %468 = dma.done %s461, 512
        $region84: #{tpu_custom_call.1} parent=79 // pred_fallthru
          _
        %s469 = sand.u32 %s40, 1
        %s470 = scalar_lea.sflag [#allocation3], %s469
        %s471 = sand.u32 %s40, 1
        %s472 = smul.addr %s471, 32
        %s473 = scalar_lea.vmem [#allocation2], %s472
        %p474 = pneg %p53
        %p475 = pneg %p50
        %p476 = pneg %p74
        %p477 = pneg %p71
        %p478 = pneg %p95
        %p479 = pneg %p92
        %p480 = pneg %p116
        %p481 = pneg %p113
        %p482 = pneg %p137
        %p483 = pneg %p134
        %p484 = pneg %p158
        %p485 = pneg %p155
        %p486 = pneg %p179
        %p487 = pneg %p176
        %p488 = pneg %p200
        %p489 = pneg %p197
        %p490 = pneg %p221
        %p491 = pneg %p218
        %p492 = pneg %p242
        %p493 = pneg %p239
        %p494 = pneg %p263
        %p495 = pneg %p260
        %p496 = pneg %p284
        %p497 = pneg %p281
        %p498 = pneg %p305
        %p499 = pneg %p302
        %p500 = pneg %p326
        %p501 = pneg %p323
        %p502 = pneg %p347
        %p503 = pneg %p344
        %p504 = pneg %p373
        %p505 = pneg %p370
        %s506 = sand.u32 %s360, 1
        %s507 = scalar_lea.sflag [#allocation4], %s506
        %s508 = sand.u32 %s360, 1
        %s509 = smul.addr %s508, 32
        %s510 = scalar_lea.vmem [#allocation5], %s509
        %v511 = vld [vmem:[%s464] sm:$0xff]
        %v512 = vld [vmem:[%s464 + $0x8] sm:$0xff]
        %v513 = vld [vmem:[%s464 + $0x10] sm:$0xff]
        %v514 = vld [vmem:[%s464 + $0x18] sm:$0xff]
        %v515 = vlaneseq
        %v516 = vand.u32 %v515, 127
        %v517 = vadd.s32 %v516, 128
        %v518 = vadd.s32 %v516, 256
        %v519 = vadd.s32 %v516, 384
        %v520 = vand.u32 %v516, 255
        %v521 = vand.u32 %v517, 255
        %v522 = vand.u32 %v518, 255
        %v523 = vand.u32 %v519, 255
        %v524 = vand.u32 %v520, 15
        %v525 = vand.u32 %v521, 15
        %v526 = vand.u32 %v522, 15
        %v527 = vand.u32 %v523, 15
        %v528 = vshra.s32 %v520, 4
        %v529 = vshra.s32 %v521, 4
        %v530 = vshra.s32 %v522, 4
        %v531 = vshra.s32 %v523, 4
        %532 = vrot.lane.b32.xlu0 %v511, 1
        %v533 = vpop.permute.xlu0 %532
        %534 = vrot.lane.b32.xlu0 %v512, 1
        %v535 = vpop.permute.xlu0 %534
        %536 = vrot.lane.b32.xlu0 %v513, 1
        %v537 = vpop.permute.xlu0 %536
        %538 = vrot.lane.b32.xlu0 %v514, 1
        %v539 = vpop.permute.xlu0 %538
        %vm540 = vcmp.lt.s32.totalorder %v516, 1
        %v541 = vsel %vm540, %v537, %v539
        %v542 = vsel %vm540, %v535, %v537
        %v543 = vsel %vm540, %v533, %v535
        %v544 = vsel %vm540, %v539, %v533
        %vm545 = vcmp.ge.s32.totalorder %v524, 1
        %vm546 = vcmp.ge.s32.totalorder %v525, 1
        %vm547 = vcmp.ge.s32.totalorder %v526, 1
        %vm548 = vcmp.ge.s32.totalorder %v527, 1
        %v549 = vsel %vm545, %v544, 0.0
        %v550 = vsel %vm546, %v543, 0.0
        %v551 = vsel %vm547, %v542, 0.0
        %v552 = vsel %vm548, %v541, 0.0
        %553 = vrot.lane.b32.xlu0 %v511, 127
        %v554 = vpop.permute.xlu0 %553
        %555 = vrot.lane.b32.xlu0 %v512, 127
        %v556 = vpop.permute.xlu0 %555
        %557 = vrot.lane.b32.xlu0 %v513, 127
        %v558 = vpop.permute.xlu0 %557
        %559 = vrot.lane.b32.xlu0 %v514, 127
        %v560 = vpop.permute.xlu0 %559
        %vm561 = vcmp.lt.s32.totalorder %v516, 127
        %v562 = vsel %vm561, %v558, %v560
        %v563 = vsel %vm561, %v556, %v558
        %v564 = vsel %vm561, %v554, %v556
        %v565 = vsel %vm561, %v560, %v554
        %vm566 = vcmp.lt.s32.totalorder %v524, 15
        %vm567 = vcmp.lt.s32.totalorder %v525, 15
        %vm568 = vcmp.lt.s32.totalorder %v526, 15
        %vm569 = vcmp.lt.s32.totalorder %v527, 15
        %v570 = vsel %vm566, %v564, 0.0
        %v571 = vsel %vm567, %v563, 0.0
        %v572 = vsel %vm568, %v562, 0.0
        %v573 = vsel %vm569, %v565, 0.0
        %v574 = vld [vmem:[%s1] sm:$0xff]
        %v575 = vld [vmem:[%s2] sm:$0xff]
        %577 = vset.pattern.permute.xlu0 0
        %578 = vperm.xlu0 %577, %v575
        %v579 = vpop.permute.xlu0 %578
        %vm581 = vcmask 195584
        %v583 = vsel %vm581, %v574, 0
        %585 = vmatprep.subr.mxu0 %v550
        %586 = vmatpush1.msra.mxu0 %v549
        %587 = vmatprep.subr.mxu0 %v512
        %588 = vmatpush1.msra.mxu0 %v511
        %589 = vmatprep.subr.mxu0 %v571
        %590 = vmatpush1.msra.mxu0 %v570
        %591 = vmatprep.subr.mxu0 0.0
        %592 = vmatpush1.msra.mxu0 0.0
        %593 = vmatprep.subr.mxu0 0.0
        %594 = vmatpush1.msra.mxu0 0.0
        %595 = vmatprep.subr.mxu0 0.0
        %596 = vmatpush1.msra.mxu0 0.0
        %597 = vmatprep.subr.mxu0 0.0
        %598 = vmatpush1.msra.mxu0 0.0
        %599 = vmatprep.subr.mxu0 0.0
        %600 = vmatpush1.msra.mxu0 0.0
        %601 = vmatprep.subr.mxu0 0.0
        %602 = vmatpush1.msra.mxu0 0.0
        %603 = vmatprep.subr.mxu0 0.0
        %604 = vmatpush1.msra.mxu0 0.0
        %605 = vmatprep.subr.mxu0 0.0
        %606 = vmatpush1.msra.mxu0 0.0
        %607 = vmatprep.subr.mxu0 0.0
        %608 = vmatpush1.msra.mxu0 0.0
        %609 = vmatprep.subr.mxu0 0.0
        %610 = vmatpush1.msra.mxu0 0.0
        %611 = vmatprep.subr.mxu0 0.0
        %612 = vmatpush1.msra.mxu0 0.0
        %613 = vmatprep.subr.mxu0 0.0
        %614 = vmatpush1.msra.mxu0 0.0
        %615 = vmatprep.subr.mxu0 0.0
        %616 = vmatpush1.msra.mxu0 0.0
        %617 = vmatprep.subr.mxu0 0.0
        %618 = vmatpush1.msra.mxu0 0.0
        %619 = vmatprep.subr.mxu0 0.0
        %620 = vmatpush1.msra.mxu0 0.0
        %621 = vmatprep.subr.mxu0 0.0
        %622 = vmatpush1.msra.mxu0 0.0
        %623 = vmatprep.subr.mxu0 0.0
        %624 = vmatpush1.msra.mxu0 0.0
        %625 = vmatprep.subr.mxu0 0.0
        %626 = vmatpush1.msra.mxu0 0.0
        %627 = vmatprep.subr.mxu0 0.0
        %628 = vmatpush1.msra.mxu0 0.0
        %629 = vmatprep.subr.mxu0 0.0
        %630 = vmatpush1.msra.mxu0 0.0
        %631 = vmatprep.subr.mxu0 0.0
        %632 = vmatpush1.msra.mxu0 0.0
        %633 = vmatprep.subr.mxu0 0.0
        %634 = vmatpush1.msra.mxu0 0.0
        %635 = vmatprep.subr.mxu0 0.0
        %636 = vmatpush1.msra.mxu0 0.0
        %637 = vmatprep.subr.mxu0 0.0
        %638 = vmatpush1.msra.mxu0 0.0
        %639 = vmatprep.subr.mxu0 0.0
        %640 = vmatpush1.msra.mxu0 0.0
        %641 = vmatprep.subr.mxu0 0.0
        %642 = vmatpush1.msra.mxu0 0.0
        %643 = vmatprep.subr.mxu0 0.0
        %644 = vmatpush1.msra.mxu0 0.0
        %645 = vmatprep.subr.mxu0 0.0
        %646 = vmatpush1.msra.mxu0 0.0
        %647 = vmatprep.subr.mxu0 0.0
        %648 = vmatpush1.msra.mxu0 0.0
        %649 = vmatprep.mubr.f32.mxu0 0.0
        %650 = vmatmul.mubr.f32.gmra.mrb[0].mxu0 %v583
        %v651 = vpop.f32.mrb[0].mxu0
        %v652 = vadd.f32 %v579, %v651
        %v653 = vpop.f32.mrb[0].mxu0
        %v654 = vadd.f32 %v579, %v653
        %655 = vdwg.mxu0
        %656 = vmatprep.subr.mxu0 %v552
        %657 = vmatpush1.msra.mxu0 %v551
        %658 = vmatprep.subr.mxu0 %v514
        %659 = vmatpush1.msra.mxu0 %v513
        %660 = vmatprep.subr.mxu0 %v573
        %661 = vmatpush1.msra.mxu0 %v572
        %662 = vmatprep.subr.mxu0 0.0
        %663 = vmatpush1.msra.mxu0 0.0
        %664 = vmatprep.subr.mxu0 0.0
        %665 = vmatpush1.msra.mxu0 0.0
        %666 = vmatprep.subr.mxu0 0.0
        %667 = vmatpush1.msra.mxu0 0.0
        %668 = vmatprep.subr.mxu0 0.0
        %669 = vmatpush1.msra.mxu0 0.0
        %670 = vmatprep.subr.mxu0 0.0
        %671 = vmatpush1.msra.mxu0 0.0
        %672 = vmatprep.subr.mxu0 0.0
        %673 = vmatpush1.msra.mxu0 0.0
        %674 = vmatprep.subr.mxu0 0.0
        %675 = vmatpush1.msra.mxu0 0.0
        %676 = vmatprep.subr.mxu0 0.0
        %677 = vmatpush1.msra.mxu0 0.0
        %678 = vmatprep.subr.mxu0 0.0
        %679 = vmatpush1.msra.mxu0 0.0
        %680 = vmatprep.subr.mxu0 0.0
        %681 = vmatpush1.msra.mxu0 0.0
        %682 = vmatprep.subr.mxu0 0.0
        %683 = vmatpush1.msra.mxu0 0.0
        %684 = vmatprep.subr.mxu0 0.0
        %685 = vmatpush1.msra.mxu0 0.0
        %686 = vmatprep.subr.mxu0 0.0
        %687 = vmatpush1.msra.mxu0 0.0
        %688 = vmatprep.subr.mxu0 0.0
        %689 = vmatpush1.msra.mxu0 0.0
        %690 = vmatprep.subr.mxu0 0.0
        %691 = vmatpush1.msra.mxu0 0.0
        %692 = vmatprep.subr.mxu0 0.0
        %693 = vmatpush1.msra.mxu0 0.0
        %694 = vmatprep.subr.mxu0 0.0
        %695 = vmatpush1.msra.mxu0 0.0
        %696 = vmatprep.subr.mxu0 0.0
        %697 = vmatpush1.msra.mxu0 0.0
        %698 = vmatprep.subr.mxu0 0.0
        %699 = vmatpush1.msra.mxu0 0.0
        %700 = vmatprep.subr.mxu0 0.0
        %701 = vmatpush1.msra.mxu0 0.0
        %702 = vmatprep.subr.mxu0 0.0
        %703 = vmatpush1.msra.mxu0 0.0
        %704 = vmatprep.subr.mxu0 0.0
        %705 = vmatpush1.msra.mxu0 0.0
        %706 = vmatprep.subr.mxu0 0.0
        %707 = vmatpush1.msra.mxu0 0.0
        %708 = vmatprep.subr.mxu0 0.0
        %709 = vmatpush1.msra.mxu0 0.0
        %710 = vmatprep.subr.mxu0 0.0
        %711 = vmatpush1.msra.mxu0 0.0
        %712 = vmatprep.subr.mxu0 0.0
        %713 = vmatpush1.msra.mxu0 0.0
        %714 = vmatprep.subr.mxu0 0.0
        %715 = vmatpush1.msra.mxu0 0.0
        %716 = vmatprep.subr.mxu0 0.0
        %717 = vmatpush1.msra.mxu0 0.0
        %718 = vmatprep.subr.mxu0 0.0
        %719 = vmatpush1.msra.mxu0 0.0
        %720 = vmatprep.mubr.f32.mxu0 0.0
        %721 = vmatmul.mubr.f32.gmra.mrb[0].mxu0 %v583
        %v722 = vpop.f32.mrb[0].mxu0
        %v723 = vadd.f32 %v579, %v722
        %v724 = vpop.f32.mrb[0].mxu0
        %v725 = vadd.f32 %v579, %v724
        %726 = vdwg.mxu0
        %727 = vrot.lane.b32.xlu0 %v652, 127
        %v728 = vpop.permute.xlu0 %727
        %729 = vrot.lane.b32.xlu0 %v654, 127
        %v730 = vpop.permute.xlu0 %729
        %731 = vrot.lane.b32.xlu0 %v723, 127
        %v732 = vpop.permute.xlu0 %731
        %733 = vrot.lane.b32.xlu0 %v725, 127
        %v734 = vpop.permute.xlu0 %733
        %v735 = vsel %vm561, %v732, %v734
        %v736 = vsel %vm561, %v730, %v732
        %v737 = vsel %vm561, %v728, %v730
        %v738 = vsel %vm561, %v734, %v728
        %739 = vrot.lane.b32.xlu0 %v652, 1
        %v740 = vpop.permute.xlu0 %739
        %741 = vrot.lane.b32.xlu0 %v654, 1
        %v742 = vpop.permute.xlu0 %741
        %743 = vrot.lane.b32.xlu0 %v723, 1
        %v744 = vpop.permute.xlu0 %743
        %745 = vrot.lane.b32.xlu0 %v725, 1
        %v746 = vpop.permute.xlu0 %745
        %v747 = vsel %vm540, %v744, %v746
        %v748 = vsel %vm540, %v742, %v744
        %v749 = vsel %vm540, %v740, %v742
        %v750 = vsel %vm540, %v746, %v740
        %v751 = vand.u32 %v524, 1
        %v752 = vand.u32 %v525, 1
        %v753 = vand.u32 %v526, 1
        %v754 = vand.u32 %v527, 1
        %vm755 = vcmp.eq.s32.totalorder %v751, 0
        %vm756 = vcmp.eq.s32.totalorder %v752, 0
        %vm757 = vcmp.eq.s32.totalorder %v753, 0
        %vm758 = vcmp.eq.s32.totalorder %v754, 0
        %v759 = vsel %vm755, %v737, %v750
        %v760 = vsel %vm756, %v736, %v749
        %v761 = vsel %vm757, %v735, %v748
        %v762 = vsel %vm758, %v738, %v747
        %v763 = vadd.f32 %v652, %v759
        %v764 = vadd.f32 %v654, %v760
        %v765 = vadd.f32 %v723, %v761
        %v766 = vadd.f32 %v725, %v762
        %767 = vrot.lane.b32.xlu0 %v763, 126
        %v768 = vpop.permute.xlu0 %767
        %769 = vrot.lane.b32.xlu0 %v764, 126
        %v770 = vpop.permute.xlu0 %769
        %771 = vrot.lane.b32.xlu0 %v765, 126
        %v772 = vpop.permute.xlu0 %771
        %773 = vrot.lane.b32.xlu0 %v766, 126
        %v774 = vpop.permute.xlu0 %773
        %vm775 = vcmp.lt.s32.totalorder %v516, 126
        %v776 = vsel %vm775, %v772, %v774
        %v777 = vsel %vm775, %v770, %v772
        %v778 = vsel %vm775, %v768, %v770
        %v779 = vsel %vm775, %v774, %v768
        %780 = vrot.lane.b32.xlu0 %v763, 2
        %v781 = vpop.permute.xlu0 %780
        %782 = vrot.lane.b32.xlu0 %v764, 2
        %v783 = vpop.permute.xlu0 %782
        %784 = vrot.lane.b32.xlu0 %v765, 2
        %v785 = vpop.permute.xlu0 %784
        %786 = vrot.lane.b32.xlu0 %v766, 2
        %v787 = vpop.permute.xlu0 %786
        %vm788 = vcmp.lt.s32.totalorder %v516, 2
        %v789 = vsel %vm788, %v785, %v787
        %v790 = vsel %vm788, %v783, %v785
        %v791 = vsel %vm788, %v781, %v783
        %v792 = vsel %vm788, %v787, %v781
        %v793 = vand.u32 %v524, 2
        %v794 = vand.u32 %v525, 2
        %v795 = vand.u32 %v526, 2
        %v796 = vand.u32 %v527, 2
        %vm797 = vcmp.eq.s32.totalorder %v793, 0
        %vm798 = vcmp.eq.s32.totalorder %v794, 0
        %vm799 = vcmp.eq.s32.totalorder %v795, 0
        %vm800 = vcmp.eq.s32.totalorder %v796, 0
        %v801 = vsel %vm797, %v778, %v792
        %v802 = vsel %vm798, %v777, %v791
        %v803 = vsel %vm799, %v776, %v790
        %v804 = vsel %vm800, %v779, %v789
        %v805 = vadd.f32 %v763, %v801
        %v806 = vadd.f32 %v764, %v802
        %v807 = vadd.f32 %v765, %v803
        %v808 = vadd.f32 %v766, %v804
        %809 = vrot.lane.b32.xlu0 %v805, 124
        %v810 = vpop.permute.xlu0 %809
        %811 = vrot.lane.b32.xlu0 %v806, 124
        %v812 = vpop.permute.xlu0 %811
        %813 = vrot.lane.b32.xlu0 %v807, 124
        %v814 = vpop.permute.xlu0 %813
        %815 = vrot.lane.b32.xlu0 %v808, 124
        %v816 = vpop.permute.xlu0 %815
        %vm817 = vcmp.lt.s32.totalorder %v516, 124
        %v818 = vsel %vm817, %v814, %v816
        %v819 = vsel %vm817, %v812, %v814
        %v820 = vsel %vm817, %v810, %v812
        %v821 = vsel %vm817, %v816, %v810
        %822 = vrot.lane.b32.xlu0 %v805, 4
        %v823 = vpop.permute.xlu0 %822
        %824 = vrot.lane.b32.xlu0 %v806, 4
        %v825 = vpop.permute.xlu0 %824
        %826 = vrot.lane.b32.xlu0 %v807, 4
        %v827 = vpop.permute.xlu0 %826
        %828 = vrot.lane.b32.xlu0 %v808, 4
        %v829 = vpop.permute.xlu0 %828
        %vm830 = vcmp.lt.s32.totalorder %v516, 4
        %v831 = vsel %vm830, %v827, %v829
        %v832 = vsel %vm830, %v825, %v827
        %v833 = vsel %vm830, %v823, %v825
        %v834 = vsel %vm830, %v829, %v823
        %v835 = vand.u32 %v524, 4
        %v836 = vand.u32 %v525, 4
        %v837 = vand.u32 %v526, 4
        %v838 = vand.u32 %v527, 4
        %vm839 = vcmp.eq.s32.totalorder %v835, 0
        %vm840 = vcmp.eq.s32.totalorder %v836, 0
        %vm841 = vcmp.eq.s32.totalorder %v837, 0
        %vm842 = vcmp.eq.s32.totalorder %v838, 0
        %v843 = vsel %vm839, %v820, %v834
        %v844 = vsel %vm840, %v819, %v833
        %v845 = vsel %vm841, %v818, %v832
        %v846 = vsel %vm842, %v821, %v831
        %v847 = vadd.f32 %v805, %v843
        %v848 = vadd.f32 %v806, %v844
        %v849 = vadd.f32 %v807, %v845
        %v850 = vadd.f32 %v808, %v846
        %851 = vrot.lane.b32.xlu0 %v847, 120
        %v852 = vpop.permute.xlu0 %851
        %853 = vrot.lane.b32.xlu0 %v848, 120
        %v854 = vpop.permute.xlu0 %853
        %855 = vrot.lane.b32.xlu0 %v849, 120
        %v856 = vpop.permute.xlu0 %855
        %857 = vrot.lane.b32.xlu0 %v850, 120
        %v858 = vpop.permute.xlu0 %857
        %vm859 = vcmp.lt.s32.totalorder %v516, 120
        %v860 = vsel %vm859, %v856, %v858
        %v861 = vsel %vm859, %v854, %v856
        %v862 = vsel %vm859, %v852, %v854
        %v863 = vsel %vm859, %v858, %v852
        %864 = vrot.lane.b32.xlu0 %v847, 8
        %v865 = vpop.permute.xlu0 %864
        %866 = vrot.lane.b32.xlu0 %v848, 8
        %v867 = vpop.permute.xlu0 %866
        %868 = vrot.lane.b32.xlu0 %v849, 8
        %v869 = vpop.permute.xlu0 %868
        %870 = vrot.lane.b32.xlu0 %v850, 8
        %v871 = vpop.permute.xlu0 %870
        %vm872 = vcmp.lt.s32.totalorder %v516, 8
        %v873 = vsel %vm872, %v869, %v871
        %v874 = vsel %vm872, %v867, %v869
        %v875 = vsel %vm872, %v865, %v867
        %v876 = vsel %vm872, %v871, %v865
        %v877 = vand.u32 %v524, 8
        %v878 = vand.u32 %v525, 8
        %v879 = vand.u32 %v526, 8
        %v880 = vand.u32 %v527, 8
        %vm881 = vcmp.eq.s32.totalorder %v877, 0
        %vm882 = vcmp.eq.s32.totalorder %v878, 0
        %vm883 = vcmp.eq.s32.totalorder %v879, 0
        %vm884 = vcmp.eq.s32.totalorder %v880, 0
        %v885 = vsel %vm881, %v862, %v876
        %v886 = vsel %vm882, %v861, %v875
        %v887 = vsel %vm883, %v860, %v874
        %v888 = vsel %vm884, %v863, %v873
        %v889 = vadd.f32 %v847, %v885
        %v890 = vadd.f32 %v848, %v886
        %v891 = vadd.f32 %v849, %v887
        %v892 = vadd.f32 %v850, %v888
        %v893 = vmul.f32 %v889, 0.0625
        %v894 = vmul.f32 %v890, 0.0625
        %v895 = vmul.f32 %v891, 0.0625
        %v896 = vmul.f32 %v892, 0.0625
        %v897 = vsel %vm545, %v750, 0.0
        %v898 = vsel %vm546, %v749, 0.0
        %v899 = vsel %vm547, %v748, 0.0
        %v900 = vsel %vm548, %v747, 0.0
        %v901 = vsel %vm566, %v737, 0.0
        %v902 = vsel %vm567, %v736, 0.0
        %v903 = vsel %vm568, %v735, 0.0
        %v904 = vsel %vm569, %v738, 0.0
        %v905 = vld [vmem:[%s5] sm:$0xff]
        %v906 = vld [vmem:[%s6] sm:$0xff]
        %908 = vset.pattern.permute.xlu0 0
        %909 = vperm.xlu0 %908, %v906
        %v910 = vpop.permute.xlu0 %909
        %v913 = vsel %vm581, %v905, 0
        %915 = vmatprep.subr.mxu0 %v898
        %916 = vmatpush1.msra.mxu0 %v897
        %917 = vmatprep.subr.mxu0 %v654
        %918 = vmatpush1.msra.mxu0 %v652
        %919 = vmatprep.subr.mxu0 %v902
        %920 = vmatpush1.msra.mxu0 %v901
        %921 = vmatprep.subr.mxu0 0.0
        %922 = vmatpush1.msra.mxu0 0.0
        %923 = vmatprep.subr.mxu0 0.0
        %924 = vmatpush1.msra.mxu0 0.0
        %925 = vmatprep.subr.mxu0 0.0
        %926 = vmatpush1.msra.mxu0 0.0
        %927 = vmatprep.subr.mxu0 0.0
        %928 = vmatpush1.msra.mxu0 0.0
        %929 = vmatprep.subr.mxu0 0.0
        %930 = vmatpush1.msra.mxu0 0.0
        %931 = vmatprep.subr.mxu0 0.0
        %932 = vmatpush1.msra.mxu0 0.0
        %933 = vmatprep.subr.mxu0 0.0
        %934 = vmatpush1.msra.mxu0 0.0
        %935 = vmatprep.subr.mxu0 0.0
        %936 = vmatpush1.msra.mxu0 0.0
        %937 = vmatprep.subr.mxu0 0.0
        %938 = vmatpush1.msra.mxu0 0.0
        %939 = vmatprep.subr.mxu0 0.0
        %940 = vmatpush1.msra.mxu0 0.0
        %941 = vmatprep.subr.mxu0 0.0
        %942 = vmatpush1.msra.mxu0 0.0
        %943 = vmatprep.subr.mxu0 0.0
        %944 = vmatpush1.msra.mxu0 0.0
        %945 = vmatprep.subr.mxu0 0.0
        %946 = vmatpush1.msra.mxu0 0.0
        %947 = vmatprep.subr.mxu0 0.0
        %948 = vmatpush1.msra.mxu0 0.0
        %949 = vmatprep.subr.mxu0 0.0
        %950 = vmatpush1.msra.mxu0 0.0
        %951 = vmatprep.subr.mxu0 0.0
        %952 = vmatpush1.msra.mxu0 0.0
        %953 = vmatprep.subr.mxu0 0.0
        %954 = vmatpush1.msra.mxu0 0.0
        %955 = vmatprep.subr.mxu0 0.0
        %956 = vmatpush1.msra.mxu0 0.0
        %957 = vmatprep.subr.mxu0 0.0
        %958 = vmatpush1.msra.mxu0 0.0
        %959 = vmatprep.subr.mxu0 0.0
        %960 = vmatpush1.msra.mxu0 0.0
        %961 = vmatprep.subr.mxu0 0.0
        %962 = vmatpush1.msra.mxu0 0.0
        %963 = vmatprep.subr.mxu0 0.0
        %964 = vmatpush1.msra.mxu0 0.0
        %965 = vmatprep.subr.mxu0 0.0
        %966 = vmatpush1.msra.mxu0 0.0
        %967 = vmatprep.subr.mxu0 0.0
        %968 = vmatpush1.msra.mxu0 0.0
        %969 = vmatprep.subr.mxu0 0.0
        %970 = vmatpush1.msra.mxu0 0.0
        %971 = vmatprep.subr.mxu0 0.0
        %972 = vmatpush1.msra.mxu0 0.0
        %973 = vmatprep.subr.mxu0 0.0
        %974 = vmatpush1.msra.mxu0 0.0
        %975 = vmatprep.subr.mxu0 0.0
        %976 = vmatpush1.msra.mxu0 0.0
        %977 = vmatprep.subr.mxu0 0.0
        %978 = vmatpush1.msra.mxu0 0.0
        %979 = vmatprep.mubr.f32.mxu0 0.0
        %980 = vmatmul.mubr.f32.gmra.mrb[0].mxu0 %v913
        %v981 = vpop.f32.mrb[0].mxu0
        %v982 = vadd.f32 %v910, %v981
        %v983 = vpop.f32.mrb[0].mxu0
        %v984 = vadd.f32 %v910, %v983
        %985 = vdwg.mxu0
        %986 = vmatprep.subr.mxu0 %v900
        %987 = vmatpush1.msra.mxu0 %v899
        %988 = vmatprep.subr.mxu0 %v725
        %989 = vmatpush1.msra.mxu0 %v723
        %990 = vmatprep.subr.mxu0 %v904
        %991 = vmatpush1.msra.mxu0 %v903
        %992 = vmatprep.subr.mxu0 0.0
        %993 = vmatpush1.msra.mxu0 0.0
        %994 = vmatprep.subr.mxu0 0.0
        %995 = vmatpush1.msra.mxu0 0.0
        %996 = vmatprep.subr.mxu0 0.0
        %997 = vmatpush1.msra.mxu0 0.0
        %998 = vmatprep.subr.mxu0 0.0
        %999 = vmatpush1.msra.mxu0 0.0
        %1000 = vmatprep.subr.mxu0 0.0
        %1001 = vmatpush1.msra.mxu0 0.0
        %1002 = vmatprep.subr.mxu0 0.0
        %1003 = vmatpush1.msra.mxu0 0.0
        %1004 = vmatprep.subr.mxu0 0.0
        %1005 = vmatpush1.msra.mxu0 0.0
        %1006 = vmatprep.subr.mxu0 0.0
        %1007 = vmatpush1.msra.mxu0 0.0
        %1008 = vmatprep.subr.mxu0 0.0
        %1009 = vmatpush1.msra.mxu0 0.0
        %1010 = vmatprep.subr.mxu0 0.0
        %1011 = vmatpush1.msra.mxu0 0.0
        %1012 = vmatprep.subr.mxu0 0.0
        %1013 = vmatpush1.msra.mxu0 0.0
        %1014 = vmatprep.subr.mxu0 0.0
        %1015 = vmatpush1.msra.mxu0 0.0
        %1016 = vmatprep.subr.mxu0 0.0
        %1017 = vmatpush1.msra.mxu0 0.0
        %1018 = vmatprep.subr.mxu0 0.0
        %1019 = vmatpush1.msra.mxu0 0.0
        %1020 = vmatprep.subr.mxu0 0.0
        %1021 = vmatpush1.msra.mxu0 0.0
        %1022 = vmatprep.subr.mxu0 0.0
        %1023 = vmatpush1.msra.mxu0 0.0
        %1024 = vmatprep.subr.mxu0 0.0
        %1025 = vmatpush1.msra.mxu0 0.0
        %1026 = vmatprep.subr.mxu0 0.0
        %1027 = vmatpush1.msra.mxu0 0.0
        %1028 = vmatprep.subr.mxu0 0.0
        %1029 = vmatpush1.msra.mxu0 0.0
        %1030 = vmatprep.subr.mxu0 0.0
        %1031 = vmatpush1.msra.mxu0 0.0
        %1032 = vmatprep.subr.mxu0 0.0
        %1033 = vmatpush1.msra.mxu0 0.0
        %1034 = vmatprep.subr.mxu0 0.0
        %1035 = vmatpush1.msra.mxu0 0.0
        %1036 = vmatprep.subr.mxu0 0.0
        %1037 = vmatpush1.msra.mxu0 0.0
        %1038 = vmatprep.subr.mxu0 0.0
        %1039 = vmatpush1.msra.mxu0 0.0
        %1040 = vmatprep.subr.mxu0 0.0
        %1041 = vmatpush1.msra.mxu0 0.0
        %1042 = vmatprep.subr.mxu0 0.0
        %1043 = vmatpush1.msra.mxu0 0.0
        %1044 = vmatprep.subr.mxu0 0.0
        %1045 = vmatpush1.msra.mxu0 0.0
        %1046 = vmatprep.subr.mxu0 0.0
        %1047 = vmatpush1.msra.mxu0 0.0
        %1048 = vmatprep.subr.mxu0 0.0
        %1049 = vmatpush1.msra.mxu0 0.0
        %1050 = vmatprep.mubr.f32.mxu0 0.0
        %1051 = vmatmul.mubr.f32.gmra.mrb[0].mxu0 %v913
        %v1052 = vpop.f32.mrb[0].mxu0
        %v1053 = vadd.f32 %v910, %v1052
        %v1054 = vpop.f32.mrb[0].mxu0
        %v1055 = vadd.f32 %v910, %v1054
        %1056 = vdwg.mxu0
        %v1057 = vsub.f32 0.0, %v982
        %v1058 = vsub.f32 0.0, %v984
        %v1059 = vsub.f32 0.0, %v1053
        %v1060 = vsub.f32 0.0, %v1055
        %v1061 = vmul.f32 %v1057, 1.442695
        %v1062 = vpow.pop %v1061
        %v1063 = vmul.f32 %v1058, 1.442695
        %v1064 = vpow.pop %v1063
        %v1065 = vmul.f32 %v1059, 1.442695
        %v1066 = vpow.pop %v1065
        %v1067 = vmul.f32 %v1060, 1.442695
        %v1068 = vpow.pop %v1067
        %v1069 = vadd.f32 %v1062, 1.0
        %v1070 = vadd.f32 %v1064, 1.0
        %v1071 = vadd.f32 %v1066, 1.0
        %v1072 = vadd.f32 %v1068, 1.0
        %v1073 = vrcp.pop %v1069
        %v1074 = vmul.f32 1.0, %v1073
        %v1075 = vrcp.pop %v1070
        %v1076 = vmul.f32 1.0, %v1075
        %v1077 = vrcp.pop %v1071
        %v1078 = vmul.f32 1.0, %v1077
        %v1079 = vrcp.pop %v1072
        %v1080 = vmul.f32 1.0, %v1079
        %1081 = vrot.lane.b32.xlu0 %v511, 16
        %v1082 = vpop.permute.xlu0 %1081
        %1083 = vrot.lane.b32.xlu0 %v512, 16
        %v1084 = vpop.permute.xlu0 %1083
        %1085 = vrot.lane.b32.xlu0 %v513, 16
        %v1086 = vpop.permute.xlu0 %1085
        %1087 = vrot.lane.b32.xlu0 %v514, 16
        %v1088 = vpop.permute.xlu0 %1087
        %vm1089 = vcmp.lt.s32.totalorder %v516, 16
        %v1090 = vsel %vm1089, %v1086, %v1088
        %v1091 = vsel %vm1089, %v1084, %v1086
        %v1092 = vsel %vm1089, %v1082, %v1084
        %v1093 = vsel %vm1089, %v1088, %v1082
        %vm1094 = vcmp.ge.s32.totalorder %v528, 1
        %vm1095 = vcmp.ge.s32.totalorder %v529, 1
        %vm1096 = vcmp.ge.s32.totalorder %v530, 1
        %vm1097 = vcmp.ge.s32.totalorder %v531, 1
        %v1098 = vsel %vm1094, %v1093, 0.0
        %v1099 = vsel %vm1095, %v1092, 0.0
        %v1100 = vsel %vm1096, %v1091, 0.0
        %v1101 = vsel %vm1097, %v1090, 0.0
        %1102 = vrot.lane.b32.xlu0 %v511, 112
        %v1103 = vpop.permute.xlu0 %1102
        %1104 = vrot.lane.b32.xlu0 %v512, 112
        %v1105 = vpop.permute.xlu0 %1104
        %1106 = vrot.lane.b32.xlu0 %v513, 112
        %v1107 = vpop.permute.xlu0 %1106
        %1108 = vrot.lane.b32.xlu0 %v514, 112
        %v1109 = vpop.permute.xlu0 %1108
        %vm1110 = vcmp.lt.s32.totalorder %v516, 112
        %v1111 = vsel %vm1110, %v1107, %v1109
        %v1112 = vsel %vm1110, %v1105, %v1107
        %v1113 = vsel %vm1110, %v1103, %v1105
        %v1114 = vsel %vm1110, %v1109, %v1103
        %vm1115 = vcmp.lt.s32.totalorder %v528, 15
        %vm1116 = vcmp.lt.s32.totalorder %v529, 15
        %vm1117 = vcmp.lt.s32.totalorder %v530, 15
        %vm1118 = vcmp.lt.s32.totalorder %v531, 15
        %v1119 = vsel %vm1115, %v1113, 0.0
        %v1120 = vsel %vm1116, %v1112, 0.0
        %v1121 = vsel %vm1117, %v1111, 0.0
        %v1122 = vsel %vm1118, %v1114, 0.0
        %v1123 = vld [vmem:[%s3] sm:$0xff]
        %v1124 = vld [vmem:[%s4] sm:$0xff]
        %1126 = vset.pattern.permute.xlu0 0
        %1127 = vperm.xlu0 %1126, %v1124
        %v1128 = vpop.permute.xlu0 %1127
        %v1131 = vsel %vm581, %v1123, 0
        %1133 = vmatprep.subr.mxu0 %v1099
        %1134 = vmatpush1.msra.mxu0 %v1098
        %1135 = vmatprep.subr.mxu0 %v512
        %1136 = vmatpush1.msra.mxu0 %v511
        %1137 = vmatprep.subr.mxu0 %v1120
        %1138 = vmatpush1.msra.mxu0 %v1119
        %1139 = vmatprep.subr.mxu0 0.0
        %1140 = vmatpush1.msra.mxu0 0.0
        %1141 = vmatprep.subr.mxu0 0.0
        %1142 = vmatpush1.msra.mxu0 0.0
        %1143 = vmatprep.subr.mxu0 0.0
        %1144 = vmatpush1.msra.mxu0 0.0
        %1145 = vmatprep.subr.mxu0 0.0
        %1146 = vmatpush1.msra.mxu0 0.0
        %1147 = vmatprep.subr.mxu0 0.0
        %1148 = vmatpush1.msra.mxu0 0.0
        %1149 = vmatprep.subr.mxu0 0.0
        %1150 = vmatpush1.msra.mxu0 0.0
        %1151 = vmatprep.subr.mxu0 0.0
        %1152 = vmatpush1.msra.mxu0 0.0
        %1153 = vmatprep.subr.mxu0 0.0
        %1154 = vmatpush1.msra.mxu0 0.0
        %1155 = vmatprep.subr.mxu0 0.0
        %1156 = vmatpush1.msra.mxu0 0.0
        %1157 = vmatprep.subr.mxu0 0.0
        %1158 = vmatpush1.msra.mxu0 0.0
        %1159 = vmatprep.subr.mxu0 0.0
        %1160 = vmatpush1.msra.mxu0 0.0
        %1161 = vmatprep.subr.mxu0 0.0
        %1162 = vmatpush1.msra.mxu0 0.0
        %1163 = vmatprep.subr.mxu0 0.0
        %1164 = vmatpush1.msra.mxu0 0.0
        %1165 = vmatprep.subr.mxu0 0.0
        %1166 = vmatpush1.msra.mxu0 0.0
        %1167 = vmatprep.subr.mxu0 0.0
        %1168 = vmatpush1.msra.mxu0 0.0
        %1169 = vmatprep.subr.mxu0 0.0
        %1170 = vmatpush1.msra.mxu0 0.0
        %1171 = vmatprep.subr.mxu0 0.0
        %1172 = vmatpush1.msra.mxu0 0.0
        %1173 = vmatprep.subr.mxu0 0.0
        %1174 = vmatpush1.msra.mxu0 0.0
        %1175 = vmatprep.subr.mxu0 0.0
        %1176 = vmatpush1.msra.mxu0 0.0
        %1177 = vmatprep.subr.mxu0 0.0
        %1178 = vmatpush1.msra.mxu0 0.0
        %1179 = vmatprep.subr.mxu0 0.0
        %1180 = vmatpush1.msra.mxu0 0.0
        %1181 = vmatprep.subr.mxu0 0.0
        %1182 = vmatpush1.msra.mxu0 0.0
        %1183 = vmatprep.subr.mxu0 0.0
        %1184 = vmatpush1.msra.mxu0 0.0
        %1185 = vmatprep.subr.mxu0 0.0
        %1186 = vmatpush1.msra.mxu0 0.0
        %1187 = vmatprep.subr.mxu0 0.0
        %1188 = vmatpush1.msra.mxu0 0.0
        %1189 = vmatprep.subr.mxu0 0.0
        %1190 = vmatpush1.msra.mxu0 0.0
        %1191 = vmatprep.subr.mxu0 0.0
        %1192 = vmatpush1.msra.mxu0 0.0
        %1193 = vmatprep.subr.mxu0 0.0
        %1194 = vmatpush1.msra.mxu0 0.0
        %1195 = vmatprep.subr.mxu0 0.0
        %1196 = vmatpush1.msra.mxu0 0.0
        %1197 = vmatprep.mubr.f32.mxu0 0.0
        %1198 = vmatmul.mubr.f32.gmra.mrb[0].mxu0 %v1131
        %v1199 = vpop.f32.mrb[0].mxu0
        %v1200 = vadd.f32 %v1128, %v1199
        %v1201 = vpop.f32.mrb[0].mxu0
        %v1202 = vadd.f32 %v1128, %v1201
        %1203 = vdwg.mxu0
        %1204 = vmatprep.subr.mxu0 %v1101
        %1205 = vmatpush1.msra.mxu0 %v1100
        %1206 = vmatprep.subr.mxu0 %v514
        %1207 = vmatpush1.msra.mxu0 %v513
        %1208 = vmatprep.subr.mxu0 %v1122
        %1209 = vmatpush1.msra.mxu0 %v1121
        %1210 = vmatprep.subr.mxu0 0.0
        %1211 = vmatpush1.msra.mxu0 0.0
        %1212 = vmatprep.subr.mxu0 0.0
        %1213 = vmatpush1.msra.mxu0 0.0
        %1214 = vmatprep.subr.mxu0 0.0
        %1215 = vmatpush1.msra.mxu0 0.0
        %1216 = vmatprep.subr.mxu0 0.0
        %1217 = vmatpush1.msra.mxu0 0.0
        %1218 = vmatprep.subr.mxu0 0.0
        %1219 = vmatpush1.msra.mxu0 0.0
        %1220 = vmatprep.subr.mxu0 0.0
        %1221 = vmatpush1.msra.mxu0 0.0
        %1222 = vmatprep.subr.mxu0 0.0
        %1223 = vmatpush1.msra.mxu0 0.0
        %1224 = vmatprep.subr.mxu0 0.0
        %1225 = vmatpush1.msra.mxu0 0.0
        %1226 = vmatprep.subr.mxu0 0.0
        %1227 = vmatpush1.msra.mxu0 0.0
        %1228 = vmatprep.subr.mxu0 0.0
        %1229 = vmatpush1.msra.mxu0 0.0
        %1230 = vmatprep.subr.mxu0 0.0
        %1231 = vmatpush1.msra.mxu0 0.0
        %1232 = vmatprep.subr.mxu0 0.0
        %1233 = vmatpush1.msra.mxu0 0.0
        %1234 = vmatprep.subr.mxu0 0.0
        %1235 = vmatpush1.msra.mxu0 0.0
        %1236 = vmatprep.subr.mxu0 0.0
        %1237 = vmatpush1.msra.mxu0 0.0
        %1238 = vmatprep.subr.mxu0 0.0
        %1239 = vmatpush1.msra.mxu0 0.0
        %1240 = vmatprep.subr.mxu0 0.0
        %1241 = vmatpush1.msra.mxu0 0.0
        %1242 = vmatprep.subr.mxu0 0.0
        %1243 = vmatpush1.msra.mxu0 0.0
        %1244 = vmatprep.subr.mxu0 0.0
        %1245 = vmatpush1.msra.mxu0 0.0
        %1246 = vmatprep.subr.mxu0 0.0
        %1247 = vmatpush1.msra.mxu0 0.0
        %1248 = vmatprep.subr.mxu0 0.0
        %1249 = vmatpush1.msra.mxu0 0.0
        %1250 = vmatprep.subr.mxu0 0.0
        %1251 = vmatpush1.msra.mxu0 0.0
        %1252 = vmatprep.subr.mxu0 0.0
        %1253 = vmatpush1.msra.mxu0 0.0
        %1254 = vmatprep.subr.mxu0 0.0
        %1255 = vmatpush1.msra.mxu0 0.0
        %1256 = vmatprep.subr.mxu0 0.0
        %1257 = vmatpush1.msra.mxu0 0.0
        %1258 = vmatprep.subr.mxu0 0.0
        %1259 = vmatpush1.msra.mxu0 0.0
        %1260 = vmatprep.subr.mxu0 0.0
        %1261 = vmatpush1.msra.mxu0 0.0
        %1262 = vmatprep.subr.mxu0 0.0
        %1263 = vmatpush1.msra.mxu0 0.0
        %1264 = vmatprep.subr.mxu0 0.0
        %1265 = vmatpush1.msra.mxu0 0.0
        %1266 = vmatprep.subr.mxu0 0.0
        %1267 = vmatpush1.msra.mxu0 0.0
        %1268 = vmatprep.mubr.f32.mxu0 0.0
        %1269 = vmatmul.mubr.f32.gmra.mrb[0].mxu0 %v1131
        %v1270 = vpop.f32.mrb[0].mxu0
        %v1271 = vadd.f32 %v1128, %v1270
        %v1272 = vpop.f32.mrb[0].mxu0
        %v1273 = vadd.f32 %v1128, %v1272
        %1274 = vdwg.mxu0
        %1275 = vrot.lane.b32.xlu0 %v1200, 112
        %v1276 = vpop.permute.xlu0 %1275
        %1277 = vrot.lane.b32.xlu0 %v1202, 112
        %v1278 = vpop.permute.xlu0 %1277
        %1279 = vrot.lane.b32.xlu0 %v1271, 112
        %v1280 = vpop.permute.xlu0 %1279
        %1281 = vrot.lane.b32.xlu0 %v1273, 112
        %v1282 = vpop.permute.xlu0 %1281
        %v1283 = vsel %vm1110, %v1280, %v1282
        %v1284 = vsel %vm1110, %v1278, %v1280
        %v1285 = vsel %vm1110, %v1276, %v1278
        %v1286 = vsel %vm1110, %v1282, %v1276
        %1287 = vrot.lane.b32.xlu0 %v1200, 16
        %v1288 = vpop.permute.xlu0 %1287
        %1289 = vrot.lane.b32.xlu0 %v1202, 16
        %v1290 = vpop.permute.xlu0 %1289
        %1291 = vrot.lane.b32.xlu0 %v1271, 16
        %v1292 = vpop.permute.xlu0 %1291
        %1293 = vrot.lane.b32.xlu0 %v1273, 16
        %v1294 = vpop.permute.xlu0 %1293
        %v1295 = vsel %vm1089, %v1292, %v1294
        %v1296 = vsel %vm1089, %v1290, %v1292
        %v1297 = vsel %vm1089, %v1288, %v1290
        %v1298 = vsel %vm1089, %v1294, %v1288
        %v1299 = vand.u32 %v528, 1
        %v1300 = vand.u32 %v529, 1
        %v1301 = vand.u32 %v530, 1
        %v1302 = vand.u32 %v531, 1
        %vm1303 = vcmp.eq.s32.totalorder %v1299, 0
        %vm1304 = vcmp.eq.s32.totalorder %v1300, 0
        %vm1305 = vcmp.eq.s32.totalorder %v1301, 0
        %vm1306 = vcmp.eq.s32.totalorder %v1302, 0
        %v1307 = vsel %vm1303, %v1285, %v1298
        %v1308 = vsel %vm1304, %v1284, %v1297
        %v1309 = vsel %vm1305, %v1283, %v1296
        %v1310 = vsel %vm1306, %v1286, %v1295
        %v1311 = vadd.f32 %v1200, %v1307
        %v1312 = vadd.f32 %v1202, %v1308
        %v1313 = vadd.f32 %v1271, %v1309
        %v1314 = vadd.f32 %v1273, %v1310
        %1315 = vrot.lane.b32.xlu0 %v1311, 96
        %v1316 = vpop.permute.xlu0 %1315
        %1317 = vrot.lane.b32.xlu0 %v1312, 96
        %v1318 = vpop.permute.xlu0 %1317
        %1319 = vrot.lane.b32.xlu0 %v1313, 96
        %v1320 = vpop.permute.xlu0 %1319
        %1321 = vrot.lane.b32.xlu0 %v1314, 96
        %v1322 = vpop.permute.xlu0 %1321
        %vm1323 = vcmp.lt.s32.totalorder %v516, 96
        %v1324 = vsel %vm1323, %v1320, %v1322
        %v1325 = vsel %vm1323, %v1318, %v1320
        %v1326 = vsel %vm1323, %v1316, %v1318
        %v1327 = vsel %vm1323, %v1322, %v1316
        %1328 = vrot.lane.b32.xlu0 %v1311, 32
        %v1329 = vpop.permute.xlu0 %1328
        %1330 = vrot.lane.b32.xlu0 %v1312, 32
        %v1331 = vpop.permute.xlu0 %1330
        %1332 = vrot.lane.b32.xlu0 %v1313, 32
        %v1333 = vpop.permute.xlu0 %1332
        %1334 = vrot.lane.b32.xlu0 %v1314, 32
        %v1335 = vpop.permute.xlu0 %1334
        %vm1336 = vcmp.lt.s32.totalorder %v516, 32
        %v1337 = vsel %vm1336, %v1333, %v1335
        %v1338 = vsel %vm1336, %v1331, %v1333
        %v1339 = vsel %vm1336, %v1329, %v1331
        %v1340 = vsel %vm1336, %v1335, %v1329
        %v1341 = vand.u32 %v528, 2
        %v1342 = vand.u32 %v529, 2
        %v1343 = vand.u32 %v530, 2
        %v1344 = vand.u32 %v531, 2
        %vm1345 = vcmp.eq.s32.totalorder %v1341, 0
        %vm1346 = vcmp.eq.s32.totalorder %v1342, 0
        %vm1347 = vcmp.eq.s32.totalorder %v1343, 0
        %vm1348 = vcmp.eq.s32.totalorder %v1344, 0
        %v1349 = vsel %vm1345, %v1326, %v1340
        %v1350 = vsel %vm1346, %v1325, %v1339
        %v1351 = vsel %vm1347, %v1324, %v1338
        %v1352 = vsel %vm1348, %v1327, %v1337
        %v1353 = vadd.f32 %v1311, %v1349
        %v1354 = vadd.f32 %v1312, %v1350
        %v1355 = vadd.f32 %v1313, %v1351
        %v1356 = vadd.f32 %v1314, %v1352
        %1357 = vrot.lane.b32.xlu0 %v1353, 64
        %v1358 = vpop.permute.xlu0 %1357
        %1359 = vrot.lane.b32.xlu0 %v1354, 64
        %v1360 = vpop.permute.xlu0 %1359
        %1361 = vrot.lane.b32.xlu0 %v1355, 64
        %v1362 = vpop.permute.xlu0 %1361
        %1363 = vrot.lane.b32.xlu0 %v1356, 64
        %v1364 = vpop.permute.xlu0 %1363
        %vm1365 = vcmp.lt.s32.totalorder %v516, 64
        %v1366 = vsel %vm1365, %v1362, %v1364
        %v1367 = vsel %vm1365, %v1360, %v1362
        %v1368 = vsel %vm1365, %v1358, %v1360
        %v1369 = vsel %vm1365, %v1364, %v1358
        %v1370 = vand.u32 %v528, 4
        %v1371 = vand.u32 %v529, 4
        %v1372 = vand.u32 %v530, 4
        %v1373 = vand.u32 %v531, 4
        %vm1374 = vcmp.eq.s32.totalorder %v1370, 0
        %vm1375 = vcmp.eq.s32.totalorder %v1371, 0
        %vm1376 = vcmp.eq.s32.totalorder %v1372, 0
        %vm1377 = vcmp.eq.s32.totalorder %v1373, 0
        %v1378 = vsel %vm1374, %v1368, %v1369
        %v1379 = vsel %vm1375, %v1367, %v1368
        %v1380 = vsel %vm1376, %v1366, %v1367
        %v1381 = vsel %vm1377, %v1369, %v1366
        %v1382 = vadd.f32 %v1353, %v1378
        %v1383 = vadd.f32 %v1354, %v1379
        %v1384 = vadd.f32 %v1355, %v1380
        %v1385 = vadd.f32 %v1356, %v1381
        %v1386 = vand.u32 %v528, 8
        %v1387 = vand.u32 %v529, 8
        %v1388 = vand.u32 %v530, 8
        %v1389 = vand.u32 %v531, 8
        %vm1390 = vcmp.eq.s32.totalorder %v1386, 0
        %vm1391 = vcmp.eq.s32.totalorder %v1387, 0
        %vm1392 = vcmp.eq.s32.totalorder %v1388, 0
        %vm1393 = vcmp.eq.s32.totalorder %v1389, 0
        %v1394 = vsel %vm1390, %v1383, %v1385
        %v1395 = vsel %vm1391, %v1384, %v1382
        %v1396 = vsel %vm1392, %v1385, %v1383
        %v1397 = vsel %vm1393, %v1382, %v1384
        %v1398 = vadd.f32 %v1382, %v1394
        %v1399 = vadd.f32 %v1383, %v1395
        %v1400 = vadd.f32 %v1384, %v1396
        %v1401 = vadd.f32 %v1385, %v1397
        %v1402 = vmul.f32 %v1398, 0.0625
        %v1403 = vmul.f32 %v1399, 0.0625
        %v1404 = vmul.f32 %v1400, 0.0625
        %v1405 = vmul.f32 %v1401, 0.0625
        %v1406 = vadd.f32 %v893, %v1402
        %v1407 = vadd.f32 %v894, %v1403
        %v1408 = vadd.f32 %v895, %v1404
        %v1409 = vadd.f32 %v896, %v1405
        %v1410 = vsel %vm1094, %v1298, 0.0
        %v1411 = vsel %vm1095, %v1297, 0.0
        %v1412 = vsel %vm1096, %v1296, 0.0
        %v1413 = vsel %vm1097, %v1295, 0.0
        %v1414 = vsel %vm1115, %v1285, 0.0
        %v1415 = vsel %vm1116, %v1284, 0.0
        %v1416 = vsel %vm1117, %v1283, 0.0
        %v1417 = vsel %vm1118, %v1286, 0.0
        %v1418 = vld [vmem:[%s7] sm:$0xff]
        %v1419 = vld [vmem:[%s8] sm:$0xff]
        %1421 = vset.pattern.permute.xlu0 0
        %1422 = vperm.xlu0 %1421, %v1419
        %v1423 = vpop.permute.xlu0 %1422
        %v1426 = vsel %vm581, %v1418, 0
        %1428 = vmatprep.subr.mxu0 %v1411
        %1429 = vmatpush1.msra.mxu0 %v1410
        %1430 = vmatprep.subr.mxu0 %v1202
        %1431 = vmatpush1.msra.mxu0 %v1200
        %1432 = vmatprep.subr.mxu0 %v1415
        %1433 = vmatpush1.msra.mxu0 %v1414
        %1434 = vmatprep.subr.mxu0 0.0
        %1435 = vmatpush1.msra.mxu0 0.0
        %1436 = vmatprep.subr.mxu0 0.0
        %1437 = vmatpush1.msra.mxu0 0.0
        %1438 = vmatprep.subr.mxu0 0.0
        %1439 = vmatpush1.msra.mxu0 0.0
        %1440 = vmatprep.subr.mxu0 0.0
        %1441 = vmatpush1.msra.mxu0 0.0
        %1442 = vmatprep.subr.mxu0 0.0
        %1443 = vmatpush1.msra.mxu0 0.0
        %1444 = vmatprep.subr.mxu0 0.0
        %1445 = vmatpush1.msra.mxu0 0.0
        %1446 = vmatprep.subr.mxu0 0.0
        %1447 = vmatpush1.msra.mxu0 0.0
        %1448 = vmatprep.subr.mxu0 0.0
        %1449 = vmatpush1.msra.mxu0 0.0
        %1450 = vmatprep.subr.mxu0 0.0
        %1451 = vmatpush1.msra.mxu0 0.0
        %1452 = vmatprep.subr.mxu0 0.0
        %1453 = vmatpush1.msra.mxu0 0.0
        %1454 = vmatprep.subr.mxu0 0.0
        %1455 = vmatpush1.msra.mxu0 0.0
        %1456 = vmatprep.subr.mxu0 0.0
        %1457 = vmatpush1.msra.mxu0 0.0
        %1458 = vmatprep.subr.mxu0 0.0
        %1459 = vmatpush1.msra.mxu0 0.0
        %1460 = vmatprep.subr.mxu0 0.0
        %1461 = vmatpush1.msra.mxu0 0.0
        %1462 = vmatprep.subr.mxu0 0.0
        %1463 = vmatpush1.msra.mxu0 0.0
        %1464 = vmatprep.subr.mxu0 0.0
        %1465 = vmatpush1.msra.mxu0 0.0
        %1466 = vmatprep.subr.mxu0 0.0
        %1467 = vmatpush1.msra.mxu0 0.0
        %1468 = vmatprep.subr.mxu0 0.0
        %1469 = vmatpush1.msra.mxu0 0.0
        %1470 = vmatprep.subr.mxu0 0.0
        %1471 = vmatpush1.msra.mxu0 0.0
        %1472 = vmatprep.subr.mxu0 0.0
        %1473 = vmatpush1.msra.mxu0 0.0
        %1474 = vmatprep.subr.mxu0 0.0
        %1475 = vmatpush1.msra.mxu0 0.0
        %1476 = vmatprep.subr.mxu0 0.0
        %1477 = vmatpush1.msra.mxu0 0.0
        %1478 = vmatprep.subr.mxu0 0.0
        %1479 = vmatpush1.msra.mxu0 0.0
        %1480 = vmatprep.subr.mxu0 0.0
        %1481 = vmatpush1.msra.mxu0 0.0
        %1482 = vmatprep.subr.mxu0 0.0
        %1483 = vmatpush1.msra.mxu0 0.0
        %1484 = vmatprep.subr.mxu0 0.0
        %1485 = vmatpush1.msra.mxu0 0.0
        %1486 = vmatprep.subr.mxu0 0.0
        %1487 = vmatpush1.msra.mxu0 0.0
        %1488 = vmatprep.subr.mxu0 0.0
        %1489 = vmatpush1.msra.mxu0 0.0
        %1490 = vmatprep.subr.mxu0 0.0
        %1491 = vmatpush1.msra.mxu0 0.0
        %1492 = vmatprep.mubr.f32.mxu0 0.0
        %1493 = vmatmul.mubr.f32.gmra.mrb[0].mxu0 %v1426
        %v1494 = vpop.f32.mrb[0].mxu0
        %v1495 = vadd.f32 %v1423, %v1494
        %v1496 = vpop.f32.mrb[0].mxu0
        %v1497 = vadd.f32 %v1423, %v1496
        %1498 = vdwg.mxu0
        %1499 = vmatprep.subr.mxu0 %v1413
        %1500 = vmatpush1.msra.mxu0 %v1412
        %1501 = vmatprep.subr.mxu0 %v1273
        %1502 = vmatpush1.msra.mxu0 %v1271
        %1503 = vmatprep.subr.mxu0 %v1417
        %1504 = vmatpush1.msra.mxu0 %v1416
        %1505 = vmatprep.subr.mxu0 0.0
        %1506 = vmatpush1.msra.mxu0 0.0
        %1507 = vmatprep.subr.mxu0 0.0
        %1508 = vmatpush1.msra.mxu0 0.0
        %1509 = vmatprep.subr.mxu0 0.0
        %1510 = vmatpush1.msra.mxu0 0.0
        %1511 = vmatprep.subr.mxu0 0.0
        %1512 = vmatpush1.msra.mxu0 0.0
        %1513 = vmatprep.subr.mxu0 0.0
        %1514 = vmatpush1.msra.mxu0 0.0
        %1515 = vmatprep.subr.mxu0 0.0
        %1516 = vmatpush1.msra.mxu0 0.0
        %1517 = vmatprep.subr.mxu0 0.0
        %1518 = vmatpush1.msra.mxu0 0.0
        %1519 = vmatprep.subr.mxu0 0.0
        %1520 = vmatpush1.msra.mxu0 0.0
        %1521 = vmatprep.subr.mxu0 0.0
        %1522 = vmatpush1.msra.mxu0 0.0
        %1523 = vmatprep.subr.mxu0 0.0
        %1524 = vmatpush1.msra.mxu0 0.0
        %1525 = vmatprep.subr.mxu0 0.0
        %1526 = vmatpush1.msra.mxu0 0.0
        %1527 = vmatprep.subr.mxu0 0.0
        %1528 = vmatpush1.msra.mxu0 0.0
        %1529 = vmatprep.subr.mxu0 0.0
        %1530 = vmatpush1.msra.mxu0 0.0
        %1531 = vmatprep.subr.mxu0 0.0
        %1532 = vmatpush1.msra.mxu0 0.0
        %1533 = vmatprep.subr.mxu0 0.0
        %1534 = vmatpush1.msra.mxu0 0.0
        %1535 = vmatprep.subr.mxu0 0.0
        %1536 = vmatpush1.msra.mxu0 0.0
        %1537 = vmatprep.subr.mxu0 0.0
        %1538 = vmatpush1.msra.mxu0 0.0
        %1539 = vmatprep.subr.mxu0 0.0
        %1540 = vmatpush1.msra.mxu0 0.0
        %1541 = vmatprep.subr.mxu0 0.0
        %1542 = vmatpush1.msra.mxu0 0.0
        %1543 = vmatprep.subr.mxu0 0.0
        %1544 = vmatpush1.msra.mxu0 0.0
        %1545 = vmatprep.subr.mxu0 0.0
        %1546 = vmatpush1.msra.mxu0 0.0
        %1547 = vmatprep.subr.mxu0 0.0
        %1548 = vmatpush1.msra.mxu0 0.0
        %1549 = vmatprep.subr.mxu0 0.0
        %1550 = vmatpush1.msra.mxu0 0.0
        %1551 = vmatprep.subr.mxu0 0.0
        %1552 = vmatpush1.msra.mxu0 0.0
        %1553 = vmatprep.subr.mxu0 0.0
        %1554 = vmatpush1.msra.mxu0 0.0
        %1555 = vmatprep.subr.mxu0 0.0
        %1556 = vmatpush1.msra.mxu0 0.0
        %1557 = vmatprep.subr.mxu0 0.0
        %1558 = vmatpush1.msra.mxu0 0.0
        %1559 = vmatprep.subr.mxu0 0.0
        %1560 = vmatpush1.msra.mxu0 0.0
        %1561 = vmatprep.subr.mxu0 0.0
        %1562 = vmatpush1.msra.mxu0 0.0
        %1563 = vmatprep.mubr.f32.mxu0 0.0
        %1564 = vmatmul.mubr.f32.gmra.mrb[0].mxu0 %v1426
        %v1565 = vpop.f32.mrb[0].mxu0
        %v1566 = vadd.f32 %v1423, %v1565
        %v1567 = vpop.f32.mrb[0].mxu0
        %v1568 = vadd.f32 %v1423, %v1567
        %1569 = vdwg.mxu0
        %v1570 = vsub.f32 0.0, %v1495
        %v1571 = vsub.f32 0.0, %v1497
        %v1572 = vsub.f32 0.0, %v1566
        %v1573 = vsub.f32 0.0, %v1568
        %v1574 = vmul.f32 %v1570, 1.442695
        %v1575 = vpow.pop %v1574
        %v1576 = vmul.f32 %v1571, 1.442695
        %v1577 = vpow.pop %v1576
        %v1578 = vmul.f32 %v1572, 1.442695
        %v1579 = vpow.pop %v1578
        %v1580 = vmul.f32 %v1573, 1.442695
        %v1581 = vpow.pop %v1580
        %v1582 = vadd.f32 %v1575, 1.0
        %v1583 = vadd.f32 %v1577, 1.0
        %v1584 = vadd.f32 %v1579, 1.0
        %v1585 = vadd.f32 %v1581, 1.0
        %v1586 = vrcp.pop %v1582
        %v1587 = vmul.f32 1.0, %v1586
        %v1588 = vrcp.pop %v1583
        %v1589 = vmul.f32 1.0, %v1588
        %v1590 = vrcp.pop %v1584
        %v1591 = vmul.f32 1.0, %v1590
        %v1592 = vrcp.pop %v1585
        %v1593 = vmul.f32 1.0, %v1592
        %v1594 = vadd.f32 %v1074, %v1587
        %v1595 = vadd.f32 %v1076, %v1589
        %v1596 = vadd.f32 %v1078, %v1591
        %v1597 = vadd.f32 %v1080, %v1593
        %v1598 = vld [vmem:[%s9] sm:$0xff]
        %1599 = vrot.lane.b32.xlu0 %v1406, 17
        %v1600 = vpop.permute.xlu0 %1599
        %1601 = vrot.lane.b32.xlu0 %v1407, 17
        %v1602 = vpop.permute.xlu0 %1601
        %1603 = vrot.lane.b32.xlu0 %v1408, 17
        %v1604 = vpop.permute.xlu0 %1603
        %1605 = vrot.lane.b32.xlu0 %v1409, 17
        %v1606 = vpop.permute.xlu0 %1605
        %vm1607 = vcmp.lt.s32.totalorder %v516, 17
        %v1608 = vsel %vm1607, %v1604, %v1606
        %v1609 = vsel %vm1607, %v1602, %v1604
        %v1610 = vsel %vm1607, %v1600, %v1602
        %v1611 = vsel %vm1607, %v1606, %v1600
        %vm1612 = vmand %vm545, %vm1094
        %vm1613 = vmand %vm546, %vm1095
        %vm1614 = vmand %vm547, %vm1096
        %vm1615 = vmand %vm548, %vm1097
        %v1616 = vsel %vm1612, %v1611, 0.0
        %v1617 = vsel %vm1613, %v1610, 0.0
        %v1618 = vsel %vm1614, %v1609, 0.0
        %v1619 = vsel %vm1615, %v1608, 0.0
        %1621 = vset.pattern.permute.xlu0 0
        %1622 = vperm.xlu0 %1621, %v1598
        %v1623 = vpop.permute.xlu0 %1622
        %v1625 = vmul.f32 %v1623, %v1616
        %v1626 = vmul.f32 %v1623, %v1617
        %v1627 = vmul.f32 %v1623, %v1618
        %v1628 = vmul.f32 %v1623, %v1619
        %v1629 = vadd.f32 %v1625, 0.0
        %v1630 = vadd.f32 %v1626, 0.0
        %v1631 = vadd.f32 %v1627, 0.0
        %v1632 = vadd.f32 %v1628, 0.0
        %1633 = vrot.lane.b32.xlu0 %v1406, 16
        %v1634 = vpop.permute.xlu0 %1633
        %1635 = vrot.lane.b32.xlu0 %v1407, 16
        %v1636 = vpop.permute.xlu0 %1635
        %1637 = vrot.lane.b32.xlu0 %v1408, 16
        %v1638 = vpop.permute.xlu0 %1637
        %1639 = vrot.lane.b32.xlu0 %v1409, 16
        %v1640 = vpop.permute.xlu0 %1639
        %v1641 = vsel %vm1089, %v1638, %v1640
        %v1642 = vsel %vm1089, %v1636, %v1638
        %v1643 = vsel %vm1089, %v1634, %v1636
        %v1644 = vsel %vm1089, %v1640, %v1634
        %v1645 = vsel %vm1094, %v1644, 0.0
        %v1646 = vsel %vm1095, %v1643, 0.0
        %v1647 = vsel %vm1096, %v1642, 0.0
        %v1648 = vsel %vm1097, %v1641, 0.0
        %1649 = vset.pattern.permute.xlu0 1
        %1650 = vperm.xlu0 %1649, %v1598
        %v1651 = vpop.permute.xlu0 %1650
        %v1653 = vmul.f32 %v1651, %v1645
        %v1654 = vmul.f32 %v1651, %v1646
        %v1655 = vmul.f32 %v1651, %v1647
        %v1656 = vmul.f32 %v1651, %v1648
        %v1657 = vadd.f32 %v1629, %v1653
        %v1658 = vadd.f32 %v1630, %v1654
        %v1659 = vadd.f32 %v1631, %v1655
        %v1660 = vadd.f32 %v1632, %v1656
        %1661 = vrot.lane.b32.xlu0 %v1406, 15
        %v1662 = vpop.permute.xlu0 %1661
        %1663 = vrot.lane.b32.xlu0 %v1407, 15
        %v1664 = vpop.permute.xlu0 %1663
        %1665 = vrot.lane.b32.xlu0 %v1408, 15
        %v1666 = vpop.permute.xlu0 %1665
        %1667 = vrot.lane.b32.xlu0 %v1409, 15
        %v1668 = vpop.permute.xlu0 %1667
        %vm1669 = vcmp.lt.s32.totalorder %v516, 15
        %v1670 = vsel %vm1669, %v1666, %v1668
        %v1671 = vsel %vm1669, %v1664, %v1666
        %v1672 = vsel %vm1669, %v1662, %v1664
        %v1673 = vsel %vm1669, %v1668, %v1662
        %vm1674 = vmand %vm566, %vm1094
        %vm1675 = vmand %vm567, %vm1095
        %vm1676 = vmand %vm568, %vm1096
        %vm1677 = vmand %vm569, %vm1097
        %v1678 = vsel %vm1674, %v1673, 0.0
        %v1679 = vsel %vm1675, %v1672, 0.0
        %v1680 = vsel %vm1676, %v1671, 0.0
        %v1681 = vsel %vm1677, %v1670, 0.0
        %1682 = vset.pattern.permute.xlu0 2
        %1683 = vperm.xlu0 %1682, %v1598
        %v1684 = vpop.permute.xlu0 %1683
        %v1686 = vmul.f32 %v1684, %v1678
        %v1687 = vmul.f32 %v1684, %v1679
        %v1688 = vmul.f32 %v1684, %v1680
        %v1689 = vmul.f32 %v1684, %v1681
        %v1690 = vadd.f32 %v1657, %v1686
        %v1691 = vadd.f32 %v1658, %v1687
        %v1692 = vadd.f32 %v1659, %v1688
        %v1693 = vadd.f32 %v1660, %v1689
        %1694 = vrot.lane.b32.xlu0 %v1406, 1
        %v1695 = vpop.permute.xlu0 %1694
        %1696 = vrot.lane.b32.xlu0 %v1407, 1
        %v1697 = vpop.permute.xlu0 %1696
        %1698 = vrot.lane.b32.xlu0 %v1408, 1
        %v1699 = vpop.permute.xlu0 %1698
        %1700 = vrot.lane.b32.xlu0 %v1409, 1
        %v1701 = vpop.permute.xlu0 %1700
        %v1702 = vsel %vm540, %v1699, %v1701
        %v1703 = vsel %vm540, %v1697, %v1699
        %v1704 = vsel %vm540, %v1695, %v1697
        %v1705 = vsel %vm540, %v1701, %v1695
        %v1706 = vsel %vm545, %v1705, 0.0
        %v1707 = vsel %vm546, %v1704, 0.0
        %v1708 = vsel %vm547, %v1703, 0.0
        %v1709 = vsel %vm548, %v1702, 0.0
        %1710 = vset.pattern.permute.xlu0 3
        %1711 = vperm.xlu0 %1710, %v1598
        %v1712 = vpop.permute.xlu0 %1711
        %v1714 = vmul.f32 %v1712, %v1706
        %v1715 = vmul.f32 %v1712, %v1707
        %v1716 = vmul.f32 %v1712, %v1708
        %v1717 = vmul.f32 %v1712, %v1709
        %v1718 = vadd.f32 %v1690, %v1714
        %v1719 = vadd.f32 %v1691, %v1715
        %v1720 = vadd.f32 %v1692, %v1716
        %v1721 = vadd.f32 %v1693, %v1717
        %1722 = vset.pattern.permute.xlu0 4
        %1723 = vperm.xlu0 %1722, %v1598
        %v1724 = vpop.permute.xlu0 %1723
        %v1726 = vmul.f32 %v1724, %v1406
        %v1727 = vmul.f32 %v1724, %v1407
        %v1728 = vmul.f32 %v1724, %v1408
        %v1729 = vmul.f32 %v1724, %v1409
        %v1730 = vadd.f32 %v1718, %v1726
        %v1731 = vadd.f32 %v1719, %v1727
        %v1732 = vadd.f32 %v1720, %v1728
        %v1733 = vadd.f32 %v1721, %v1729
        %1734 = vrot.lane.b32.xlu0 %v1406, 127
        %v1735 = vpop.permute.xlu0 %1734
        %1736 = vrot.lane.b32.xlu0 %v1407, 127
        %v1737 = vpop.permute.xlu0 %1736
        %1738 = vrot.lane.b32.xlu0 %v1408, 127
        %v1739 = vpop.permute.xlu0 %1738
        %1740 = vrot.lane.b32.xlu0 %v1409, 127
        %v1741 = vpop.permute.xlu0 %1740
        %v1742 = vsel %vm561, %v1739, %v1741
        %v1743 = vsel %vm561, %v1737, %v1739
        %v1744 = vsel %vm561, %v1735, %v1737
        %v1745 = vsel %vm561, %v1741, %v1735
        %v1746 = vsel %vm566, %v1744, 0.0
        %v1747 = vsel %vm567, %v1743, 0.0
        %v1748 = vsel %vm568, %v1742, 0.0
        %v1749 = vsel %vm569, %v1745, 0.0
        %1750 = vset.pattern.permute.xlu0 5
        %1751 = vperm.xlu0 %1750, %v1598
        %v1752 = vpop.permute.xlu0 %1751
        %v1754 = vmul.f32 %v1752, %v1746
        %v1755 = vmul.f32 %v1752, %v1747
        %v1756 = vmul.f32 %v1752, %v1748
        %v1757 = vmul.f32 %v1752, %v1749
        %v1758 = vadd.f32 %v1730, %v1754
        %v1759 = vadd.f32 %v1731, %v1755
        %v1760 = vadd.f32 %v1732, %v1756
        %v1761 = vadd.f32 %v1733, %v1757
        %1762 = vrot.lane.b32.xlu0 %v1406, 113
        %v1763 = vpop.permute.xlu0 %1762
        %1764 = vrot.lane.b32.xlu0 %v1407, 113
        %v1765 = vpop.permute.xlu0 %1764
        %1766 = vrot.lane.b32.xlu0 %v1408, 113
        %v1767 = vpop.permute.xlu0 %1766
        %1768 = vrot.lane.b32.xlu0 %v1409, 113
        %v1769 = vpop.permute.xlu0 %1768
        %vm1770 = vcmp.lt.s32.totalorder %v516, 113
        %v1771 = vsel %vm1770, %v1767, %v1769
        %v1772 = vsel %vm1770, %v1765, %v1767
        %v1773 = vsel %vm1770, %v1763, %v1765
        %v1774 = vsel %vm1770, %v1769, %v1763
        %vm1775 = vmand %vm545, %vm1115
        %vm1776 = vmand %vm546, %vm1116
        %vm1777 = vmand %vm547, %vm1117
        %vm1778 = vmand %vm548, %vm1118
        %v1779 = vsel %vm1775, %v1773, 0.0
        %v1780 = vsel %vm1776, %v1772, 0.0
        %v1781 = vsel %vm1777, %v1771, 0.0
        %v1782 = vsel %vm1778, %v1774, 0.0
        %1783 = vset.pattern.permute.xlu0 6
        %1784 = vperm.xlu0 %1783, %v1598
        %v1785 = vpop.permute.xlu0 %1784
        %v1787 = vmul.f32 %v1785, %v1779
        %v1788 = vmul.f32 %v1785, %v1780
        %v1789 = vmul.f32 %v1785, %v1781
        %v1790 = vmul.f32 %v1785, %v1782
        %v1791 = vadd.f32 %v1758, %v1787
        %v1792 = vadd.f32 %v1759, %v1788
        %v1793 = vadd.f32 %v1760, %v1789
        %v1794 = vadd.f32 %v1761, %v1790
        %1795 = vrot.lane.b32.xlu0 %v1406, 112
        %v1796 = vpop.permute.xlu0 %1795
        %1797 = vrot.lane.b32.xlu0 %v1407, 112
        %v1798 = vpop.permute.xlu0 %1797
        %1799 = vrot.lane.b32.xlu0 %v1408, 112
        %v1800 = vpop.permute.xlu0 %1799
        %1801 = vrot.lane.b32.xlu0 %v1409, 112
        %v1802 = vpop.permute.xlu0 %1801
        %v1803 = vsel %vm1110, %v1800, %v1802
        %v1804 = vsel %vm1110, %v1798, %v1800
        %v1805 = vsel %vm1110, %v1796, %v1798
        %v1806 = vsel %vm1110, %v1802, %v1796
        %v1807 = vsel %vm1115, %v1805, 0.0
        %v1808 = vsel %vm1116, %v1804, 0.0
        %v1809 = vsel %vm1117, %v1803, 0.0
        %v1810 = vsel %vm1118, %v1806, 0.0
        %1811 = vset.pattern.permute.xlu0 7
        %1812 = vperm.xlu0 %1811, %v1598
        %v1813 = vpop.permute.xlu0 %1812
        %v1815 = vmul.f32 %v1813, %v1807
        %v1816 = vmul.f32 %v1813, %v1808
        %v1817 = vmul.f32 %v1813, %v1809
        %v1818 = vmul.f32 %v1813, %v1810
        %v1819 = vadd.f32 %v1791, %v1815
        %v1820 = vadd.f32 %v1792, %v1816
        %v1821 = vadd.f32 %v1793, %v1817
        %v1822 = vadd.f32 %v1794, %v1818
        %1823 = vrot.lane.b32.xlu0 %v1406, 111
        %v1824 = vpop.permute.xlu0 %1823
        %1825 = vrot.lane.b32.xlu0 %v1407, 111
        %v1826 = vpop.permute.xlu0 %1825
        %1827 = vrot.lane.b32.xlu0 %v1408, 111
        %v1828 = vpop.permute.xlu0 %1827
        %1829 = vrot.lane.b32.xlu0 %v1409, 111
        %v1830 = vpop.permute.xlu0 %1829
        %vm1831 = vcmp.lt.s32.totalorder %v516, 111
        %v1832 = vsel %vm1831, %v1828, %v1830
        %v1833 = vsel %vm1831, %v1826, %v1828
        %v1834 = vsel %vm1831, %v1824, %v1826
        %v1835 = vsel %vm1831, %v1830, %v1824
        %vm1836 = vmand %vm566, %vm1115
        %vm1837 = vmand %vm567, %vm1116
        %vm1838 = vmand %vm568, %vm1117
        %vm1839 = vmand %vm569, %vm1118
        %v1840 = vsel %vm1836, %v1834, 0.0
        %v1841 = vsel %vm1837, %v1833, 0.0
        %v1842 = vsel %vm1838, %v1832, 0.0
        %v1843 = vsel %vm1839, %v1835, 0.0
        %1844 = vset.pattern.permute.xlu0 8
        %1845 = vperm.xlu0 %1844, %v1598
        %v1846 = vpop.permute.xlu0 %1845
        %v1848 = vmul.f32 %v1846, %v1840
        %v1849 = vmul.f32 %v1846, %v1841
        %v1850 = vmul.f32 %v1846, %v1842
        %v1851 = vmul.f32 %v1846, %v1843
        %v1852 = vadd.f32 %v1819, %v1848
        %v1853 = vadd.f32 %v1820, %v1849
        %v1854 = vadd.f32 %v1821, %v1850
        %v1855 = vadd.f32 %v1822, %v1851
        %v1856 = vld [vmem:[%s10] sm:$0xff]
        %1858 = vset.pattern.permute.xlu0 0
        %1859 = vperm.xlu0 %1858, %v1856
        %v1860 = vpop.permute.xlu0 %1859
        %v1862 = vadd.f32 %v1852, %v1860
        %v1863 = vadd.f32 %v1853, %v1860
        %v1864 = vadd.f32 %v1854, %v1860
        %v1865 = vadd.f32 %v1855, %v1860
        %v1866 = vmul.f32 %v1594, %v1862
        %v1867 = vmul.f32 %v1595, %v1863
        %v1868 = vmul.f32 %v1596, %v1864
        %v1869 = vmul.f32 %v1597, %v1865
        %v1870 = vld [vmem:[%s11] sm:$0xff]
        %1871 = vrot.lane.b32.xlu0 %v1866, 5
        %v1872 = vpop.permute.xlu0 %1871
        %1873 = vrot.lane.b32.xlu0 %v1867, 5
        %v1874 = vpop.permute.xlu0 %1873
        %1875 = vrot.lane.b32.xlu0 %v1868, 5
        %v1876 = vpop.permute.xlu0 %1875
        %1877 = vrot.lane.b32.xlu0 %v1869, 5
        %v1878 = vpop.permute.xlu0 %1877
        %vm1879 = vcmp.lt.s32.totalorder %v516, 5
        %v1880 = vsel %vm1879, %v1876, %v1878
        %v1881 = vsel %vm1879, %v1874, %v1876
        %v1882 = vsel %vm1879, %v1872, %v1874
        %v1883 = vsel %vm1879, %v1878, %v1872
        %vm1884 = vcmp.ge.s32.totalorder %v524, 5
        %vm1885 = vcmp.ge.s32.totalorder %v525, 5
        %vm1886 = vcmp.ge.s32.totalorder %v526, 5
        %vm1887 = vcmp.ge.s32.totalorder %v527, 5
        %v1888 = vsel %vm1884, %v1883, 0.0
        %v1889 = vsel %vm1885, %v1882, 0.0
        %v1890 = vsel %vm1886, %v1881, 0.0
        %v1891 = vsel %vm1887, %v1880, 0.0
        %1893 = vset.pattern.permute.xlu0 0
        %1894 = vperm.xlu0 %1893, %v1870
        %v1895 = vpop.permute.xlu0 %1894
        %v1897 = vmul.f32 %v1895, %v1888
        %v1898 = vmul.f32 %v1895, %v1889
        %v1899 = vmul.f32 %v1895, %v1890
        %v1900 = vmul.f32 %v1895, %v1891
        %v1901 = vadd.f32 %v1897, 0.0
        %v1902 = vadd.f32 %v1898, 0.0
        %v1903 = vadd.f32 %v1899, 0.0
        %v1904 = vadd.f32 %v1900, 0.0
        %1905 = vrot.lane.b32.xlu0 %v1866, 4
        %v1906 = vpop.permute.xlu0 %1905
        %1907 = vrot.lane.b32.xlu0 %v1867, 4
        %v1908 = vpop.permute.xlu0 %1907
        %1909 = vrot.lane.b32.xlu0 %v1868, 4
        %v1910 = vpop.permute.xlu0 %1909
        %1911 = vrot.lane.b32.xlu0 %v1869, 4
        %v1912 = vpop.permute.xlu0 %1911
        %v1913 = vsel %vm830, %v1910, %v1912
        %v1914 = vsel %vm830, %v1908, %v1910
        %v1915 = vsel %vm830, %v1906, %v1908
        %v1916 = vsel %vm830, %v1912, %v1906
        %vm1917 = vcmp.ge.s32.totalorder %v524, 4
        %vm1918 = vcmp.ge.s32.totalorder %v525, 4
        %vm1919 = vcmp.ge.s32.totalorder %v526, 4
        %vm1920 = vcmp.ge.s32.totalorder %v527, 4
        %v1921 = vsel %vm1917, %v1916, 0.0
        %v1922 = vsel %vm1918, %v1915, 0.0
        %v1923 = vsel %vm1919, %v1914, 0.0
        %v1924 = vsel %vm1920, %v1913, 0.0
        %1925 = vset.pattern.permute.xlu0 1
        %1926 = vperm.xlu0 %1925, %v1870
        %v1927 = vpop.permute.xlu0 %1926
        %v1929 = vmul.f32 %v1927, %v1921
        %v1930 = vmul.f32 %v1927, %v1922
        %v1931 = vmul.f32 %v1927, %v1923
        %v1932 = vmul.f32 %v1927, %v1924
        %v1933 = vadd.f32 %v1901, %v1929
        %v1934 = vadd.f32 %v1902, %v1930
        %v1935 = vadd.f32 %v1903, %v1931
        %v1936 = vadd.f32 %v1904, %v1932
        %1937 = vrot.lane.b32.xlu0 %v1866, 3
        %v1938 = vpop.permute.xlu0 %1937
        %1939 = vrot.lane.b32.xlu0 %v1867, 3
        %v1940 = vpop.permute.xlu0 %1939
        %1941 = vrot.lane.b32.xlu0 %v1868, 3
        %v1942 = vpop.permute.xlu0 %1941
        %1943 = vrot.lane.b32.xlu0 %v1869, 3
        %v1944 = vpop.permute.xlu0 %1943
        %vm1945 = vcmp.lt.s32.totalorder %v516, 3
        %v1946 = vsel %vm1945, %v1942, %v1944
        %v1947 = vsel %vm1945, %v1940, %v1942
        %v1948 = vsel %vm1945, %v1938, %v1940
        %v1949 = vsel %vm1945, %v1944, %v1938
        %vm1950 = vcmp.ge.s32.totalorder %v524, 3
        %vm1951 = vcmp.ge.s32.totalorder %v525, 3
        %vm1952 = vcmp.ge.s32.totalorder %v526, 3
        %vm1953 = vcmp.ge.s32.totalorder %v527, 3
        %v1954 = vsel %vm1950, %v1949, 0.0
        %v1955 = vsel %vm1951, %v1948, 0.0
        %v1956 = vsel %vm1952, %v1947, 0.0
        %v1957 = vsel %vm1953, %v1946, 0.0
        %1958 = vset.pattern.permute.xlu0 2
        %1959 = vperm.xlu0 %1958, %v1870
        %v1960 = vpop.permute.xlu0 %1959
        %v1962 = vmul.f32 %v1960, %v1954
        %v1963 = vmul.f32 %v1960, %v1955
        %v1964 = vmul.f32 %v1960, %v1956
        %v1965 = vmul.f32 %v1960, %v1957
        %v1966 = vadd.f32 %v1933, %v1962
        %v1967 = vadd.f32 %v1934, %v1963
        %v1968 = vadd.f32 %v1935, %v1964
        %v1969 = vadd.f32 %v1936, %v1965
        %1970 = vrot.lane.b32.xlu0 %v1866, 2
        %v1971 = vpop.permute.xlu0 %1970
        %1972 = vrot.lane.b32.xlu0 %v1867, 2
        %v1973 = vpop.permute.xlu0 %1972
        %1974 = vrot.lane.b32.xlu0 %v1868, 2
        %v1975 = vpop.permute.xlu0 %1974
        %1976 = vrot.lane.b32.xlu0 %v1869, 2
        %v1977 = vpop.permute.xlu0 %1976
        %v1978 = vsel %vm788, %v1975, %v1977
        %v1979 = vsel %vm788, %v1973, %v1975
        %v1980 = vsel %vm788, %v1971, %v1973
        %v1981 = vsel %vm788, %v1977, %v1971
        %vm1982 = vcmp.ge.s32.totalorder %v524, 2
        %vm1983 = vcmp.ge.s32.totalorder %v525, 2
        %vm1984 = vcmp.ge.s32.totalorder %v526, 2
        %vm1985 = vcmp.ge.s32.totalorder %v527, 2
        %v1986 = vsel %vm1982, %v1981, 0.0
        %v1987 = vsel %vm1983, %v1980, 0.0
        %v1988 = vsel %vm1984, %v1979, 0.0
        %v1989 = vsel %vm1985, %v1978, 0.0
        %1990 = vset.pattern.permute.xlu0 3
        %1991 = vperm.xlu0 %1990, %v1870
        %v1992 = vpop.permute.xlu0 %1991
        %v1994 = vmul.f32 %v1992, %v1986
        %v1995 = vmul.f32 %v1992, %v1987
        %v1996 = vmul.f32 %v1992, %v1988
        %v1997 = vmul.f32 %v1992, %v1989
        %v1998 = vadd.f32 %v1966, %v1994
        %v1999 = vadd.f32 %v1967, %v1995
        %v2000 = vadd.f32 %v1968, %v1996
        %v2001 = vadd.f32 %v1969, %v1997
        %2002 = vrot.lane.b32.xlu0 %v1866, 1
        %v2003 = vpop.permute.xlu0 %2002
        %2004 = vrot.lane.b32.xlu0 %v1867, 1
        %v2005 = vpop.permute.xlu0 %2004
        %2006 = vrot.lane.b32.xlu0 %v1868, 1
        %v2007 = vpop.permute.xlu0 %2006
        %2008 = vrot.lane.b32.xlu0 %v1869, 1
        %v2009 = vpop.permute.xlu0 %2008
        %v2010 = vsel %vm540, %v2007, %v2009
        %v2011 = vsel %vm540, %v2005, %v2007
        %v2012 = vsel %vm540, %v2003, %v2005
        %v2013 = vsel %vm540, %v2009, %v2003
        %v2014 = vsel %vm545, %v2013, 0.0
        %v2015 = vsel %vm546, %v2012, 0.0
        %v2016 = vsel %vm547, %v2011, 0.0
        %v2017 = vsel %vm548, %v2010, 0.0
        %2018 = vset.pattern.permute.xlu0 4
        %2019 = vperm.xlu0 %2018, %v1870
        %v2020 = vpop.permute.xlu0 %2019
        %v2022 = vmul.f32 %v2020, %v2014
        %v2023 = vmul.f32 %v2020, %v2015
        %v2024 = vmul.f32 %v2020, %v2016
        %v2025 = vmul.f32 %v2020, %v2017
        %v2026 = vadd.f32 %v1998, %v2022
        %v2027 = vadd.f32 %v1999, %v2023
        %v2028 = vadd.f32 %v2000, %v2024
        %v2029 = vadd.f32 %v2001, %v2025
        %2030 = vset.pattern.permute.xlu0 5
        %2031 = vperm.xlu0 %2030, %v1870
        %v2032 = vpop.permute.xlu0 %2031
        %v2034 = vmul.f32 %v2032, %v1866
        %v2035 = vmul.f32 %v2032, %v1867
        %v2036 = vmul.f32 %v2032, %v1868
        %v2037 = vmul.f32 %v2032, %v1869
        %v2038 = vadd.f32 %v2026, %v2034
        %v2039 = vadd.f32 %v2027, %v2035
        %v2040 = vadd.f32 %v2028, %v2036
        %v2041 = vadd.f32 %v2029, %v2037
        %2042 = vrot.lane.b32.xlu0 %v1866, 127
        %v2043 = vpop.permute.xlu0 %2042
        %2044 = vrot.lane.b32.xlu0 %v1867, 127
        %v2045 = vpop.permute.xlu0 %2044
        %2046 = vrot.lane.b32.xlu0 %v1868, 127
        %v2047 = vpop.permute.xlu0 %2046
        %2048 = vrot.lane.b32.xlu0 %v1869, 127
        %v2049 = vpop.permute.xlu0 %2048
        %v2050 = vsel %vm561, %v2047, %v2049
        %v2051 = vsel %vm561, %v2045, %v2047
        %v2052 = vsel %vm561, %v2043, %v2045
        %v2053 = vsel %vm561, %v2049, %v2043
        %v2054 = vsel %vm566, %v2052, 0.0
        %v2055 = vsel %vm567, %v2051, 0.0
        %v2056 = vsel %vm568, %v2050, 0.0
        %v2057 = vsel %vm569, %v2053, 0.0
        %2058 = vset.pattern.permute.xlu0 6
        %2059 = vperm.xlu0 %2058, %v1870
        %v2060 = vpop.permute.xlu0 %2059
        %v2062 = vmul.f32 %v2060, %v2054
        %v2063 = vmul.f32 %v2060, %v2055
        %v2064 = vmul.f32 %v2060, %v2056
        %v2065 = vmul.f32 %v2060, %v2057
        %v2066 = vadd.f32 %v2038, %v2062
        %v2067 = vadd.f32 %v2039, %v2063
        %v2068 = vadd.f32 %v2040, %v2064
        %v2069 = vadd.f32 %v2041, %v2065
        %2070 = vrot.lane.b32.xlu0 %v1866, 126
        %v2071 = vpop.permute.xlu0 %2070
        %2072 = vrot.lane.b32.xlu0 %v1867, 126
        %v2073 = vpop.permute.xlu0 %2072
        %2074 = vrot.lane.b32.xlu0 %v1868, 126
        %v2075 = vpop.permute.xlu0 %2074
        %2076 = vrot.lane.b32.xlu0 %v1869, 126
        %v2077 = vpop.permute.xlu0 %2076
        %v2078 = vsel %vm775, %v2075, %v2077
        %v2079 = vsel %vm775, %v2073, %v2075
        %v2080 = vsel %vm775, %v2071, %v2073
        %v2081 = vsel %vm775, %v2077, %v2071
        %vm2082 = vcmp.lt.s32.totalorder %v524, 14
        %vm2083 = vcmp.lt.s32.totalorder %v525, 14
        %vm2084 = vcmp.lt.s32.totalorder %v526, 14
        %vm2085 = vcmp.lt.s32.totalorder %v527, 14
        %v2086 = vsel %vm2082, %v2080, 0.0
        %v2087 = vsel %vm2083, %v2079, 0.0
        %v2088 = vsel %vm2084, %v2078, 0.0
        %v2089 = vsel %vm2085, %v2081, 0.0
        %2090 = vset.pattern.permute.xlu0 7
        %2091 = vperm.xlu0 %2090, %v1870
        %v2092 = vpop.permute.xlu0 %2091
        %v2094 = vmul.f32 %v2092, %v2086
        %v2095 = vmul.f32 %v2092, %v2087
        %v2096 = vmul.f32 %v2092, %v2088
        %v2097 = vmul.f32 %v2092, %v2089
        %v2098 = vadd.f32 %v2066, %v2094
        %v2099 = vadd.f32 %v2067, %v2095
        %v2100 = vadd.f32 %v2068, %v2096
        %v2101 = vadd.f32 %v2069, %v2097
        %2102 = vrot.lane.b32.xlu0 %v1866, 125
        %v2103 = vpop.permute.xlu0 %2102
        %2104 = vrot.lane.b32.xlu0 %v1867, 125
        %v2105 = vpop.permute.xlu0 %2104
        %2106 = vrot.lane.b32.xlu0 %v1868, 125
        %v2107 = vpop.permute.xlu0 %2106
        %2108 = vrot.lane.b32.xlu0 %v1869, 125
        %v2109 = vpop.permute.xlu0 %2108
        %vm2110 = vcmp.lt.s32.totalorder %v516, 125
        %v2111 = vsel %vm2110, %v2107, %v2109
        %v2112 = vsel %vm2110, %v2105, %v2107
        %v2113 = vsel %vm2110, %v2103, %v2105
        %v2114 = vsel %vm2110, %v2109, %v2103
        %vm2115 = vcmp.lt.s32.totalorder %v524, 13
        %vm2116 = vcmp.lt.s32.totalorder %v525, 13
        %vm2117 = vcmp.lt.s32.totalorder %v526, 13
        %vm2118 = vcmp.lt.s32.totalorder %v527, 13
        %v2119 = vsel %vm2115, %v2113, 0.0
        %v2120 = vsel %vm2116, %v2112, 0.0
        %v2121 = vsel %vm2117, %v2111, 0.0
        %v2122 = vsel %vm2118, %v2114, 0.0
        %2123 = vset.pattern.permute.xlu0 8
        %2124 = vperm.xlu0 %2123, %v1870
        %v2125 = vpop.permute.xlu0 %2124
        %v2127 = vmul.f32 %v2125, %v2119
        %v2128 = vmul.f32 %v2125, %v2120
        %v2129 = vmul.f32 %v2125, %v2121
        %v2130 = vmul.f32 %v2125, %v2122
        %v2131 = vadd.f32 %v2098, %v2127
        %v2132 = vadd.f32 %v2099, %v2128
        %v2133 = vadd.f32 %v2100, %v2129
        %v2134 = vadd.f32 %v2101, %v2130
        %2135 = vrot.lane.b32.xlu0 %v1866, 124
        %v2136 = vpop.permute.xlu0 %2135
        %2137 = vrot.lane.b32.xlu0 %v1867, 124
        %v2138 = vpop.permute.xlu0 %2137
        %2139 = vrot.lane.b32.xlu0 %v1868, 124
        %v2140 = vpop.permute.xlu0 %2139
        %2141 = vrot.lane.b32.xlu0 %v1869, 124
        %v2142 = vpop.permute.xlu0 %2141
        %v2143 = vsel %vm817, %v2140, %v2142
        %v2144 = vsel %vm817, %v2138, %v2140
        %v2145 = vsel %vm817, %v2136, %v2138
        %v2146 = vsel %vm817, %v2142, %v2136
        %vm2147 = vcmp.lt.s32.totalorder %v524, 12
        %vm2148 = vcmp.lt.s32.totalorder %v525, 12
        %vm2149 = vcmp.lt.s32.totalorder %v526, 12
        %vm2150 = vcmp.lt.s32.totalorder %v527, 12
        %v2151 = vsel %vm2147, %v2145, 0.0
        %v2152 = vsel %vm2148, %v2144, 0.0
        %v2153 = vsel %vm2149, %v2143, 0.0
        %v2154 = vsel %vm2150, %v2146, 0.0
        %2155 = vset.pattern.permute.xlu0 9
        %2156 = vperm.xlu0 %2155, %v1870
        %v2157 = vpop.permute.xlu0 %2156
        %v2159 = vmul.f32 %v2157, %v2151
        %v2160 = vmul.f32 %v2157, %v2152
        %v2161 = vmul.f32 %v2157, %v2153
        %v2162 = vmul.f32 %v2157, %v2154
        %v2163 = vadd.f32 %v2131, %v2159
        %v2164 = vadd.f32 %v2132, %v2160
        %v2165 = vadd.f32 %v2133, %v2161
        %v2166 = vadd.f32 %v2134, %v2162
        %2167 = vrot.lane.b32.xlu0 %v1866, 123
        %v2168 = vpop.permute.xlu0 %2167
        %2169 = vrot.lane.b32.xlu0 %v1867, 123
        %v2170 = vpop.permute.xlu0 %2169
        %2171 = vrot.lane.b32.xlu0 %v1868, 123
        %v2172 = vpop.permute.xlu0 %2171
        %2173 = vrot.lane.b32.xlu0 %v1869, 123
        %v2174 = vpop.permute.xlu0 %2173
        %vm2175 = vcmp.lt.s32.totalorder %v516, 123
        %v2176 = vsel %vm2175, %v2172, %v2174
        %v2177 = vsel %vm2175, %v2170, %v2172
        %v2178 = vsel %vm2175, %v2168, %v2170
        %v2179 = vsel %vm2175, %v2174, %v2168
        %vm2180 = vcmp.lt.s32.totalorder %v524, 11
        %vm2181 = vcmp.lt.s32.totalorder %v525, 11
        %vm2182 = vcmp.lt.s32.totalorder %v526, 11
        %vm2183 = vcmp.lt.s32.totalorder %v527, 11
        %v2184 = vsel %vm2180, %v2178, 0.0
        %v2185 = vsel %vm2181, %v2177, 0.0
        %v2186 = vsel %vm2182, %v2176, 0.0
        %v2187 = vsel %vm2183, %v2179, 0.0
        %2188 = vset.pattern.permute.xlu0 10
        %2189 = vperm.xlu0 %2188, %v1870
        %v2190 = vpop.permute.xlu0 %2189
        %v2192 = vmul.f32 %v2190, %v2184
        %v2193 = vmul.f32 %v2190, %v2185
        %v2194 = vmul.f32 %v2190, %v2186
        %v2195 = vmul.f32 %v2190, %v2187
        %v2196 = vadd.f32 %v2163, %v2192
        %v2197 = vadd.f32 %v2164, %v2193
        %v2198 = vadd.f32 %v2165, %v2194
        %v2199 = vadd.f32 %v2166, %v2195
        %v2200 = vld [vmem:[%s12] sm:$0xff]
        %2202 = vset.pattern.permute.xlu0 0
        %2203 = vperm.xlu0 %2202, %v2200
        %v2204 = vpop.permute.xlu0 %2203
        %v2206 = vadd.f32 %v2196, %v2204
        %v2207 = vadd.f32 %v2197, %v2204
        %v2208 = vadd.f32 %v2198, %v2204
        %v2209 = vadd.f32 %v2199, %v2204
        %v2210 = vmax.f32 %v2206, 0.0
        %v2211 = vmax.f32 %v2207, 0.0
        %v2212 = vmax.f32 %v2208, 0.0
        %v2213 = vmax.f32 %v2209, 0.0
        %v2214 = vld [vmem:[%s13] sm:$0xff]
        %2215 = vrot.lane.b32.xlu0 %v2210, 80
        %v2216 = vpop.permute.xlu0 %2215
        %2217 = vrot.lane.b32.xlu0 %v2211, 80
        %v2218 = vpop.permute.xlu0 %2217
        %2219 = vrot.lane.b32.xlu0 %v2212, 80
        %v2220 = vpop.permute.xlu0 %2219
        %2221 = vrot.lane.b32.xlu0 %v2213, 80
        %v2222 = vpop.permute.xlu0 %2221
        %vm2223 = vcmp.lt.s32.totalorder %v516, 80
        %v2224 = vsel %vm2223, %v2220, %v2222
        %v2225 = vsel %vm2223, %v2218, %v2220
        %v2226 = vsel %vm2223, %v2216, %v2218
        %v2227 = vsel %vm2223, %v2222, %v2216
        %vm2228 = vcmp.ge.s32.totalorder %v528, 5
        %vm2229 = vcmp.ge.s32.totalorder %v529, 5
        %vm2230 = vcmp.ge.s32.totalorder %v530, 5
        %vm2231 = vcmp.ge.s32.totalorder %v531, 5
        %v2232 = vsel %vm2228, %v2227, 0.0
        %v2233 = vsel %vm2229, %v2226, 0.0
        %v2234 = vsel %vm2230, %v2225, 0.0
        %v2235 = vsel %vm2231, %v2224, 0.0
        %2237 = vset.pattern.permute.xlu0 0
        %2238 = vperm.xlu0 %2237, %v2214
        %v2239 = vpop.permute.xlu0 %2238
        %v2241 = vmul.f32 %v2239, %v2232
        %v2242 = vmul.f32 %v2239, %v2233
        %v2243 = vmul.f32 %v2239, %v2234
        %v2244 = vmul.f32 %v2239, %v2235
        %v2245 = vadd.f32 %v2241, 0.0
        %v2246 = vadd.f32 %v2242, 0.0
        %v2247 = vadd.f32 %v2243, 0.0
        %v2248 = vadd.f32 %v2244, 0.0
        %2249 = vrot.lane.b32.xlu0 %v2210, 64
        %v2250 = vpop.permute.xlu0 %2249
        %2251 = vrot.lane.b32.xlu0 %v2211, 64
        %v2252 = vpop.permute.xlu0 %2251
        %2253 = vrot.lane.b32.xlu0 %v2212, 64
        %v2254 = vpop.permute.xlu0 %2253
        %2255 = vrot.lane.b32.xlu0 %v2213, 64
        %v2256 = vpop.permute.xlu0 %2255
        %v2257 = vsel %vm1365, %v2254, %v2256
        %v2258 = vsel %vm1365, %v2252, %v2254
        %v2259 = vsel %vm1365, %v2250, %v2252
        %v2260 = vsel %vm1365, %v2256, %v2250
        %vm2261 = vcmp.ge.s32.totalorder %v528, 4
        %vm2262 = vcmp.ge.s32.totalorder %v529, 4
        %vm2263 = vcmp.ge.s32.totalorder %v530, 4
        %vm2264 = vcmp.ge.s32.totalorder %v531, 4
        %v2265 = vsel %vm2261, %v2260, 0.0
        %v2266 = vsel %vm2262, %v2259, 0.0
        %v2267 = vsel %vm2263, %v2258, 0.0
        %v2268 = vsel %vm2264, %v2257, 0.0
        %2269 = vset.pattern.permute.xlu0 1
        %2270 = vperm.xlu0 %2269, %v2214
        %v2271 = vpop.permute.xlu0 %2270
        %v2273 = vmul.f32 %v2271, %v2265
        %v2274 = vmul.f32 %v2271, %v2266
        %v2275 = vmul.f32 %v2271, %v2267
        %v2276 = vmul.f32 %v2271, %v2268
        %v2277 = vadd.f32 %v2245, %v2273
        %v2278 = vadd.f32 %v2246, %v2274
        %v2279 = vadd.f32 %v2247, %v2275
        %v2280 = vadd.f32 %v2248, %v2276
        %2281 = vrot.lane.b32.xlu0 %v2210, 48
        %v2282 = vpop.permute.xlu0 %2281
        %2283 = vrot.lane.b32.xlu0 %v2211, 48
        %v2284 = vpop.permute.xlu0 %2283
        %2285 = vrot.lane.b32.xlu0 %v2212, 48
        %v2286 = vpop.permute.xlu0 %2285
        %2287 = vrot.lane.b32.xlu0 %v2213, 48
        %v2288 = vpop.permute.xlu0 %2287
        %vm2289 = vcmp.lt.s32.totalorder %v516, 48
        %v2290 = vsel %vm2289, %v2286, %v2288
        %v2291 = vsel %vm2289, %v2284, %v2286
        %v2292 = vsel %vm2289, %v2282, %v2284
        %v2293 = vsel %vm2289, %v2288, %v2282
        %vm2294 = vcmp.ge.s32.totalorder %v528, 3
        %vm2295 = vcmp.ge.s32.totalorder %v529, 3
        %vm2296 = vcmp.ge.s32.totalorder %v530, 3
        %vm2297 = vcmp.ge.s32.totalorder %v531, 3
        %v2298 = vsel %vm2294, %v2293, 0.0
        %v2299 = vsel %vm2295, %v2292, 0.0
        %v2300 = vsel %vm2296, %v2291, 0.0
        %v2301 = vsel %vm2297, %v2290, 0.0
        %2302 = vset.pattern.permute.xlu0 2
        %2303 = vperm.xlu0 %2302, %v2214
        %v2304 = vpop.permute.xlu0 %2303
        %v2306 = vmul.f32 %v2304, %v2298
        %v2307 = vmul.f32 %v2304, %v2299
        %v2308 = vmul.f32 %v2304, %v2300
        %v2309 = vmul.f32 %v2304, %v2301
        %v2310 = vadd.f32 %v2277, %v2306
        %v2311 = vadd.f32 %v2278, %v2307
        %v2312 = vadd.f32 %v2279, %v2308
        %v2313 = vadd.f32 %v2280, %v2309
        %2314 = vrot.lane.b32.xlu0 %v2210, 32
        %v2315 = vpop.permute.xlu0 %2314
        %2316 = vrot.lane.b32.xlu0 %v2211, 32
        %v2317 = vpop.permute.xlu0 %2316
        %2318 = vrot.lane.b32.xlu0 %v2212, 32
        %v2319 = vpop.permute.xlu0 %2318
        %2320 = vrot.lane.b32.xlu0 %v2213, 32
        %v2321 = vpop.permute.xlu0 %2320
        %v2322 = vsel %vm1336, %v2319, %v2321
        %v2323 = vsel %vm1336, %v2317, %v2319
        %v2324 = vsel %vm1336, %v2315, %v2317
        %v2325 = vsel %vm1336, %v2321, %v2315
        %vm2326 = vcmp.ge.s32.totalorder %v528, 2
        %vm2327 = vcmp.ge.s32.totalorder %v529, 2
        %vm2328 = vcmp.ge.s32.totalorder %v530, 2
        %vm2329 = vcmp.ge.s32.totalorder %v531, 2
        %v2330 = vsel %vm2326, %v2325, 0.0
        %v2331 = vsel %vm2327, %v2324, 0.0
        %v2332 = vsel %vm2328, %v2323, 0.0
        %v2333 = vsel %vm2329, %v2322, 0.0
        %2334 = vset.pattern.permute.xlu0 3
        %2335 = vperm.xlu0 %2334, %v2214
        %v2336 = vpop.permute.xlu0 %2335
        %v2338 = vmul.f32 %v2336, %v2330
        %v2339 = vmul.f32 %v2336, %v2331
        %v2340 = vmul.f32 %v2336, %v2332
        %v2341 = vmul.f32 %v2336, %v2333
        %v2342 = vadd.f32 %v2310, %v2338
        %v2343 = vadd.f32 %v2311, %v2339
        %v2344 = vadd.f32 %v2312, %v2340
        %v2345 = vadd.f32 %v2313, %v2341
        %2346 = vrot.lane.b32.xlu0 %v2210, 16
        %v2347 = vpop.permute.xlu0 %2346
        %2348 = vrot.lane.b32.xlu0 %v2211, 16
        %v2349 = vpop.permute.xlu0 %2348
        %2350 = vrot.lane.b32.xlu0 %v2212, 16
        %v2351 = vpop.permute.xlu0 %2350
        %2352 = vrot.lane.b32.xlu0 %v2213, 16
        %v2353 = vpop.permute.xlu0 %2352
        %v2354 = vsel %vm1089, %v2351, %v2353
        %v2355 = vsel %vm1089, %v2349, %v2351
        %v2356 = vsel %vm1089, %v2347, %v2349
        %v2357 = vsel %vm1089, %v2353, %v2347
        %v2358 = vsel %vm1094, %v2357, 0.0
        %v2359 = vsel %vm1095, %v2356, 0.0
        %v2360 = vsel %vm1096, %v2355, 0.0
        %v2361 = vsel %vm1097, %v2354, 0.0
        %2362 = vset.pattern.permute.xlu0 4
        %2363 = vperm.xlu0 %2362, %v2214
        %v2364 = vpop.permute.xlu0 %2363
        %v2366 = vmul.f32 %v2364, %v2358
        %v2367 = vmul.f32 %v2364, %v2359
        %v2368 = vmul.f32 %v2364, %v2360
        %v2369 = vmul.f32 %v2364, %v2361
        %v2370 = vadd.f32 %v2342, %v2366
        %v2371 = vadd.f32 %v2343, %v2367
        %v2372 = vadd.f32 %v2344, %v2368
        %v2373 = vadd.f32 %v2345, %v2369
        %2374 = vset.pattern.permute.xlu0 5
        %2375 = vperm.xlu0 %2374, %v2214
        %v2376 = vpop.permute.xlu0 %2375
        %v2378 = vmul.f32 %v2376, %v2210
        %v2379 = vmul.f32 %v2376, %v2211
        %v2380 = vmul.f32 %v2376, %v2212
        %v2381 = vmul.f32 %v2376, %v2213
        %v2382 = vadd.f32 %v2370, %v2378
        %v2383 = vadd.f32 %v2371, %v2379
        %v2384 = vadd.f32 %v2372, %v2380
        %v2385 = vadd.f32 %v2373, %v2381
        %2386 = vrot.lane.b32.xlu0 %v2210, 112
        %v2387 = vpop.permute.xlu0 %2386
        %2388 = vrot.lane.b32.xlu0 %v2211, 112
        %v2389 = vpop.permute.xlu0 %2388
        %2390 = vrot.lane.b32.xlu0 %v2212, 112
        %v2391 = vpop.permute.xlu0 %2390
        %2392 = vrot.lane.b32.xlu0 %v2213, 112
        %v2393 = vpop.permute.xlu0 %2392
        %v2394 = vsel %vm1110, %v2391, %v2393
        %v2395 = vsel %vm1110, %v2389, %v2391
        %v2396 = vsel %vm1110, %v2387, %v2389
        %v2397 = vsel %vm1110, %v2393, %v2387
        %v2398 = vsel %vm1115, %v2396, 0.0
        %v2399 = vsel %vm1116, %v2395, 0.0
        %v2400 = vsel %vm1117, %v2394, 0.0
        %v2401 = vsel %vm1118, %v2397, 0.0
        %2402 = vset.pattern.permute.xlu0 6
        %2403 = vperm.xlu0 %2402, %v2214
        %v2404 = vpop.permute.xlu0 %2403
        %v2406 = vmul.f32 %v2404, %v2398
        %v2407 = vmul.f32 %v2404, %v2399
        %v2408 = vmul.f32 %v2404, %v2400
        %v2409 = vmul.f32 %v2404, %v2401
        %v2410 = vadd.f32 %v2382, %v2406
        %v2411 = vadd.f32 %v2383, %v2407
        %v2412 = vadd.f32 %v2384, %v2408
        %v2413 = vadd.f32 %v2385, %v2409
        %2414 = vrot.lane.b32.xlu0 %v2210, 96
        %v2415 = vpop.permute.xlu0 %2414
        %2416 = vrot.lane.b32.xlu0 %v2211, 96
        %v2417 = vpop.permute.xlu0 %2416
        %2418 = vrot.lane.b32.xlu0 %v2212, 96
        %v2419 = vpop.permute.xlu0 %2418
        %2420 = vrot.lane.b32.xlu0 %v2213, 96
        %v2421 = vpop.permute.xlu0 %2420
        %v2422 = vsel %vm1323, %v2419, %v2421
        %v2423 = vsel %vm1323, %v2417, %v2419
        %v2424 = vsel %vm1323, %v2415, %v2417
        %v2425 = vsel %vm1323, %v2421, %v2415
        %vm2426 = vcmp.lt.s32.totalorder %v528, 14
        %vm2427 = vcmp.lt.s32.totalorder %v529, 14
        %vm2428 = vcmp.lt.s32.totalorder %v530, 14
        %vm2429 = vcmp.lt.s32.totalorder %v531, 14
        %v2430 = vsel %vm2426, %v2424, 0.0
        %v2431 = vsel %vm2427, %v2423, 0.0
        %v2432 = vsel %vm2428, %v2422, 0.0
        %v2433 = vsel %vm2429, %v2425, 0.0
        %2434 = vset.pattern.permute.xlu0 7
        %2435 = vperm.xlu0 %2434, %v2214
        %v2436 = vpop.permute.xlu0 %2435
        %v2438 = vmul.f32 %v2436, %v2430
        %v2439 = vmul.f32 %v2436, %v2431
        %v2440 = vmul.f32 %v2436, %v2432
        %v2441 = vmul.f32 %v2436, %v2433
        %v2442 = vadd.f32 %v2410, %v2438
        %v2443 = vadd.f32 %v2411, %v2439
        %v2444 = vadd.f32 %v2412, %v2440
        %v2445 = vadd.f32 %v2413, %v2441
        %vm2446 = vcmp.lt.s32.totalorder %v528, 13
        %vm2447 = vcmp.lt.s32.totalorder %v529, 13
        %vm2448 = vcmp.lt.s32.totalorder %v530, 13
        %vm2449 = vcmp.lt.s32.totalorder %v531, 13
        %v2450 = vsel %vm2446, %v2226, 0.0
        %v2451 = vsel %vm2447, %v2225, 0.0
        %v2452 = vsel %vm2448, %v2224, 0.0
        %v2453 = vsel %vm2449, %v2227, 0.0
        %2454 = vset.pattern.permute.xlu0 8
        %2455 = vperm.xlu0 %2454, %v2214
        %v2456 = vpop.permute.xlu0 %2455
        %v2458 = vmul.f32 %v2456, %v2450
        %v2459 = vmul.f32 %v2456, %v2451
        %v2460 = vmul.f32 %v2456, %v2452
        %v2461 = vmul.f32 %v2456, %v2453
        %v2462 = vadd.f32 %v2442, %v2458
        %v2463 = vadd.f32 %v2443, %v2459
        %v2464 = vadd.f32 %v2444, %v2460
        %v2465 = vadd.f32 %v2445, %v2461
        %vm2466 = vcmp.lt.s32.totalorder %v528, 12
        %vm2467 = vcmp.lt.s32.totalorder %v529, 12
        %vm2468 = vcmp.lt.s32.totalorder %v530, 12
        %vm2469 = vcmp.lt.s32.totalorder %v531, 12
        %v2470 = vsel %vm2466, %v2259, 0.0
        %v2471 = vsel %vm2467, %v2258, 0.0
        %v2472 = vsel %vm2468, %v2257, 0.0
        %v2473 = vsel %vm2469, %v2260, 0.0
        %2474 = vset.pattern.permute.xlu0 9
        %2475 = vperm.xlu0 %2474, %v2214
        %v2476 = vpop.permute.xlu0 %2475
        %v2478 = vmul.f32 %v2476, %v2470
        %v2479 = vmul.f32 %v2476, %v2471
        %v2480 = vmul.f32 %v2476, %v2472
        %v2481 = vmul.f32 %v2476, %v2473
        %v2482 = vadd.f32 %v2462, %v2478
        %v2483 = vadd.f32 %v2463, %v2479
        %v2484 = vadd.f32 %v2464, %v2480
        %v2485 = vadd.f32 %v2465, %v2481
        %vm2486 = vcmp.lt.s32.totalorder %v528, 11
        %vm2487 = vcmp.lt.s32.totalorder %v529, 11
        %vm2488 = vcmp.lt.s32.totalorder %v530, 11
        %vm2489 = vcmp.lt.s32.totalorder %v531, 11
        %v2490 = vsel %vm2486, %v2292, 0.0
        %v2491 = vsel %vm2487, %v2291, 0.0
        %v2492 = vsel %vm2488, %v2290, 0.0
        %v2493 = vsel %vm2489, %v2293, 0.0
        %2494 = vset.pattern.permute.xlu0 10
        %2495 = vperm.xlu0 %2494, %v2214
        %v2496 = vpop.permute.xlu0 %2495
        %v2498 = vmul.f32 %v2496, %v2490
        %v2499 = vmul.f32 %v2496, %v2491
        %v2500 = vmul.f32 %v2496, %v2492
        %v2501 = vmul.f32 %v2496, %v2493
        %v2502 = vadd.f32 %v2482, %v2498
        %v2503 = vadd.f32 %v2483, %v2499
        %v2504 = vadd.f32 %v2484, %v2500
        %v2505 = vadd.f32 %v2485, %v2501
        %v2506 = vld [vmem:[%s14] sm:$0xff]
        %2508 = vset.pattern.permute.xlu0 0
        %2509 = vperm.xlu0 %2508, %v2506
        %v2510 = vpop.permute.xlu0 %2509
        %v2512 = vadd.f32 %v2502, %v2510
        %v2513 = vadd.f32 %v2503, %v2510
        %v2514 = vadd.f32 %v2504, %v2510
        %v2515 = vadd.f32 %v2505, %v2510
        %v2516 = vmul.f32 %v511, 2.0
        %v2517 = vmul.f32 %v512, 2.0
        %v2518 = vmul.f32 %v513, 2.0
        %v2519 = vmul.f32 %v514, 2.0
        %v2520 = vadd.f32 %v2512, %v2516
        %v2521 = vadd.f32 %v2513, %v2517
        %v2522 = vadd.f32 %v2514, %v2518
        %v2523 = vadd.f32 %v2515, %v2519
        %2524 = vst [vmem:[%s510] sm:$0xff] %v2520
        %2525 = vst [vmem:[%s510 + $0x8] sm:$0xff] %v2521
        %2526 = vst [vmem:[%s510 + $0x10] sm:$0xff] %v2522
        %2527 = vst [vmem:[%s510 + $0x18] sm:$0xff] %v2523
        %s2528 = sand.u32 %s360, 1
        %s2529 = scalar_lea.sflag [#allocation4], %s2528
        %s2530 = sand.u32 %s360, 1
        %s2531 = smul.addr %s2530, 32
        %s2532 = scalar_lea.vmem [#allocation5], %s2531
        // Predicated region
        $region85: #{tpu_custom_call.1} parent=79 // pred_check
          %p2533 = pneg %p370
        $region86: #{tpu_custom_call.1} parent=79 // pred_check_branch
          %2535 = sbr.rel (%p2533) target = $region88
        $region87: #{tpu_custom_call.1} parent=79 // pred_region
          %s2537 = ssub.s32 512, 512
          %2538 = vsyncadd %s2529, %s2537
          %s2539 = smul.addr %s32, 4
          %s2540 = smul.addr %s2539, 128
          %s2541 = scalar_lea.hbm %s15, %s2540
          %s2543 = sshll.u32 %s2532, 4
          %s2544 = int_to_ptr.vmem [resolvable:$true] %s2543
          %2546 = dma.vmem_to_hbm [thread:$0]  %s2544, 512, %s2541, %s2529
        $region88: #{tpu_custom_call.1} parent=79 // pred_fallthru
          _
      $region80: #{tpu_custom_call.1} parent=5 // pred_fallthru
        _
      %p2547 = scmp.le.s32.totalorder 2, %s27
      // Predicated region
      $region89: #{tpu_custom_call.1} parent=5 // pred_check
        %p2548 = pneg %p2547
      $region90: #{tpu_custom_call.1} parent=5 // pred_check_branch
        %2550 = sbr.rel (%p2548) target = $region92
      $region91: #{tpu_custom_call.1} parent=5 // pred_region
        %s2551 = ssub.s32 %s27, 2
        // Predicated region
        $region93: #{tpu_custom_call.1} parent=91 // pred_check
          %p2552 = pneg %p376
        $region94: #{tpu_custom_call.1} parent=91 // pred_check_branch
          %2554 = sbr.rel (%p2552) target = $region96
        $region95: #{tpu_custom_call.1} parent=91 // pred_region
          %s2555 = sand.u32 %s361, 1
          %s2556 = scalar_lea.sflag [#allocation4], %s2555
          %s2557 = sand.u32 %s361, 1
          %s2558 = smul.addr %s2557, 32
          %s2559 = scalar_lea.vmem [#allocation5], %s2558
          %2560 = dma.done %s2556, 512
        $region96: #{tpu_custom_call.1} parent=91 // pred_fallthru
          _
      $region92: #{tpu_custom_call.1} parent=5 // pred_fallthru
        _
    $region6: #{tpu_custom_call.1} parent=1 // loop_footer
      %s31 = sadd.s32 1, %s27
    $region7: #{tpu_custom_call.1} parent=1 // loop_footer_branch
      %26 = sbr.rel target = $region3
    $region8: #{tpu_custom_call.1} parent=1 // loop_exit
      _
    %2561 = vsyncpa [#allocation3], 1
    %s2562 = scalar_lea.sflag [#allocation3], 1
    %2563 = vsyncpa %s2562, 1
    %2564 = vsyncpa [#allocation4], 1
    %s2565 = scalar_lea.sflag [#allocation4], 1
    %2566 = vsyncpa %s2565, 1

</llo_original>
